<compile_context>
chip_gen: v6e
topology: v6e:2x2x1
jax: 0.10.0
libtpu: 0.0.40
codegen_flags: <defaults>
</compile_context>

<pallas_src>
import functools
import numpy as np
import jax
import jax.numpy as jnp
from jax import lax
from jax.experimental import pallas as pl
from jax.experimental.pallas import tpu as pltpu

LANE = 128      # vreg lane width
SUBLANE = 8     # vreg sublane count (f32)


# --------------------------------------------------------------------------
# Fused kernel: GRU stack + projection + dual softmax (single invocation)
# --------------------------------------------------------------------------
def _decoder_fused_kernel(*refs, num_layers, seq_len, batch_pad, gate_pad, v1):
    """refs = (x, h0, [wih, whh, bih, bhh] * L, proj_w, proj_b, out, y_scr).

    x      : (T*Bp, D0)   time-major flattened embedded input
    h0     : (L, Bp, G)   initial hidden per layer (zero padded)
    wih_l  : (K_l, 3G)    input->hidden weights, gates [r|z|n] each padded to G lanes
    whh_l  : (G, 3G)      hidden->hidden weights, same padding
    bih/bhh: (1, 3G)
    proj_w : (G, V), proj_b: (1, V)
    out    : (T*Bp, V)
    y_scr  : (T*Bp, G)    VMEM scratch holding one layer's output sequence
    """
    x_ref, h0_ref = refs[0], refs[1]
    layer_refs = refs[2:2 + 4 * num_layers]
    proj_w_ref = refs[2 + 4 * num_layers]
    proj_b_ref = refs[3 + 4 * num_layers]
    out_ref = refs[4 + 4 * num_layers]
    y_scr = refs[5 + 4 * num_layers]

    G = gate_pad
    Bp = batch_pad

    seq = x_ref[...]                                        # (T*Bp, K_0)
    for l in range(num_layers):
        wih_ref, whh_ref, bih_ref, bhh_ref = layer_refs[4 * l:4 * l + 4]

        # Hoisted input-to-hidden matmul: whole sequence in one MXU op.
        gi_all = (jnp.dot(seq, wih_ref[...],
                          preferred_element_type=jnp.float32) + bih_ref[...])

        h = h0_ref[l]                                       # (Bp, G)
        for t in range(seq_len):                            # fully unrolled
            gi = gi_all[t * Bp:(t + 1) * Bp, :]             # (Bp, 3G) tile-aligned
            gh = (jnp.dot(h, whh_ref[...],
                          preferred_element_type=jnp.float32) + bhh_ref[...])
            # PyTorch GRU gate order: r, z, n (each gate occupies G lanes)
            r = jax.nn.sigmoid(gi[:, :G] + gh[:, :G])
            z = jax.nn.sigmoid(gi[:, G:2 * G] + gh[:, G:2 * G])
            n = jnp.tanh(gi[:, 2 * G:] + r * gh[:, 2 * G:])
            h = (1.0 - z) * n + z * h
            y_scr[pl.ds(t * Bp, Bp), :] = h                 # tile-aligned store

        seq = y_scr[...]                                    # (T*Bp, G)

    # Projection + split softmax (masked, no concatenate / sub-128 slices).
    logits = (jnp.dot(seq, proj_w_ref[...],
                      preferred_element_type=jnp.float32) + proj_b_ref[...])
    col = lax.broadcasted_iota(jnp.int32, logits.shape, 1)
    is_pitch = col < v1
    neg = jnp.float32(-1e30)
    m_p = jnp.max(jnp.where(is_pitch, logits, neg), axis=-1, keepdims=True)
    m_d = jnp.max(jnp.where(is_pitch, neg, logits), axis=-1, keepdims=True)
    e = jnp.exp(logits - jnp.where(is_pitch, m_p, m_d))
    s_p = jnp.sum(jnp.where(is_pitch, e, 0.0), axis=-1, keepdims=True)
    s_d = jnp.sum(jnp.where(is_pitch, 0.0, e), axis=-1, keepdims=True)
    denom = jnp.where(is_pitch, s_p, s_d)
    out_ref[...] = e * pl.reciprocal(denom, approx=True)


# --------------------------------------------------------------------------
# Parameters (torch layout, used by the reference) + one-time kernel prep
# --------------------------------------------------------------------------
def make_decoder_params(key, vocab_sizes, emb_sizes, hidden_size, num_layers):
    """Deterministic synthetic parameters mirroring Decoder.__init__ (torch layout)."""
    params = {}
    keys = jax.random.split(key, 64)
    ki = iter(range(64))

    params["emb"] = [
        0.1 * jax.random.normal(keys[next(ki)], (v, e), jnp.float32)
        for v, e in zip(vocab_sizes, emb_sizes)
    ]
    emb_total = sum(emb_sizes)

    std = 1.0 / np.sqrt(hidden_size)
    gru = []
    for l in range(num_layers):
        d_in = emb_total if l == 0 else hidden_size
        w_ih = jax.random.uniform(keys[next(ki)], (3 * hidden_size, d_in),
                                  jnp.float32, -std, std)
        w_hh = jax.random.uniform(keys[next(ki)], (3 * hidden_size, hidden_size),
                                  jnp.float32, -std, std)
        b_ih = jax.random.uniform(keys[next(ki)], (3 * hidden_size,),
                                  jnp.float32, -std, std)
        b_hh = jax.random.uniform(keys[next(ki)], (3 * hidden_size,),
                                  jnp.float32, -std, std)
        gru.append((w_ih, w_hh, b_ih, b_hh))
    params["gru"] = gru

    v_out = vocab_sizes[1] + vocab_sizes[2]
    params["proj_w"] = jax.random.uniform(keys[next(ki)], (v_out, hidden_size),
                                          jnp.float32, -std, std)
    params["proj_b"] = jax.random.uniform(keys[next(ki)], (v_out,),
                                          jnp.float32, -std, std)
    return params


def prepare_kernel_params(params, hidden_size):
    """One-time preprocessing: transpose weights, split gates and pad each gate
    block to a 128-lane boundary, pad contraction dims, pre-broadcast biases."""
    H = hidden_size
    G = ((H + LANE - 1) // LANE) * LANE
    kp = {"emb": params["emb"], "gate_pad": G}

    layers = []
    for l, (w_ih, w_hh, b_ih, b_hh) in enumerate(params["gru"]):
        d_in = w_ih.shape[1]
        k_in = d_in if l == 0 else G        # layer >0 consumes the padded hidden
        wih_p = np.zeros((k_in, 3 * G), np.float32)
        whh_p = np.zeros((G, 3 * G), np.float32)
        bih_p = np.zeros((1, 3 * G), np.float32)
        bhh_p = np.zeros((1, 3 * G), np.float32)
        w_ih_n, w_hh_n = np.asarray(w_ih), np.asarray(w_hh)
        b_ih_n, b_hh_n = np.asarray(b_ih), np.asarray(b_hh)
        for g in range(3):                  # torch gate order r, z, n
            wih_p[:d_in, g * G:g * G + H] = w_ih_n[g * H:(g + 1) * H, :].T
            whh_p[:H, g * G:g * G + H] = w_hh_n[g * H:(g + 1) * H, :].T
            bih_p[0, g * G:g * G + H] = b_ih_n[g * H:(g + 1) * H]
            bhh_p[0, g * G:g * G + H] = b_hh_n[g * H:(g + 1) * H]
        layers.append(tuple(jnp.asarray(a) for a in (wih_p, whh_p, bih_p, bhh_p)))
    kp["gru"] = layers

    pw = np.asarray(params["proj_w"])       # (V, H)
    proj_w_p = np.zeros((G, pw.shape[0]), np.float32)
    proj_w_p[:H, :] = pw.T
    kp["proj_w"] = jnp.asarray(proj_w_p)
    kp["proj_b"] = jnp.asarray(params["proj_b"])[None, :]
    return kp


# --------------------------------------------------------------------------
# Forward
# --------------------------------------------------------------------------
def decoder_forward(kparams, x_tokens, enc_output, vocab_sizes):
    """x_tokens: (B, T, F) int32, enc_output: (L, B, H).  Returns prob of shape
    (B, T, vocab[1] + vocab[2]) — dense analogue of the PackedSequence output
    for full-length sequences."""
    B, T, F = x_tokens.shape
    L, _, H = enc_output.shape
    G = kparams["gate_pad"]
    Bp = ((B + SUBLANE - 1) // SUBLANE) * SUBLANE
    v1 = vocab_sizes[1]
    V = vocab_sizes[1] + vocab_sizes[2]

    # MultiEmbedding (glue: gather + concat)
    embs = [jnp.take(kparams["emb"][k], x_tokens[..., k], axis=0) for k in range(F)]
    emb = jnp.concatenate(embs, axis=-1)                    # (B, T, D0)
    D0 = emb.shape[-1]

    # Time-major, batch padded to a sublane tile, flattened: row = t*Bp + b
    x_flat = jnp.pad(jnp.transpose(emb, (1, 0, 2)),
                     ((0, 0), (0, Bp - B), (0, 0))).reshape(T * Bp, D0)
    # Initial hidden, padded to (L, Bp, G) with zeros
    h0 = jnp.pad(enc_output, ((0, 0), (0, Bp - B), (0, G - H)))

    flat_w = [w for layer in kparams["gru"] for w in layer]
    kernel = functools.partial(_decoder_fused_kernel, num_layers=L, seq_len=T,
                               batch_pad=Bp, gate_pad=G, v1=v1)

    prob_flat = pl.pallas_call(
        kernel,
        out_shape=jax.ShapeDtypeStruct((T * Bp, V), jnp.float32),
        scratch_shapes=[pltpu.VMEM((T * Bp, G), jnp.float32)],
    )(x_flat, h0, *flat_w, kparams["proj_w"], kparams["proj_b"])

    return prob_flat.reshape(T, Bp, V)[:, :B].transpose(1, 0, 2)   # (B, T, V)


# --------------------------------------------------------------------------
# Pure-JAX reference for validation
# --------------------------------------------------------------------------
def decoder_forward_ref(params, x_tokens, enc_output, vocab_sizes):
    B, T, F = x_tokens.shape
    embs = [jnp.take(params["emb"][k], x_tokens[..., k], axis=0) for k in range(F)]
    h_in = jnp.concatenate(embs, axis=-1)
    for l, (w_ih, w_hh, b_ih, b_hh) in enumerate(params["gru"]):
        Hh = w_hh.shape[1]
        h = enc_output[l]
        ys = []
        for t in range(T):
            x_t = h_in[:, t]
            gi = x_t @ w_ih.T + b_ih
            gh = h @ w_hh.T + b_hh
            r = jax.nn.sigmoid(gi[:, :Hh] + gh[:, :Hh])
            z = jax.nn.sigmoid(gi[:, Hh:2 * Hh] + gh[:, Hh:2 * Hh])
            n = jnp.tanh(gi[:, 2 * Hh:] + r * gh[:, 2 * Hh:])
            h = (1.0 - z) * n + z * h
            ys.append(h)
        h_in = jnp.stack(ys, axis=1)
    logit = h_in @ params["proj_w"].T + params["proj_b"]
    v1 = vocab_sizes[1]
    return jnp.concatenate([jax.nn.softmax(logit[..., :v1], axis=-1),
                            jax.nn.softmax(logit[..., v1:], axis=-1)], axis=-1)


if __name__ == "__main__":
    # Small config consistent with the module
    vocab_sizes = [16, 20, 12]          # [offset, pitch, duration]
    emb_sizes = [8, 16, 8]              # total = 32  (param.emb.total_size)
    hidden_size = 32                    # param.gru.hidden_size
    num_layers = 2                      # param.gru.num_layers
    B, T = 2, 8

    key = jax.random.PRNGKey(0)
    kp, kx, kh = jax.random.split(key, 3)

    params = make_decoder_params(kp, vocab_sizes, emb_sizes, hidden_size, num_layers)
    kparams = prepare_kernel_params(params, hidden_size)   # one-time prep

    x_tokens = jnp.stack(
        [jax.random.randint(jax.random.fold_in(kx, k), (B, T), 0, vocab_sizes[k])
         for k in range(3)], axis=-1).astype(jnp.int32)
    enc_output = 0.1 * jax.random.normal(kh, (num_layers, B, hidden_size), jnp.float32)

    # TODO(synk): PackedSequence variable-length packing is not modeled; output
    # is the dense (B, T, V) probability tensor (full-length sequences).
    prob = decoder_forward(kparams, x_tokens, enc_output, vocab_sizes)
    prob = jax.block_until_ready(prob)

    ref = decoder_forward_ref(params, x_tokens, enc_output, vocab_sizes)
    np.testing.assert_allclose(np.asarray(prob), np.asarray(ref), atol=2e-3, rtol=2e-3)

    print("KERNEL_OK")
</pallas_src>

<mosaic_0001>
module attributes {stable_mosaic.version = 11 : i64} {
  func.func @_decoder_fused_kernel(%arg0: memref<64x32xf32, #tpu.memory_space<vmem>>, %arg1: memref<2x8x128xf32, #tpu.memory_space<vmem>>, %arg2: memref<32x384xf32, #tpu.memory_space<vmem>>, %arg3: memref<128x384xf32, #tpu.memory_space<vmem>>, %arg4: memref<1x384xf32, #tpu.memory_space<vmem>>, %arg5: memref<1x384xf32, #tpu.memory_space<vmem>>, %arg6: memref<128x384xf32, #tpu.memory_space<vmem>>, %arg7: memref<128x384xf32, #tpu.memory_space<vmem>>, %arg8: memref<1x384xf32, #tpu.memory_space<vmem>>, %arg9: memref<1x384xf32, #tpu.memory_space<vmem>>, %arg10: memref<128x32xf32, #tpu.memory_space<vmem>>, %arg11: memref<1x32xf32, #tpu.memory_space<vmem>>, %arg12: memref<64x32xf32, #tpu.memory_space<vmem>>, %arg13: memref<64x128xf32, #tpu.memory_space<vmem>>) attributes {dimension_semantics = [], scalar_prefetch = 0 : i64, scratch_operands = 1 : i64, tpu.core_type = #tpu.core_type<tc>} {
    %c0 = arith.constant 0 : index
    %c0_0 = arith.constant 0 : index
    %0 = vector.load %arg0[%c0, %c0_0] : memref<64x32xf32, #tpu.memory_space<vmem>>, vector<64x32xf32>
    %c0_1 = arith.constant 0 : index
    %c0_2 = arith.constant 0 : index
    %1 = vector.load %arg2[%c0_1, %c0_2] : memref<32x384xf32, #tpu.memory_space<vmem>>, vector<32x384xf32>
    %cst = arith.constant dense<0.000000e+00> : vector<64x384xf32>
    %2 = tpu.matmul %0, %1, %cst {dimension_numbers = #tpu.dot_dimension_numbers<[1], [0], [0], [1], [0, 0, 1, 1], [], []>} : vector<64x32xf32>, vector<32x384xf32>, vector<64x384xf32> -> vector<64x384xf32>
    %c0_3 = arith.constant 0 : index
    %c0_4 = arith.constant 0 : index
    %3 = vector.load %arg4[%c0_3, %c0_4] : memref<1x384xf32, #tpu.memory_space<vmem>>, vector<1x384xf32>
    %4 = vector.broadcast %3 : vector<1x384xf32> to vector<64x384xf32>
    %5 = arith.addf %2, %4 : vector<64x384xf32>
    %c0_5 = arith.constant 0 : index
    %c0_6 = arith.constant 0 : index
    %c0_7 = arith.constant 0 : index
    %6 = vector.load %arg1[%c0_5, %c0_6, %c0_7] : memref<2x8x128xf32, #tpu.memory_space<vmem>>, vector<1x8x128xf32>
    %7 = vector.shape_cast %6 : vector<1x8x128xf32> to vector<8x128xf32>
    %8 = vector.extract_strided_slice %5 {offsets = [0, 0], sizes = [8, 384], strides = [1, 1]} : vector<64x384xf32> to vector<8x384xf32>
    %c0_8 = arith.constant 0 : index
    %c0_9 = arith.constant 0 : index
    %9 = vector.load %arg3[%c0_8, %c0_9] : memref<128x384xf32, #tpu.memory_space<vmem>>, vector<128x384xf32>
    %cst_10 = arith.constant dense<0.000000e+00> : vector<8x384xf32>
    %10 = tpu.matmul %7, %9, %cst_10 {dimension_numbers = #tpu.dot_dimension_numbers<[1], [0], [0], [1], [0, 0, 1, 1], [], []>} : vector<8x128xf32>, vector<128x384xf32>, vector<8x384xf32> -> vector<8x384xf32>
    %c0_11 = arith.constant 0 : index
    %c0_12 = arith.constant 0 : index
    %11 = vector.load %arg5[%c0_11, %c0_12] : memref<1x384xf32, #tpu.memory_space<vmem>>, vector<1x384xf32>
    %12 = vector.broadcast %11 : vector<1x384xf32> to vector<8x384xf32>
    %13 = arith.addf %10, %12 : vector<8x384xf32>
    %14 = vector.extract_strided_slice %8 {offsets = [0, 0], sizes = [8, 128], strides = [1, 1]} : vector<8x384xf32> to vector<8x128xf32>
    %15 = vector.extract_strided_slice %13 {offsets = [0, 0], sizes = [8, 128], strides = [1, 1]} : vector<8x384xf32> to vector<8x128xf32>
    %16 = arith.addf %14, %15 : vector<8x128xf32>
    %17 = arith.negf %16 : vector<8x128xf32>
    %18 = math.exp %17 : vector<8x128xf32>
    %cst_13 = arith.constant 1.000000e+00 : f32
    %19 = vector.broadcast %cst_13 : f32 to vector<8x128xf32>
    %20 = arith.addf %19, %18 : vector<8x128xf32>
    %21 = arith.divf %19, %20 : vector<8x128xf32>
    %22 = vector.extract_strided_slice %8 {offsets = [0, 128], sizes = [8, 128], strides = [1, 1]} : vector<8x384xf32> to vector<8x128xf32>
    %23 = vector.extract_strided_slice %13 {offsets = [0, 128], sizes = [8, 128], strides = [1, 1]} : vector<8x384xf32> to vector<8x128xf32>
    %24 = arith.addf %22, %23 : vector<8x128xf32>
    %25 = arith.negf %24 : vector<8x128xf32>
    %26 = math.exp %25 : vector<8x128xf32>
    %cst_14 = arith.constant 1.000000e+00 : f32
    %27 = vector.broadcast %cst_14 : f32 to vector<8x128xf32>
    %28 = arith.addf %27, %26 : vector<8x128xf32>
    %29 = arith.divf %27, %28 : vector<8x128xf32>
    %30 = vector.extract_strided_slice %8 {offsets = [0, 256], sizes = [8, 128], strides = [1, 1]} : vector<8x384xf32> to vector<8x128xf32>
    %31 = vector.extract_strided_slice %13 {offsets = [0, 256], sizes = [8, 128], strides = [1, 1]} : vector<8x384xf32> to vector<8x128xf32>
    %32 = arith.mulf %21, %31 : vector<8x128xf32>
    %33 = arith.addf %30, %32 : vector<8x128xf32>
    %34 = math.tanh %33 : vector<8x128xf32>
    %cst_15 = arith.constant 1.000000e+00 : f32
    %35 = vector.broadcast %cst_15 : f32 to vector<8x128xf32>
    %36 = arith.subf %35, %29 : vector<8x128xf32>
    %37 = arith.mulf %36, %34 : vector<8x128xf32>
    %38 = arith.mulf %29, %7 : vector<8x128xf32>
    %39 = arith.addf %37, %38 : vector<8x128xf32>
    %c0_16 = arith.constant 0 : index
    %c0_17 = arith.constant 0 : index
    %40 = vector.load %arg13[%c0_16, %c0_17] : memref<64x128xf32, #tpu.memory_space<vmem>>, vector<8x128xf32>
    tpu.vector_store %arg13[%c0_16, %c0_17], %39 {strides = array<i32>} : memref<64x128xf32, #tpu.memory_space<vmem>>, vector<8x128xf32>,
    %41 = vector.extract_strided_slice %5 {offsets = [8, 0], sizes = [8, 384], strides = [1, 1]} : vector<64x384xf32> to vector<8x384xf32>
    %c0_18 = arith.constant 0 : index
    %c0_19 = arith.constant 0 : index
    %42 = vector.load %arg3[%c0_18, %c0_19] : memref<128x384xf32, #tpu.memory_space<vmem>>, vector<128x384xf32>
    %cst_20 = arith.constant dense<0.000000e+00> : vector<8x384xf32>
    %43 = tpu.matmul %39, %42, %cst_20 {dimension_numbers = #tpu.dot_dimension_numbers<[1], [0], [0], [1], [0, 0, 1, 1], [], []>} : vector<8x128xf32>, vector<128x384xf32>, vector<8x384xf32> -> vector<8x384xf32>
    %c0_21 = arith.constant 0 : index
    %c0_22 = arith.constant 0 : index
    %44 = vector.load %arg5[%c0_21, %c0_22] : memref<1x384xf32, #tpu.memory_space<vmem>>, vector<1x384xf32>
    %45 = vector.broadcast %44 : vector<1x384xf32> to vector<8x384xf32>
    %46 = arith.addf %43, %45 : vector<8x384xf32>
    %47 = vector.extract_strided_slice %41 {offsets = [0, 0], sizes = [8, 128], strides = [1, 1]} : vector<8x384xf32> to vector<8x128xf32>
    %48 = vector.extract_strided_slice %46 {offsets = [0, 0], sizes = [8, 128], strides = [1, 1]} : vector<8x384xf32> to vector<8x128xf32>
    %49 = arith.addf %47, %48 : vector<8x128xf32>
    %50 = arith.negf %49 : vector<8x128xf32>
    %51 = math.exp %50 : vector<8x128xf32>
    %cst_23 = arith.constant 1.000000e+00 : f32
    %52 = vector.broadcast %cst_23 : f32 to vector<8x128xf32>
    %53 = arith.addf %52, %51 : vector<8x128xf32>
    %54 = arith.divf %52, %53 : vector<8x128xf32>
    %55 = vector.extract_strided_slice %41 {offsets = [0, 128], sizes = [8, 128], strides = [1, 1]} : vector<8x384xf32> to vector<8x128xf32>
    %56 = vector.extract_strided_slice %46 {offsets = [0, 128], sizes = [8, 128], strides = [1, 1]} : vector<8x384xf32> to vector<8x128xf32>
    %57 = arith.addf %55, %56 : vector<8x128xf32>
    %58 = arith.negf %57 : vector<8x128xf32>
    %59 = math.exp %58 : vector<8x128xf32>
    %cst_24 = arith.constant 1.000000e+00 : f32
    %60 = vector.broadcast %cst_24 : f32 to vector<8x128xf32>
    %61 = arith.addf %60, %59 : vector<8x128xf32>
    %62 = arith.divf %60, %61 : vector<8x128xf32>
    %63 = vector.extract_strided_slice %41 {offsets = [0, 256], sizes = [8, 128], strides = [1, 1]} : vector<8x384xf32> to vector<8x128xf32>
    %64 = vector.extract_strided_slice %46 {offsets = [0, 256], sizes = [8, 128], strides = [1, 1]} : vector<8x384xf32> to vector<8x128xf32>
    %65 = arith.mulf %54, %64 : vector<8x128xf32>
    %66 = arith.addf %63, %65 : vector<8x128xf32>
    %67 = math.tanh %66 : vector<8x128xf32>
    %cst_25 = arith.constant 1.000000e+00 : f32
    %68 = vector.broadcast %cst_25 : f32 to vector<8x128xf32>
    %69 = arith.subf %68, %62 : vector<8x128xf32>
    %70 = arith.mulf %69, %67 : vector<8x128xf32>
    %71 = arith.mulf %62, %39 : vector<8x128xf32>
    %72 = arith.addf %70, %71 : vector<8x128xf32>
    %c8 = arith.constant 8 : index
    %c0_26 = arith.constant 0 : index
    %73 = vector.load %arg13[%c8, %c0_26] : memref<64x128xf32, #tpu.memory_space<vmem>>, vector<8x128xf32>
    tpu.vector_store %arg13[%c8, %c0_26], %72 {strides = array<i32>} : memref<64x128xf32, #tpu.memory_space<vmem>>, vector<8x128xf32>,
    %74 = vector.extract_strided_slice %5 {offsets = [16, 0], sizes = [8, 384], strides = [1, 1]} : vector<64x384xf32> to vector<8x384xf32>
    %c0_27 = arith.constant 0 : index
    %c0_28 = arith.constant 0 : index
    %75 = vector.load %arg3[%c0_27, %c0_28] : memref<128x384xf32, #tpu.memory_space<vmem>>, vector<128x384xf32>
    %cst_29 = arith.constant dense<0.000000e+00> : vector<8x384xf32>
    %76 = tpu.matmul %72, %75, %cst_29 {dimension_numbers = #tpu.dot_dimension_numbers<[1], [0], [0], [1], [0, 0, 1, 1], [], []>} : vector<8x128xf32>, vector<128x384xf32>, vector<8x384xf32> -> vector<8x384xf32>
    %c0_30 = arith.constant 0 : index
    %c0_31 = arith.constant 0 : index
    %77 = vector.load %arg5[%c0_30, %c0_31] : memref<1x384xf32, #tpu.memory_space<vmem>>, vector<1x384xf32>
    %78 = vector.broadcast %77 : vector<1x384xf32> to vector<8x384xf32>
    %79 = arith.addf %76, %78 : vector<8x384xf32>
    %80 = vector.extract_strided_slice %74 {offsets = [0, 0], sizes = [8, 128], strides = [1, 1]} : vector<8x384xf32> to vector<8x128xf32>
    %81 = vector.extract_strided_slice %79 {offsets = [0, 0], sizes = [8, 128], strides = [1, 1]} : vector<8x384xf32> to vector<8x128xf32>
    %82 = arith.addf %80, %81 : vector<8x128xf32>
    %83 = arith.negf %82 : vector<8x128xf32>
    %84 = math.exp %83 : vector<8x128xf32>
    %cst_32 = arith.constant 1.000000e+00 : f32
    %85 = vector.broadcast %cst_32 : f32 to vector<8x128xf32>
    %86 = arith.addf %85, %84 : vector<8x128xf32>
    %87 = arith.divf %85, %86 : vector<8x128xf32>
    %88 = vector.extract_strided_slice %74 {offsets = [0, 128], sizes = [8, 128], strides = [1, 1]} : vector<8x384xf32> to vector<8x128xf32>
    %89 = vector.extract_strided_slice %79 {offsets = [0, 128], sizes = [8, 128], strides = [1, 1]} : vector<8x384xf32> to vector<8x128xf32>
    %90 = arith.addf %88, %89 : vector<8x128xf32>
    %91 = arith.negf %90 : vector<8x128xf32>
    %92 = math.exp %91 : vector<8x128xf32>
    %cst_33 = arith.constant 1.000000e+00 : f32
    %93 = vector.broadcast %cst_33 : f32 to vector<8x128xf32>
    %94 = arith.addf %93, %92 : vector<8x128xf32>
    %95 = arith.divf %93, %94 : vector<8x128xf32>
    %96 = vector.extract_strided_slice %74 {offsets = [0, 256], sizes = [8, 128], strides = [1, 1]} : vector<8x384xf32> to vector<8x128xf32>
    %97 = vector.extract_strided_slice %79 {offsets = [0, 256], sizes = [8, 128], strides = [1, 1]} : vector<8x384xf32> to vector<8x128xf32>
    %98 = arith.mulf %87, %97 : vector<8x128xf32>
    %99 = arith.addf %96, %98 : vector<8x128xf32>
    %100 = math.tanh %99 : vector<8x128xf32>
    %cst_34 = arith.constant 1.000000e+00 : f32
    %101 = vector.broadcast %cst_34 : f32 to vector<8x128xf32>
    %102 = arith.subf %101, %95 : vector<8x128xf32>
    %103 = arith.mulf %102, %100 : vector<8x128xf32>
    %104 = arith.mulf %95, %72 : vector<8x128xf32>
    %105 = arith.addf %103, %104 : vector<8x128xf32>
    %c16 = arith.constant 16 : index
    %c0_35 = arith.constant 0 : index
    %106 = vector.load %arg13[%c16, %c0_35] : memref<64x128xf32, #tpu.memory_space<vmem>>, vector<8x128xf32>
    tpu.vector_store %arg13[%c16, %c0_35], %105 {strides = array<i32>} : memref<64x128xf32, #tpu.memory_space<vmem>>, vector<8x128xf32>,
    %107 = vector.extract_strided_slice %5 {offsets = [24, 0], sizes = [8, 384], strides = [1, 1]} : vector<64x384xf32> to vector<8x384xf32>
    %c0_36 = arith.constant 0 : index
    %c0_37 = arith.constant 0 : index
    %108 = vector.load %arg3[%c0_36, %c0_37] : memref<128x384xf32, #tpu.memory_space<vmem>>, vector<128x384xf32>
    %cst_38 = arith.constant dense<0.000000e+00> : vector<8x384xf32>
    %109 = tpu.matmul %105, %108, %cst_38 {dimension_numbers = #tpu.dot_dimension_numbers<[1], [0], [0], [1], [0, 0, 1, 1], [], []>} : vector<8x128xf32>, vector<128x384xf32>, vector<8x384xf32> -> vector<8x384xf32>
    %c0_39 = arith.constant 0 : index
    %c0_40 = arith.constant 0 : index
    %110 = vector.load %arg5[%c0_39, %c0_40] : memref<1x384xf32, #tpu.memory_space<vmem>>, vector<1x384xf32>
    %111 = vector.broadcast %110 : vector<1x384xf32> to vector<8x384xf32>
    %112 = arith.addf %109, %111 : vector<8x384xf32>
    %113 = vector.extract_strided_slice %107 {offsets = [0, 0], sizes = [8, 128], strides = [1, 1]} : vector<8x384xf32> to vector<8x128xf32>
    %114 = vector.extract_strided_slice %112 {offsets = [0, 0], sizes = [8, 128], strides = [1, 1]} : vector<8x384xf32> to vector<8x128xf32>
    %115 = arith.addf %113, %114 : vector<8x128xf32>
    %116 = arith.negf %115 : vector<8x128xf32>
    %117 = math.exp %116 : vector<8x128xf32>
    %cst_41 = arith.constant 1.000000e+00 : f32
    %118 = vector.broadcast %cst_41 : f32 to vector<8x128xf32>
    %119 = arith.addf %118, %117 : vector<8x128xf32>
    %120 = arith.divf %118, %119 : vector<8x128xf32>
    %121 = vector.extract_strided_slice %107 {offsets = [0, 128], sizes = [8, 128], strides = [1, 1]} : vector<8x384xf32> to vector<8x128xf32>
    %122 = vector.extract_strided_slice %112 {offsets = [0, 128], sizes = [8, 128], strides = [1, 1]} : vector<8x384xf32> to vector<8x128xf32>
    %123 = arith.addf %121, %122 : vector<8x128xf32>
    %124 = arith.negf %123 : vector<8x128xf32>
    %125 = math.exp %124 : vector<8x128xf32>
    %cst_42 = arith.constant 1.000000e+00 : f32
    %126 = vector.broadcast %cst_42 : f32 to vector<8x128xf32>
    %127 = arith.addf %126, %125 : vector<8x128xf32>
    %128 = arith.divf %126, %127 : vector<8x128xf32>
    %129 = vector.extract_strided_slice %107 {offsets = [0, 256], sizes = [8, 128], strides = [1, 1]} : vector<8x384xf32> to vector<8x128xf32>
    %130 = vector.extract_strided_slice %112 {offsets = [0, 256], sizes = [8, 128], strides = [1, 1]} : vector<8x384xf32> to vector<8x128xf32>
    %131 = arith.mulf %120, %130 : vector<8x128xf32>
    %132 = arith.addf %129, %131 : vector<8x128xf32>
    %133 = math.tanh %132 : vector<8x128xf32>
    %cst_43 = arith.constant 1.000000e+00 : f32
    %134 = vector.broadcast %cst_43 : f32 to vector<8x128xf32>
    %135 = arith.subf %134, %128 : vector<8x128xf32>
    %136 = arith.mulf %135, %133 : vector<8x128xf32>
    %137 = arith.mulf %128, %105 : vector<8x128xf32>
    %138 = arith.addf %136, %137 : vector<8x128xf32>
    %c24 = arith.constant 24 : index
    %c0_44 = arith.constant 0 : index
    %139 = vector.load %arg13[%c24, %c0_44] : memref<64x128xf32, #tpu.memory_space<vmem>>, vector<8x128xf32>
    tpu.vector_store %arg13[%c24, %c0_44], %138 {strides = array<i32>} : memref<64x128xf32, #tpu.memory_space<vmem>>, vector<8x128xf32>,
    %140 = vector.extract_strided_slice %5 {offsets = [32, 0], sizes = [8, 384], strides = [1, 1]} : vector<64x384xf32> to vector<8x384xf32>
    %c0_45 = arith.constant 0 : index
    %c0_46 = arith.constant 0 : index
    %141 = vector.load %arg3[%c0_45, %c0_46] : memref<128x384xf32, #tpu.memory_space<vmem>>, vector<128x384xf32>
    %cst_47 = arith.constant dense<0.000000e+00> : vector<8x384xf32>
    %142 = tpu.matmul %138, %141, %cst_47 {dimension_numbers = #tpu.dot_dimension_numbers<[1], [0], [0], [1], [0, 0, 1, 1], [], []>} : vector<8x128xf32>, vector<128x384xf32>, vector<8x384xf32> -> vector<8x384xf32>
    %c0_48 = arith.constant 0 : index
    %c0_49 = arith.constant 0 : index
    %143 = vector.load %arg5[%c0_48, %c0_49] : memref<1x384xf32, #tpu.memory_space<vmem>>, vector<1x384xf32>
    %144 = vector.broadcast %143 : vector<1x384xf32> to vector<8x384xf32>
    %145 = arith.addf %142, %144 : vector<8x384xf32>
    %146 = vector.extract_strided_slice %140 {offsets = [0, 0], sizes = [8, 128], strides = [1, 1]} : vector<8x384xf32> to vector<8x128xf32>
    %147 = vector.extract_strided_slice %145 {offsets = [0, 0], sizes = [8, 128], strides = [1, 1]} : vector<8x384xf32> to vector<8x128xf32>
    %148 = arith.addf %146, %147 : vector<8x128xf32>
    %149 = arith.negf %148 : vector<8x128xf32>
    %150 = math.exp %149 : vector<8x128xf32>
    %cst_50 = arith.constant 1.000000e+00 : f32
    %151 = vector.broadcast %cst_50 : f32 to vector<8x128xf32>
    %152 = arith.addf %151, %150 : vector<8x128xf32>
    %153 = arith.divf %151, %152 : vector<8x128xf32>
    %154 = vector.extract_strided_slice %140 {offsets = [0, 128], sizes = [8, 128], strides = [1, 1]} : vector<8x384xf32> to vector<8x128xf32>
    %155 = vector.extract_strided_slice %145 {offsets = [0, 128], sizes = [8, 128], strides = [1, 1]} : vector<8x384xf32> to vector<8x128xf32>
    %156 = arith.addf %154, %155 : vector<8x128xf32>
    %157 = arith.negf %156 : vector<8x128xf32>
    %158 = math.exp %157 : vector<8x128xf32>
    %cst_51 = arith.constant 1.000000e+00 : f32
    %159 = vector.broadcast %cst_51 : f32 to vector<8x128xf32>
    %160 = arith.addf %159, %158 : vector<8x128xf32>
    %161 = arith.divf %159, %160 : vector<8x128xf32>
    %162 = vector.extract_strided_slice %140 {offsets = [0, 256], sizes = [8, 128], strides = [1, 1]} : vector<8x384xf32> to vector<8x128xf32>
    %163 = vector.extract_strided_slice %145 {offsets = [0, 256], sizes = [8, 128], strides = [1, 1]} : vector<8x384xf32> to vector<8x128xf32>
    %164 = arith.mulf %153, %163 : vector<8x128xf32>
    %165 = arith.addf %162, %164 : vector<8x128xf32>
    %166 = math.tanh %165 : vector<8x128xf32>
    %cst_52 = arith.constant 1.000000e+00 : f32
    %167 = vector.broadcast %cst_52 : f32 to vector<8x128xf32>
    %168 = arith.subf %167, %161 : vector<8x128xf32>
    %169 = arith.mulf %168, %166 : vector<8x128xf32>
    %170 = arith.mulf %161, %138 : vector<8x128xf32>
    %171 = arith.addf %169, %170 : vector<8x128xf32>
    %c32 = arith.constant 32 : index
    %c0_53 = arith.constant 0 : index
    %172 = vector.load %arg13[%c32, %c0_53] : memref<64x128xf32, #tpu.memory_space<vmem>>, vector<8x128xf32>
    tpu.vector_store %arg13[%c32, %c0_53], %171 {strides = array<i32>} : memref<64x128xf32, #tpu.memory_space<vmem>>, vector<8x128xf32>,
    %173 = vector.extract_strided_slice %5 {offsets = [40, 0], sizes = [8, 384], strides = [1, 1]} : vector<64x384xf32> to vector<8x384xf32>
    %c0_54 = arith.constant 0 : index
    %c0_55 = arith.constant 0 : index
    %174 = vector.load %arg3[%c0_54, %c0_55] : memref<128x384xf32, #tpu.memory_space<vmem>>, vector<128x384xf32>
    %cst_56 = arith.constant dense<0.000000e+00> : vector<8x384xf32>
    %175 = tpu.matmul %171, %174, %cst_56 {dimension_numbers = #tpu.dot_dimension_numbers<[1], [0], [0], [1], [0, 0, 1, 1], [], []>} : vector<8x128xf32>, vector<128x384xf32>, vector<8x384xf32> -> vector<8x384xf32>
    %c0_57 = arith.constant 0 : index
    %c0_58 = arith.constant 0 : index
    %176 = vector.load %arg5[%c0_57, %c0_58] : memref<1x384xf32, #tpu.memory_space<vmem>>, vector<1x384xf32>
    %177 = vector.broadcast %176 : vector<1x384xf32> to vector<8x384xf32>
    %178 = arith.addf %175, %177 : vector<8x384xf32>
    %179 = vector.extract_strided_slice %173 {offsets = [0, 0], sizes = [8, 128], strides = [1, 1]} : vector<8x384xf32> to vector<8x128xf32>
    %180 = vector.extract_strided_slice %178 {offsets = [0, 0], sizes = [8, 128], strides = [1, 1]} : vector<8x384xf32> to vector<8x128xf32>
    %181 = arith.addf %179, %180 : vector<8x128xf32>
    %182 = arith.negf %181 : vector<8x128xf32>
    %183 = math.exp %182 : vector<8x128xf32>
    %cst_59 = arith.constant 1.000000e+00 : f32
    %184 = vector.broadcast %cst_59 : f32 to vector<8x128xf32>
    %185 = arith.addf %184, %183 : vector<8x128xf32>
    %186 = arith.divf %184, %185 : vector<8x128xf32>
    %187 = vector.extract_strided_slice %173 {offsets = [0, 128], sizes = [8, 128], strides = [1, 1]} : vector<8x384xf32> to vector<8x128xf32>
    %188 = vector.extract_strided_slice %178 {offsets = [0, 128], sizes = [8, 128], strides = [1, 1]} : vector<8x384xf32> to vector<8x128xf32>
    %189 = arith.addf %187, %188 : vector<8x128xf32>
    %190 = arith.negf %189 : vector<8x128xf32>
    %191 = math.exp %190 : vector<8x128xf32>
    %cst_60 = arith.constant 1.000000e+00 : f32
    %192 = vector.broadcast %cst_60 : f32 to vector<8x128xf32>
    %193 = arith.addf %192, %191 : vector<8x128xf32>
    %194 = arith.divf %192, %193 : vector<8x128xf32>
    %195 = vector.extract_strided_slice %173 {offsets = [0, 256], sizes = [8, 128], strides = [1, 1]} : vector<8x384xf32> to vector<8x128xf32>
    %196 = vector.extract_strided_slice %178 {offsets = [0, 256], sizes = [8, 128], strides = [1, 1]} : vector<8x384xf32> to vector<8x128xf32>
    %197 = arith.mulf %186, %196 : vector<8x128xf32>
    %198 = arith.addf %195, %197 : vector<8x128xf32>
    %199 = math.tanh %198 : vector<8x128xf32>
    %cst_61 = arith.constant 1.000000e+00 : f32
    %200 = vector.broadcast %cst_61 : f32 to vector<8x128xf32>
    %201 = arith.subf %200, %194 : vector<8x128xf32>
    %202 = arith.mulf %201, %199 : vector<8x128xf32>
    %203 = arith.mulf %194, %171 : vector<8x128xf32>
    %204 = arith.addf %202, %203 : vector<8x128xf32>
    %c40 = arith.constant 40 : index
    %c0_62 = arith.constant 0 : index
    %205 = vector.load %arg13[%c40, %c0_62] : memref<64x128xf32, #tpu.memory_space<vmem>>, vector<8x128xf32>
    tpu.vector_store %arg13[%c40, %c0_62], %204 {strides = array<i32>} : memref<64x128xf32, #tpu.memory_space<vmem>>, vector<8x128xf32>,
    %206 = vector.extract_strided_slice %5 {offsets = [48, 0], sizes = [8, 384], strides = [1, 1]} : vector<64x384xf32> to vector<8x384xf32>
    %c0_63 = arith.constant 0 : index
    %c0_64 = arith.constant 0 : index
    %207 = vector.load %arg3[%c0_63, %c0_64] : memref<128x384xf32, #tpu.memory_space<vmem>>, vector<128x384xf32>
    %cst_65 = arith.constant dense<0.000000e+00> : vector<8x384xf32>
    %208 = tpu.matmul %204, %207, %cst_65 {dimension_numbers = #tpu.dot_dimension_numbers<[1], [0], [0], [1], [0, 0, 1, 1], [], []>} : vector<8x128xf32>, vector<128x384xf32>, vector<8x384xf32> -> vector<8x384xf32>
    %c0_66 = arith.constant 0 : index
    %c0_67 = arith.constant 0 : index
    %209 = vector.load %arg5[%c0_66, %c0_67] : memref<1x384xf32, #tpu.memory_space<vmem>>, vector<1x384xf32>
    %210 = vector.broadcast %209 : vector<1x384xf32> to vector<8x384xf32>
    %211 = arith.addf %208, %210 : vector<8x384xf32>
    %212 = vector.extract_strided_slice %206 {offsets = [0, 0], sizes = [8, 128], strides = [1, 1]} : vector<8x384xf32> to vector<8x128xf32>
    %213 = vector.extract_strided_slice %211 {offsets = [0, 0], sizes = [8, 128], strides = [1, 1]} : vector<8x384xf32> to vector<8x128xf32>
    %214 = arith.addf %212, %213 : vector<8x128xf32>
    %215 = arith.negf %214 : vector<8x128xf32>
    %216 = math.exp %215 : vector<8x128xf32>
    %cst_68 = arith.constant 1.000000e+00 : f32
    %217 = vector.broadcast %cst_68 : f32 to vector<8x128xf32>
    %218 = arith.addf %217, %216 : vector<8x128xf32>
    %219 = arith.divf %217, %218 : vector<8x128xf32>
    %220 = vector.extract_strided_slice %206 {offsets = [0, 128], sizes = [8, 128], strides = [1, 1]} : vector<8x384xf32> to vector<8x128xf32>
    %221 = vector.extract_strided_slice %211 {offsets = [0, 128], sizes = [8, 128], strides = [1, 1]} : vector<8x384xf32> to vector<8x128xf32>
    %222 = arith.addf %220, %221 : vector<8x128xf32>
    %223 = arith.negf %222 : vector<8x128xf32>
    %224 = math.exp %223 : vector<8x128xf32>
    %cst_69 = arith.constant 1.000000e+00 : f32
    %225 = vector.broadcast %cst_69 : f32 to vector<8x128xf32>
    %226 = arith.addf %225, %224 : vector<8x128xf32>
    %227 = arith.divf %225, %226 : vector<8x128xf32>
    %228 = vector.extract_strided_slice %206 {offsets = [0, 256], sizes = [8, 128], strides = [1, 1]} : vector<8x384xf32> to vector<8x128xf32>
    %229 = vector.extract_strided_slice %211 {offsets = [0, 256], sizes = [8, 128], strides = [1, 1]} : vector<8x384xf32> to vector<8x128xf32>
    %230 = arith.mulf %219, %229 : vector<8x128xf32>
    %231 = arith.addf %228, %230 : vector<8x128xf32>
    %232 = math.tanh %231 : vector<8x128xf32>
    %cst_70 = arith.constant 1.000000e+00 : f32
    %233 = vector.broadcast %cst_70 : f32 to vector<8x128xf32>
    %234 = arith.subf %233, %227 : vector<8x128xf32>
    %235 = arith.mulf %234, %232 : vector<8x128xf32>
    %236 = arith.mulf %227, %204 : vector<8x128xf32>
    %237 = arith.addf %235, %236 : vector<8x128xf32>
    %c48 = arith.constant 48 : index
    %c0_71 = arith.constant 0 : index
    %238 = vector.load %arg13[%c48, %c0_71] : memref<64x128xf32, #tpu.memory_space<vmem>>, vector<8x128xf32>
    tpu.vector_store %arg13[%c48, %c0_71], %237 {strides = array<i32>} : memref<64x128xf32, #tpu.memory_space<vmem>>, vector<8x128xf32>,
    %239 = vector.extract_strided_slice %5 {offsets = [56, 0], sizes = [8, 384], strides = [1, 1]} : vector<64x384xf32> to vector<8x384xf32>
    %c0_72 = arith.constant 0 : index
    %c0_73 = arith.constant 0 : index
    %240 = vector.load %arg3[%c0_72, %c0_73] : memref<128x384xf32, #tpu.memory_space<vmem>>, vector<128x384xf32>
    %cst_74 = arith.constant dense<0.000000e+00> : vector<8x384xf32>
    %241 = tpu.matmul %237, %240, %cst_74 {dimension_numbers = #tpu.dot_dimension_numbers<[1], [0], [0], [1], [0, 0, 1, 1], [], []>} : vector<8x128xf32>, vector<128x384xf32>, vector<8x384xf32> -> vector<8x384xf32>
    %c0_75 = arith.constant 0 : index
    %c0_76 = arith.constant 0 : index
    %242 = vector.load %arg5[%c0_75, %c0_76] : memref<1x384xf32, #tpu.memory_space<vmem>>, vector<1x384xf32>
    %243 = vector.broadcast %242 : vector<1x384xf32> to vector<8x384xf32>
    %244 = arith.addf %241, %243 : vector<8x384xf32>
    %245 = vector.extract_strided_slice %239 {offsets = [0, 0], sizes = [8, 128], strides = [1, 1]} : vector<8x384xf32> to vector<8x128xf32>
    %246 = vector.extract_strided_slice %244 {offsets = [0, 0], sizes = [8, 128], strides = [1, 1]} : vector<8x384xf32> to vector<8x128xf32>
    %247 = arith.addf %245, %246 : vector<8x128xf32>
    %248 = arith.negf %247 : vector<8x128xf32>
    %249 = math.exp %248 : vector<8x128xf32>
    %cst_77 = arith.constant 1.000000e+00 : f32
    %250 = vector.broadcast %cst_77 : f32 to vector<8x128xf32>
    %251 = arith.addf %250, %249 : vector<8x128xf32>
    %252 = arith.divf %250, %251 : vector<8x128xf32>
    %253 = vector.extract_strided_slice %239 {offsets = [0, 128], sizes = [8, 128], strides = [1, 1]} : vector<8x384xf32> to vector<8x128xf32>
    %254 = vector.extract_strided_slice %244 {offsets = [0, 128], sizes = [8, 128], strides = [1, 1]} : vector<8x384xf32> to vector<8x128xf32>
    %255 = arith.addf %253, %254 : vector<8x128xf32>
    %256 = arith.negf %255 : vector<8x128xf32>
    %257 = math.exp %256 : vector<8x128xf32>
    %cst_78 = arith.constant 1.000000e+00 : f32
    %258 = vector.broadcast %cst_78 : f32 to vector<8x128xf32>
    %259 = arith.addf %258, %257 : vector<8x128xf32>
    %260 = arith.divf %258, %259 : vector<8x128xf32>
    %261 = vector.extract_strided_slice %239 {offsets = [0, 256], sizes = [8, 128], strides = [1, 1]} : vector<8x384xf32> to vector<8x128xf32>
    %262 = vector.extract_strided_slice %244 {offsets = [0, 256], sizes = [8, 128], strides = [1, 1]} : vector<8x384xf32> to vector<8x128xf32>
    %263 = arith.mulf %252, %262 : vector<8x128xf32>
    %264 = arith.addf %261, %263 : vector<8x128xf32>
    %265 = math.tanh %264 : vector<8x128xf32>
    %cst_79 = arith.constant 1.000000e+00 : f32
    %266 = vector.broadcast %cst_79 : f32 to vector<8x128xf32>
    %267 = arith.subf %266, %260 : vector<8x128xf32>
    %268 = arith.mulf %267, %265 : vector<8x128xf32>
    %269 = arith.mulf %260, %237 : vector<8x128xf32>
    %270 = arith.addf %268, %269 : vector<8x128xf32>
    %c56 = arith.constant 56 : index
    %c0_80 = arith.constant 0 : index
    %271 = vector.load %arg13[%c56, %c0_80] : memref<64x128xf32, #tpu.memory_space<vmem>>, vector<8x128xf32>
    tpu.vector_store %arg13[%c56, %c0_80], %270 {strides = array<i32>} : memref<64x128xf32, #tpu.memory_space<vmem>>, vector<8x128xf32>,
    %c0_81 = arith.constant 0 : index
    %c0_82 = arith.constant 0 : index
    %272 = vector.load %arg13[%c0_81, %c0_82] : memref<64x128xf32, #tpu.memory_space<vmem>>, vector<64x128xf32>
    %c0_83 = arith.constant 0 : index
    %c0_84 = arith.constant 0 : index
    %273 = vector.load %arg6[%c0_83, %c0_84] : memref<128x384xf32, #tpu.memory_space<vmem>>, vector<128x384xf32>
    %cst_85 = arith.constant dense<0.000000e+00> : vector<64x384xf32>
    %274 = tpu.matmul %272, %273, %cst_85 {dimension_numbers = #tpu.dot_dimension_numbers<[1], [0], [0], [1], [0, 0, 1, 1], [], []>} : vector<64x128xf32>, vector<128x384xf32>, vector<64x384xf32> -> vector<64x384xf32>
    %c0_86 = arith.constant 0 : index
    %c0_87 = arith.constant 0 : index
    %275 = vector.load %arg8[%c0_86, %c0_87] : memref<1x384xf32, #tpu.memory_space<vmem>>, vector<1x384xf32>
    %276 = vector.broadcast %275 : vector<1x384xf32> to vector<64x384xf32>
    %277 = arith.addf %274, %276 : vector<64x384xf32>
    %c1 = arith.constant 1 : index
    %c0_88 = arith.constant 0 : index
    %c0_89 = arith.constant 0 : index
    %278 = vector.load %arg1[%c1, %c0_88, %c0_89] : memref<2x8x128xf32, #tpu.memory_space<vmem>>, vector<1x8x128xf32>
    %279 = vector.shape_cast %278 : vector<1x8x128xf32> to vector<8x128xf32>
    %280 = vector.extract_strided_slice %277 {offsets = [0, 0], sizes = [8, 384], strides = [1, 1]} : vector<64x384xf32> to vector<8x384xf32>
    %c0_90 = arith.constant 0 : index
    %c0_91 = arith.constant 0 : index
    %281 = vector.load %arg7[%c0_90, %c0_91] : memref<128x384xf32, #tpu.memory_space<vmem>>, vector<128x384xf32>
    %cst_92 = arith.constant dense<0.000000e+00> : vector<8x384xf32>
    %282 = tpu.matmul %279, %281, %cst_92 {dimension_numbers = #tpu.dot_dimension_numbers<[1], [0], [0], [1], [0, 0, 1, 1], [], []>} : vector<8x128xf32>, vector<128x384xf32>, vector<8x384xf32> -> vector<8x384xf32>
    %c0_93 = arith.constant 0 : index
    %c0_94 = arith.constant 0 : index
    %283 = vector.load %arg9[%c0_93, %c0_94] : memref<1x384xf32, #tpu.memory_space<vmem>>, vector<1x384xf32>
    %284 = vector.broadcast %283 : vector<1x384xf32> to vector<8x384xf32>
    %285 = arith.addf %282, %284 : vector<8x384xf32>
    %286 = vector.extract_strided_slice %280 {offsets = [0, 0], sizes = [8, 128], strides = [1, 1]} : vector<8x384xf32> to vector<8x128xf32>
    %287 = vector.extract_strided_slice %285 {offsets = [0, 0], sizes = [8, 128], strides = [1, 1]} : vector<8x384xf32> to vector<8x128xf32>
    %288 = arith.addf %286, %287 : vector<8x128xf32>
    %289 = arith.negf %288 : vector<8x128xf32>
    %290 = math.exp %289 : vector<8x128xf32>
    %cst_95 = arith.constant 1.000000e+00 : f32
    %291 = vector.broadcast %cst_95 : f32 to vector<8x128xf32>
    %292 = arith.addf %291, %290 : vector<8x128xf32>
    %293 = arith.divf %291, %292 : vector<8x128xf32>
    %294 = vector.extract_strided_slice %280 {offsets = [0, 128], sizes = [8, 128], strides = [1, 1]} : vector<8x384xf32> to vector<8x128xf32>
    %295 = vector.extract_strided_slice %285 {offsets = [0, 128], sizes = [8, 128], strides = [1, 1]} : vector<8x384xf32> to vector<8x128xf32>
    %296 = arith.addf %294, %295 : vector<8x128xf32>
    %297 = arith.negf %296 : vector<8x128xf32>
    %298 = math.exp %297 : vector<8x128xf32>
    %cst_96 = arith.constant 1.000000e+00 : f32
    %299 = vector.broadcast %cst_96 : f32 to vector<8x128xf32>
    %300 = arith.addf %299, %298 : vector<8x128xf32>
    %301 = arith.divf %299, %300 : vector<8x128xf32>
    %302 = vector.extract_strided_slice %280 {offsets = [0, 256], sizes = [8, 128], strides = [1, 1]} : vector<8x384xf32> to vector<8x128xf32>
    %303 = vector.extract_strided_slice %285 {offsets = [0, 256], sizes = [8, 128], strides = [1, 1]} : vector<8x384xf32> to vector<8x128xf32>
    %304 = arith.mulf %293, %303 : vector<8x128xf32>
    %305 = arith.addf %302, %304 : vector<8x128xf32>
    %306 = math.tanh %305 : vector<8x128xf32>
    %cst_97 = arith.constant 1.000000e+00 : f32
    %307 = vector.broadcast %cst_97 : f32 to vector<8x128xf32>
    %308 = arith.subf %307, %301 : vector<8x128xf32>
    %309 = arith.mulf %308, %306 : vector<8x128xf32>
    %310 = arith.mulf %301, %279 : vector<8x128xf32>
    %311 = arith.addf %309, %310 : vector<8x128xf32>
    %c0_98 = arith.constant 0 : index
    %c0_99 = arith.constant 0 : index
    %312 = vector.load %arg13[%c0_98, %c0_99] : memref<64x128xf32, #tpu.memory_space<vmem>>, vector<8x128xf32>
    tpu.vector_store %arg13[%c0_98, %c0_99], %311 {strides = array<i32>} : memref<64x128xf32, #tpu.memory_space<vmem>>, vector<8x128xf32>,
    %313 = vector.extract_strided_slice %277 {offsets = [8, 0], sizes = [8, 384], strides = [1, 1]} : vector<64x384xf32> to vector<8x384xf32>
    %c0_100 = arith.constant 0 : index
    %c0_101 = arith.constant 0 : index
    %314 = vector.load %arg7[%c0_100, %c0_101] : memref<128x384xf32, #tpu.memory_space<vmem>>, vector<128x384xf32>
    %cst_102 = arith.constant dense<0.000000e+00> : vector<8x384xf32>
    %315 = tpu.matmul %311, %314, %cst_102 {dimension_numbers = #tpu.dot_dimension_numbers<[1], [0], [0], [1], [0, 0, 1, 1], [], []>} : vector<8x128xf32>, vector<128x384xf32>, vector<8x384xf32> -> vector<8x384xf32>
    %c0_103 = arith.constant 0 : index
    %c0_104 = arith.constant 0 : index
    %316 = vector.load %arg9[%c0_103, %c0_104] : memref<1x384xf32, #tpu.memory_space<vmem>>, vector<1x384xf32>
    %317 = vector.broadcast %316 : vector<1x384xf32> to vector<8x384xf32>
    %318 = arith.addf %315, %317 : vector<8x384xf32>
    %319 = vector.extract_strided_slice %313 {offsets = [0, 0], sizes = [8, 128], strides = [1, 1]} : vector<8x384xf32> to vector<8x128xf32>
    %320 = vector.extract_strided_slice %318 {offsets = [0, 0], sizes = [8, 128], strides = [1, 1]} : vector<8x384xf32> to vector<8x128xf32>
    %321 = arith.addf %319, %320 : vector<8x128xf32>
    %322 = arith.negf %321 : vector<8x128xf32>
    %323 = math.exp %322 : vector<8x128xf32>
    %cst_105 = arith.constant 1.000000e+00 : f32
    %324 = vector.broadcast %cst_105 : f32 to vector<8x128xf32>
    %325 = arith.addf %324, %323 : vector<8x128xf32>
    %326 = arith.divf %324, %325 : vector<8x128xf32>
    %327 = vector.extract_strided_slice %313 {offsets = [0, 128], sizes = [8, 128], strides = [1, 1]} : vector<8x384xf32> to vector<8x128xf32>
    %328 = vector.extract_strided_slice %318 {offsets = [0, 128], sizes = [8, 128], strides = [1, 1]} : vector<8x384xf32> to vector<8x128xf32>
    %329 = arith.addf %327, %328 : vector<8x128xf32>
    %330 = arith.negf %329 : vector<8x128xf32>
    %331 = math.exp %330 : vector<8x128xf32>
    %cst_106 = arith.constant 1.000000e+00 : f32
    %332 = vector.broadcast %cst_106 : f32 to vector<8x128xf32>
    %333 = arith.addf %332, %331 : vector<8x128xf32>
    %334 = arith.divf %332, %333 : vector<8x128xf32>
    %335 = vector.extract_strided_slice %313 {offsets = [0, 256], sizes = [8, 128], strides = [1, 1]} : vector<8x384xf32> to vector<8x128xf32>
    %336 = vector.extract_strided_slice %318 {offsets = [0, 256], sizes = [8, 128], strides = [1, 1]} : vector<8x384xf32> to vector<8x128xf32>
    %337 = arith.mulf %326, %336 : vector<8x128xf32>
    %338 = arith.addf %335, %337 : vector<8x128xf32>
    %339 = math.tanh %338 : vector<8x128xf32>
    %cst_107 = arith.constant 1.000000e+00 : f32
    %340 = vector.broadcast %cst_107 : f32 to vector<8x128xf32>
    %341 = arith.subf %340, %334 : vector<8x128xf32>
    %342 = arith.mulf %341, %339 : vector<8x128xf32>
    %343 = arith.mulf %334, %311 : vector<8x128xf32>
    %344 = arith.addf %342, %343 : vector<8x128xf32>
    %c8_108 = arith.constant 8 : index
    %c0_109 = arith.constant 0 : index
    %345 = vector.load %arg13[%c8_108, %c0_109] : memref<64x128xf32, #tpu.memory_space<vmem>>, vector<8x128xf32>
    tpu.vector_store %arg13[%c8_108, %c0_109], %344 {strides = array<i32>} : memref<64x128xf32, #tpu.memory_space<vmem>>, vector<8x128xf32>,
    %346 = vector.extract_strided_slice %277 {offsets = [16, 0], sizes = [8, 384], strides = [1, 1]} : vector<64x384xf32> to vector<8x384xf32>
    %c0_110 = arith.constant 0 : index
    %c0_111 = arith.constant 0 : index
    %347 = vector.load %arg7[%c0_110, %c0_111] : memref<128x384xf32, #tpu.memory_space<vmem>>, vector<128x384xf32>
    %cst_112 = arith.constant dense<0.000000e+00> : vector<8x384xf32>
    %348 = tpu.matmul %344, %347, %cst_112 {dimension_numbers = #tpu.dot_dimension_numbers<[1], [0], [0], [1], [0, 0, 1, 1], [], []>} : vector<8x128xf32>, vector<128x384xf32>, vector<8x384xf32> -> vector<8x384xf32>
    %c0_113 = arith.constant 0 : index
    %c0_114 = arith.constant 0 : index
    %349 = vector.load %arg9[%c0_113, %c0_114] : memref<1x384xf32, #tpu.memory_space<vmem>>, vector<1x384xf32>
    %350 = vector.broadcast %349 : vector<1x384xf32> to vector<8x384xf32>
    %351 = arith.addf %348, %350 : vector<8x384xf32>
    %352 = vector.extract_strided_slice %346 {offsets = [0, 0], sizes = [8, 128], strides = [1, 1]} : vector<8x384xf32> to vector<8x128xf32>
    %353 = vector.extract_strided_slice %351 {offsets = [0, 0], sizes = [8, 128], strides = [1, 1]} : vector<8x384xf32> to vector<8x128xf32>
    %354 = arith.addf %352, %353 : vector<8x128xf32>
    %355 = arith.negf %354 : vector<8x128xf32>
    %356 = math.exp %355 : vector<8x128xf32>
    %cst_115 = arith.constant 1.000000e+00 : f32
    %357 = vector.broadcast %cst_115 : f32 to vector<8x128xf32>
    %358 = arith.addf %357, %356 : vector<8x128xf32>
    %359 = arith.divf %357, %358 : vector<8x128xf32>
    %360 = vector.extract_strided_slice %346 {offsets = [0, 128], sizes = [8, 128], strides = [1, 1]} : vector<8x384xf32> to vector<8x128xf32>
    %361 = vector.extract_strided_slice %351 {offsets = [0, 128], sizes = [8, 128], strides = [1, 1]} : vector<8x384xf32> to vector<8x128xf32>
    %362 = arith.addf %360, %361 : vector<8x128xf32>
    %363 = arith.negf %362 : vector<8x128xf32>
    %364 = math.exp %363 : vector<8x128xf32>
    %cst_116 = arith.constant 1.000000e+00 : f32
    %365 = vector.broadcast %cst_116 : f32 to vector<8x128xf32>
    %366 = arith.addf %365, %364 : vector<8x128xf32>
    %367 = arith.divf %365, %366 : vector<8x128xf32>
    %368 = vector.extract_strided_slice %346 {offsets = [0, 256], sizes = [8, 128], strides = [1, 1]} : vector<8x384xf32> to vector<8x128xf32>
    %369 = vector.extract_strided_slice %351 {offsets = [0, 256], sizes = [8, 128], strides = [1, 1]} : vector<8x384xf32> to vector<8x128xf32>
    %370 = arith.mulf %359, %369 : vector<8x128xf32>
    %371 = arith.addf %368, %370 : vector<8x128xf32>
    %372 = math.tanh %371 : vector<8x128xf32>
    %cst_117 = arith.constant 1.000000e+00 : f32
    %373 = vector.broadcast %cst_117 : f32 to vector<8x128xf32>
    %374 = arith.subf %373, %367 : vector<8x128xf32>
    %375 = arith.mulf %374, %372 : vector<8x128xf32>
    %376 = arith.mulf %367, %344 : vector<8x128xf32>
    %377 = arith.addf %375, %376 : vector<8x128xf32>
    %c16_118 = arith.constant 16 : index
    %c0_119 = arith.constant 0 : index
    %378 = vector.load %arg13[%c16_118, %c0_119] : memref<64x128xf32, #tpu.memory_space<vmem>>, vector<8x128xf32>
    tpu.vector_store %arg13[%c16_118, %c0_119], %377 {strides = array<i32>} : memref<64x128xf32, #tpu.memory_space<vmem>>, vector<8x128xf32>,
    %379 = vector.extract_strided_slice %277 {offsets = [24, 0], sizes = [8, 384], strides = [1, 1]} : vector<64x384xf32> to vector<8x384xf32>
    %c0_120 = arith.constant 0 : index
    %c0_121 = arith.constant 0 : index
    %380 = vector.load %arg7[%c0_120, %c0_121] : memref<128x384xf32, #tpu.memory_space<vmem>>, vector<128x384xf32>
    %cst_122 = arith.constant dense<0.000000e+00> : vector<8x384xf32>
    %381 = tpu.matmul %377, %380, %cst_122 {dimension_numbers = #tpu.dot_dimension_numbers<[1], [0], [0], [1], [0, 0, 1, 1], [], []>} : vector<8x128xf32>, vector<128x384xf32>, vector<8x384xf32> -> vector<8x384xf32>
    %c0_123 = arith.constant 0 : index
    %c0_124 = arith.constant 0 : index
    %382 = vector.load %arg9[%c0_123, %c0_124] : memref<1x384xf32, #tpu.memory_space<vmem>>, vector<1x384xf32>
    %383 = vector.broadcast %382 : vector<1x384xf32> to vector<8x384xf32>
    %384 = arith.addf %381, %383 : vector<8x384xf32>
    %385 = vector.extract_strided_slice %379 {offsets = [0, 0], sizes = [8, 128], strides = [1, 1]} : vector<8x384xf32> to vector<8x128xf32>
    %386 = vector.extract_strided_slice %384 {offsets = [0, 0], sizes = [8, 128], strides = [1, 1]} : vector<8x384xf32> to vector<8x128xf32>
    %387 = arith.addf %385, %386 : vector<8x128xf32>
    %388 = arith.negf %387 : vector<8x128xf32>
    %389 = math.exp %388 : vector<8x128xf32>
    %cst_125 = arith.constant 1.000000e+00 : f32
    %390 = vector.broadcast %cst_125 : f32 to vector<8x128xf32>
    %391 = arith.addf %390, %389 : vector<8x128xf32>
    %392 = arith.divf %390, %391 : vector<8x128xf32>
    %393 = vector.extract_strided_slice %379 {offsets = [0, 128], sizes = [8, 128], strides = [1, 1]} : vector<8x384xf32> to vector<8x128xf32>
    %394 = vector.extract_strided_slice %384 {offsets = [0, 128], sizes = [8, 128], strides = [1, 1]} : vector<8x384xf32> to vector<8x128xf32>
    %395 = arith.addf %393, %394 : vector<8x128xf32>
    %396 = arith.negf %395 : vector<8x128xf32>
    %397 = math.exp %396 : vector<8x128xf32>
    %cst_126 = arith.constant 1.000000e+00 : f32
    %398 = vector.broadcast %cst_126 : f32 to vector<8x128xf32>
    %399 = arith.addf %398, %397 : vector<8x128xf32>
    %400 = arith.divf %398, %399 : vector<8x128xf32>
    %401 = vector.extract_strided_slice %379 {offsets = [0, 256], sizes = [8, 128], strides = [1, 1]} : vector<8x384xf32> to vector<8x128xf32>
    %402 = vector.extract_strided_slice %384 {offsets = [0, 256], sizes = [8, 128], strides = [1, 1]} : vector<8x384xf32> to vector<8x128xf32>
    %403 = arith.mulf %392, %402 : vector<8x128xf32>
    %404 = arith.addf %401, %403 : vector<8x128xf32>
    %405 = math.tanh %404 : vector<8x128xf32>
    %cst_127 = arith.constant 1.000000e+00 : f32
    %406 = vector.broadcast %cst_127 : f32 to vector<8x128xf32>
    %407 = arith.subf %406, %400 : vector<8x128xf32>
    %408 = arith.mulf %407, %405 : vector<8x128xf32>
    %409 = arith.mulf %400, %377 : vector<8x128xf32>
    %410 = arith.addf %408, %409 : vector<8x128xf32>
    %c24_128 = arith.constant 24 : index
    %c0_129 = arith.constant 0 : index
    %411 = vector.load %arg13[%c24_128, %c0_129] : memref<64x128xf32, #tpu.memory_space<vmem>>, vector<8x128xf32>
    tpu.vector_store %arg13[%c24_128, %c0_129], %410 {strides = array<i32>} : memref<64x128xf32, #tpu.memory_space<vmem>>, vector<8x128xf32>,
    %412 = vector.extract_strided_slice %277 {offsets = [32, 0], sizes = [8, 384], strides = [1, 1]} : vector<64x384xf32> to vector<8x384xf32>
    %c0_130 = arith.constant 0 : index
    %c0_131 = arith.constant 0 : index
    %413 = vector.load %arg7[%c0_130, %c0_131] : memref<128x384xf32, #tpu.memory_space<vmem>>, vector<128x384xf32>
    %cst_132 = arith.constant dense<0.000000e+00> : vector<8x384xf32>
    %414 = tpu.matmul %410, %413, %cst_132 {dimension_numbers = #tpu.dot_dimension_numbers<[1], [0], [0], [1], [0, 0, 1, 1], [], []>} : vector<8x128xf32>, vector<128x384xf32>, vector<8x384xf32> -> vector<8x384xf32>
    %c0_133 = arith.constant 0 : index
    %c0_134 = arith.constant 0 : index
    %415 = vector.load %arg9[%c0_133, %c0_134] : memref<1x384xf32, #tpu.memory_space<vmem>>, vector<1x384xf32>
    %416 = vector.broadcast %415 : vector<1x384xf32> to vector<8x384xf32>
    %417 = arith.addf %414, %416 : vector<8x384xf32>
    %418 = vector.extract_strided_slice %412 {offsets = [0, 0], sizes = [8, 128], strides = [1, 1]} : vector<8x384xf32> to vector<8x128xf32>
    %419 = vector.extract_strided_slice %417 {offsets = [0, 0], sizes = [8, 128], strides = [1, 1]} : vector<8x384xf32> to vector<8x128xf32>
    %420 = arith.addf %418, %419 : vector<8x128xf32>
    %421 = arith.negf %420 : vector<8x128xf32>
    %422 = math.exp %421 : vector<8x128xf32>
    %cst_135 = arith.constant 1.000000e+00 : f32
    %423 = vector.broadcast %cst_135 : f32 to vector<8x128xf32>
    %424 = arith.addf %423, %422 : vector<8x128xf32>
    %425 = arith.divf %423, %424 : vector<8x128xf32>
    %426 = vector.extract_strided_slice %412 {offsets = [0, 128], sizes = [8, 128], strides = [1, 1]} : vector<8x384xf32> to vector<8x128xf32>
    %427 = vector.extract_strided_slice %417 {offsets = [0, 128], sizes = [8, 128], strides = [1, 1]} : vector<8x384xf32> to vector<8x128xf32>
    %428 = arith.addf %426, %427 : vector<8x128xf32>
    %429 = arith.negf %428 : vector<8x128xf32>
    %430 = math.exp %429 : vector<8x128xf32>
    %cst_136 = arith.constant 1.000000e+00 : f32
    %431 = vector.broadcast %cst_136 : f32 to vector<8x128xf32>
    %432 = arith.addf %431, %430 : vector<8x128xf32>
    %433 = arith.divf %431, %432 : vector<8x128xf32>
    %434 = vector.extract_strided_slice %412 {offsets = [0, 256], sizes = [8, 128], strides = [1, 1]} : vector<8x384xf32> to vector<8x128xf32>
    %435 = vector.extract_strided_slice %417 {offsets = [0, 256], sizes = [8, 128], strides = [1, 1]} : vector<8x384xf32> to vector<8x128xf32>
    %436 = arith.mulf %425, %435 : vector<8x128xf32>
    %437 = arith.addf %434, %436 : vector<8x128xf32>
    %438 = math.tanh %437 : vector<8x128xf32>
    %cst_137 = arith.constant 1.000000e+00 : f32
    %439 = vector.broadcast %cst_137 : f32 to vector<8x128xf32>
    %440 = arith.subf %439, %433 : vector<8x128xf32>
    %441 = arith.mulf %440, %438 : vector<8x128xf32>
    %442 = arith.mulf %433, %410 : vector<8x128xf32>
    %443 = arith.addf %441, %442 : vector<8x128xf32>
    %c32_138 = arith.constant 32 : index
    %c0_139 = arith.constant 0 : index
    %444 = vector.load %arg13[%c32_138, %c0_139] : memref<64x128xf32, #tpu.memory_space<vmem>>, vector<8x128xf32>
    tpu.vector_store %arg13[%c32_138, %c0_139], %443 {strides = array<i32>} : memref<64x128xf32, #tpu.memory_space<vmem>>, vector<8x128xf32>,
    %445 = vector.extract_strided_slice %277 {offsets = [40, 0], sizes = [8, 384], strides = [1, 1]} : vector<64x384xf32> to vector<8x384xf32>
    %c0_140 = arith.constant 0 : index
    %c0_141 = arith.constant 0 : index
    %446 = vector.load %arg7[%c0_140, %c0_141] : memref<128x384xf32, #tpu.memory_space<vmem>>, vector<128x384xf32>
    %cst_142 = arith.constant dense<0.000000e+00> : vector<8x384xf32>
    %447 = tpu.matmul %443, %446, %cst_142 {dimension_numbers = #tpu.dot_dimension_numbers<[1], [0], [0], [1], [0, 0, 1, 1], [], []>} : vector<8x128xf32>, vector<128x384xf32>, vector<8x384xf32> -> vector<8x384xf32>
    %c0_143 = arith.constant 0 : index
    %c0_144 = arith.constant 0 : index
    %448 = vector.load %arg9[%c0_143, %c0_144] : memref<1x384xf32, #tpu.memory_space<vmem>>, vector<1x384xf32>
    %449 = vector.broadcast %448 : vector<1x384xf32> to vector<8x384xf32>
    %450 = arith.addf %447, %449 : vector<8x384xf32>
    %451 = vector.extract_strided_slice %445 {offsets = [0, 0], sizes = [8, 128], strides = [1, 1]} : vector<8x384xf32> to vector<8x128xf32>
    %452 = vector.extract_strided_slice %450 {offsets = [0, 0], sizes = [8, 128], strides = [1, 1]} : vector<8x384xf32> to vector<8x128xf32>
    %453 = arith.addf %451, %452 : vector<8x128xf32>
    %454 = arith.negf %453 : vector<8x128xf32>
    %455 = math.exp %454 : vector<8x128xf32>
    %cst_145 = arith.constant 1.000000e+00 : f32
    %456 = vector.broadcast %cst_145 : f32 to vector<8x128xf32>
    %457 = arith.addf %456, %455 : vector<8x128xf32>
    %458 = arith.divf %456, %457 : vector<8x128xf32>
    %459 = vector.extract_strided_slice %445 {offsets = [0, 128], sizes = [8, 128], strides = [1, 1]} : vector<8x384xf32> to vector<8x128xf32>
    %460 = vector.extract_strided_slice %450 {offsets = [0, 128], sizes = [8, 128], strides = [1, 1]} : vector<8x384xf32> to vector<8x128xf32>
    %461 = arith.addf %459, %460 : vector<8x128xf32>
    %462 = arith.negf %461 : vector<8x128xf32>
    %463 = math.exp %462 : vector<8x128xf32>
    %cst_146 = arith.constant 1.000000e+00 : f32
    %464 = vector.broadcast %cst_146 : f32 to vector<8x128xf32>
    %465 = arith.addf %464, %463 : vector<8x128xf32>
    %466 = arith.divf %464, %465 : vector<8x128xf32>
    %467 = vector.extract_strided_slice %445 {offsets = [0, 256], sizes = [8, 128], strides = [1, 1]} : vector<8x384xf32> to vector<8x128xf32>
    %468 = vector.extract_strided_slice %450 {offsets = [0, 256], sizes = [8, 128], strides = [1, 1]} : vector<8x384xf32> to vector<8x128xf32>
    %469 = arith.mulf %458, %468 : vector<8x128xf32>
    %470 = arith.addf %467, %469 : vector<8x128xf32>
    %471 = math.tanh %470 : vector<8x128xf32>
    %cst_147 = arith.constant 1.000000e+00 : f32
    %472 = vector.broadcast %cst_147 : f32 to vector<8x128xf32>
    %473 = arith.subf %472, %466 : vector<8x128xf32>
    %474 = arith.mulf %473, %471 : vector<8x128xf32>
    %475 = arith.mulf %466, %443 : vector<8x128xf32>
    %476 = arith.addf %474, %475 : vector<8x128xf32>
    %c40_148 = arith.constant 40 : index
    %c0_149 = arith.constant 0 : index
    %477 = vector.load %arg13[%c40_148, %c0_149] : memref<64x128xf32, #tpu.memory_space<vmem>>, vector<8x128xf32>
    tpu.vector_store %arg13[%c40_148, %c0_149], %476 {strides = array<i32>} : memref<64x128xf32, #tpu.memory_space<vmem>>, vector<8x128xf32>,
    %478 = vector.extract_strided_slice %277 {offsets = [48, 0], sizes = [8, 384], strides = [1, 1]} : vector<64x384xf32> to vector<8x384xf32>
    %c0_150 = arith.constant 0 : index
    %c0_151 = arith.constant 0 : index
    %479 = vector.load %arg7[%c0_150, %c0_151] : memref<128x384xf32, #tpu.memory_space<vmem>>, vector<128x384xf32>
    %cst_152 = arith.constant dense<0.000000e+00> : vector<8x384xf32>
    %480 = tpu.matmul %476, %479, %cst_152 {dimension_numbers = #tpu.dot_dimension_numbers<[1], [0], [0], [1], [0, 0, 1, 1], [], []>} : vector<8x128xf32>, vector<128x384xf32>, vector<8x384xf32> -> vector<8x384xf32>
    %c0_153 = arith.constant 0 : index
    %c0_154 = arith.constant 0 : index
    %481 = vector.load %arg9[%c0_153, %c0_154] : memref<1x384xf32, #tpu.memory_space<vmem>>, vector<1x384xf32>
    %482 = vector.broadcast %481 : vector<1x384xf32> to vector<8x384xf32>
    %483 = arith.addf %480, %482 : vector<8x384xf32>
    %484 = vector.extract_strided_slice %478 {offsets = [0, 0], sizes = [8, 128], strides = [1, 1]} : vector<8x384xf32> to vector<8x128xf32>
    %485 = vector.extract_strided_slice %483 {offsets = [0, 0], sizes = [8, 128], strides = [1, 1]} : vector<8x384xf32> to vector<8x128xf32>
    %486 = arith.addf %484, %485 : vector<8x128xf32>
    %487 = arith.negf %486 : vector<8x128xf32>
    %488 = math.exp %487 : vector<8x128xf32>
    %cst_155 = arith.constant 1.000000e+00 : f32
    %489 = vector.broadcast %cst_155 : f32 to vector<8x128xf32>
    %490 = arith.addf %489, %488 : vector<8x128xf32>
    %491 = arith.divf %489, %490 : vector<8x128xf32>
    %492 = vector.extract_strided_slice %478 {offsets = [0, 128], sizes = [8, 128], strides = [1, 1]} : vector<8x384xf32> to vector<8x128xf32>
    %493 = vector.extract_strided_slice %483 {offsets = [0, 128], sizes = [8, 128], strides = [1, 1]} : vector<8x384xf32> to vector<8x128xf32>
    %494 = arith.addf %492, %493 : vector<8x128xf32>
    %495 = arith.negf %494 : vector<8x128xf32>
    %496 = math.exp %495 : vector<8x128xf32>
    %cst_156 = arith.constant 1.000000e+00 : f32
    %497 = vector.broadcast %cst_156 : f32 to vector<8x128xf32>
    %498 = arith.addf %497, %496 : vector<8x128xf32>
    %499 = arith.divf %497, %498 : vector<8x128xf32>
    %500 = vector.extract_strided_slice %478 {offsets = [0, 256], sizes = [8, 128], strides = [1, 1]} : vector<8x384xf32> to vector<8x128xf32>
    %501 = vector.extract_strided_slice %483 {offsets = [0, 256], sizes = [8, 128], strides = [1, 1]} : vector<8x384xf32> to vector<8x128xf32>
    %502 = arith.mulf %491, %501 : vector<8x128xf32>
    %503 = arith.addf %500, %502 : vector<8x128xf32>
    %504 = math.tanh %503 : vector<8x128xf32>
    %cst_157 = arith.constant 1.000000e+00 : f32
    %505 = vector.broadcast %cst_157 : f32 to vector<8x128xf32>
    %506 = arith.subf %505, %499 : vector<8x128xf32>
    %507 = arith.mulf %506, %504 : vector<8x128xf32>
    %508 = arith.mulf %499, %476 : vector<8x128xf32>
    %509 = arith.addf %507, %508 : vector<8x128xf32>
    %c48_158 = arith.constant 48 : index
    %c0_159 = arith.constant 0 : index
    %510 = vector.load %arg13[%c48_158, %c0_159] : memref<64x128xf32, #tpu.memory_space<vmem>>, vector<8x128xf32>
    tpu.vector_store %arg13[%c48_158, %c0_159], %509 {strides = array<i32>} : memref<64x128xf32, #tpu.memory_space<vmem>>, vector<8x128xf32>,
    %511 = vector.extract_strided_slice %277 {offsets = [56, 0], sizes = [8, 384], strides = [1, 1]} : vector<64x384xf32> to vector<8x384xf32>
    %c0_160 = arith.constant 0 : index
    %c0_161 = arith.constant 0 : index
    %512 = vector.load %arg7[%c0_160, %c0_161] : memref<128x384xf32, #tpu.memory_space<vmem>>, vector<128x384xf32>
    %cst_162 = arith.constant dense<0.000000e+00> : vector<8x384xf32>
    %513 = tpu.matmul %509, %512, %cst_162 {dimension_numbers = #tpu.dot_dimension_numbers<[1], [0], [0], [1], [0, 0, 1, 1], [], []>} : vector<8x128xf32>, vector<128x384xf32>, vector<8x384xf32> -> vector<8x384xf32>
    %c0_163 = arith.constant 0 : index
    %c0_164 = arith.constant 0 : index
    %514 = vector.load %arg9[%c0_163, %c0_164] : memref<1x384xf32, #tpu.memory_space<vmem>>, vector<1x384xf32>
    %515 = vector.broadcast %514 : vector<1x384xf32> to vector<8x384xf32>
    %516 = arith.addf %513, %515 : vector<8x384xf32>
    %517 = vector.extract_strided_slice %511 {offsets = [0, 0], sizes = [8, 128], strides = [1, 1]} : vector<8x384xf32> to vector<8x128xf32>
    %518 = vector.extract_strided_slice %516 {offsets = [0, 0], sizes = [8, 128], strides = [1, 1]} : vector<8x384xf32> to vector<8x128xf32>
    %519 = arith.addf %517, %518 : vector<8x128xf32>
    %520 = arith.negf %519 : vector<8x128xf32>
    %521 = math.exp %520 : vector<8x128xf32>
    %cst_165 = arith.constant 1.000000e+00 : f32
    %522 = vector.broadcast %cst_165 : f32 to vector<8x128xf32>
    %523 = arith.addf %522, %521 : vector<8x128xf32>
    %524 = arith.divf %522, %523 : vector<8x128xf32>
    %525 = vector.extract_strided_slice %511 {offsets = [0, 128], sizes = [8, 128], strides = [1, 1]} : vector<8x384xf32> to vector<8x128xf32>
    %526 = vector.extract_strided_slice %516 {offsets = [0, 128], sizes = [8, 128], strides = [1, 1]} : vector<8x384xf32> to vector<8x128xf32>
    %527 = arith.addf %525, %526 : vector<8x128xf32>
    %528 = arith.negf %527 : vector<8x128xf32>
    %529 = math.exp %528 : vector<8x128xf32>
    %cst_166 = arith.constant 1.000000e+00 : f32
    %530 = vector.broadcast %cst_166 : f32 to vector<8x128xf32>
    %531 = arith.addf %530, %529 : vector<8x128xf32>
    %532 = arith.divf %530, %531 : vector<8x128xf32>
    %533 = vector.extract_strided_slice %511 {offsets = [0, 256], sizes = [8, 128], strides = [1, 1]} : vector<8x384xf32> to vector<8x128xf32>
    %534 = vector.extract_strided_slice %516 {offsets = [0, 256], sizes = [8, 128], strides = [1, 1]} : vector<8x384xf32> to vector<8x128xf32>
    %535 = arith.mulf %524, %534 : vector<8x128xf32>
    %536 = arith.addf %533, %535 : vector<8x128xf32>
    %537 = math.tanh %536 : vector<8x128xf32>
    %cst_167 = arith.constant 1.000000e+00 : f32
    %538 = vector.broadcast %cst_167 : f32 to vector<8x128xf32>
    %539 = arith.subf %538, %532 : vector<8x128xf32>
    %540 = arith.mulf %539, %537 : vector<8x128xf32>
    %541 = arith.mulf %532, %509 : vector<8x128xf32>
    %542 = arith.addf %540, %541 : vector<8x128xf32>
    %c56_168 = arith.constant 56 : index
    %c0_169 = arith.constant 0 : index
    %543 = vector.load %arg13[%c56_168, %c0_169] : memref<64x128xf32, #tpu.memory_space<vmem>>, vector<8x128xf32>
    tpu.vector_store %arg13[%c56_168, %c0_169], %542 {strides = array<i32>} : memref<64x128xf32, #tpu.memory_space<vmem>>, vector<8x128xf32>,
    %c0_170 = arith.constant 0 : index
    %c0_171 = arith.constant 0 : index
    %544 = vector.load %arg13[%c0_170, %c0_171] : memref<64x128xf32, #tpu.memory_space<vmem>>, vector<64x128xf32>
    %c0_172 = arith.constant 0 : index
    %c0_173 = arith.constant 0 : index
    %545 = vector.load %arg10[%c0_172, %c0_173] : memref<128x32xf32, #tpu.memory_space<vmem>>, vector<128x32xf32>
    %cst_174 = arith.constant dense<0.000000e+00> : vector<64x32xf32>
    %546 = tpu.matmul %544, %545, %cst_174 {dimension_numbers = #tpu.dot_dimension_numbers<[1], [0], [0], [1], [0, 0, 1, 1], [], []>} : vector<64x128xf32>, vector<128x32xf32>, vector<64x32xf32> -> vector<64x32xf32>
    %c0_175 = arith.constant 0 : index
    %c0_176 = arith.constant 0 : index
    %547 = vector.load %arg11[%c0_175, %c0_176] : memref<1x32xf32, #tpu.memory_space<vmem>>, vector<1x32xf32>
    %548 = vector.broadcast %547 : vector<1x32xf32> to vector<64x32xf32>
    %549 = arith.addf %546, %548 : vector<64x32xf32>
    %550 = tpu.iota {dimensions = array<i32: 1>} : vector<64x32xi32>
    %c20_i32 = arith.constant 20 : i32
    %551 = vector.broadcast %c20_i32 : i32 to vector<64x32xi32>
    %552 = arith.cmpi slt, %550, %551 : vector<64x32xi32>
    %cst_177 = arith.constant -1.000000e+30 : f32
    %553 = vector.broadcast %cst_177 : f32 to vector<64x32xf32>
    %554 = arith.select %552, %549, %553 : vector<64x32xi1>, vector<64x32xf32>
    %cst_178 = arith.constant dense<0xFF800000> : vector<64xf32>
    %555 = vector.multi_reduction <maximumf>, %554, %cst_178 [1] : vector<64x32xf32> to vector<64xf32>
    %556 = vector.shape_cast %555 : vector<64xf32> to vector<64x1xf32>
    %cst_179 = arith.constant -1.000000e+30 : f32
    %557 = vector.broadcast %cst_179 : f32 to vector<64x32xf32>
    %558 = arith.select %552, %557, %549 : vector<64x32xi1>, vector<64x32xf32>
    %cst_180 = arith.constant dense<0xFF800000> : vector<64xf32>
    %559 = vector.multi_reduction <maximumf>, %558, %cst_180 [1] : vector<64x32xf32> to vector<64xf32>
    %560 = vector.shape_cast %559 : vector<64xf32> to vector<64x1xf32>
    %561 = vector.shape_cast %556 : vector<64x1xf32> to vector<64x1xf32>
    %562 = vector.broadcast %561 : vector<64x1xf32> to vector<64x32xf32>
    %563 = vector.shape_cast %560 : vector<64x1xf32> to vector<64x1xf32>
    %564 = vector.broadcast %563 : vector<64x1xf32> to vector<64x32xf32>
    %565 = arith.select %552, %562, %564 : vector<64x32xi1>, vector<64x32xf32>
    %566 = arith.subf %549, %565 : vector<64x32xf32>
    %567 = math.exp %566 : vector<64x32xf32>
    %cst_181 = arith.constant 0.000000e+00 : f32
    %568 = vector.broadcast %cst_181 : f32 to vector<64x32xf32>
    %569 = arith.select %552, %567, %568 : vector<64x32xi1>, vector<64x32xf32>
    %cst_182 = arith.constant dense<0.000000e+00> : vector<64xf32>
    %570 = vector.multi_reduction <add>, %569, %cst_182 [1] : vector<64x32xf32> to vector<64xf32>
    %571 = vector.shape_cast %570 : vector<64xf32> to vector<64x1xf32>
    %cst_183 = arith.constant 0.000000e+00 : f32
    %572 = vector.broadcast %cst_183 : f32 to vector<64x32xf32>
    %573 = arith.select %552, %572, %567 : vector<64x32xi1>, vector<64x32xf32>
    %cst_184 = arith.constant dense<0.000000e+00> : vector<64xf32>
    %574 = vector.multi_reduction <add>, %573, %cst_184 [1] : vector<64x32xf32> to vector<64xf32>
    %575 = vector.shape_cast %574 : vector<64xf32> to vector<64x1xf32>
    %576 = vector.shape_cast %571 : vector<64x1xf32> to vector<64x1xf32>
    %577 = vector.broadcast %576 : vector<64x1xf32> to vector<64x32xf32>
    %578 = vector.shape_cast %575 : vector<64x1xf32> to vector<64x1xf32>
    %579 = vector.broadcast %578 : vector<64x1xf32> to vector<64x32xf32>
    %580 = arith.select %552, %577, %579 : vector<64x32xi1>, vector<64x32xf32>
    %581 = tpu.reciprocal %580 {approx = true} : vector<64x32xf32> -> vector<64x32xf32>
    %582 = arith.mulf %567, %581 : vector<64x32xf32>
    %c0_185 = arith.constant 0 : index
    %c0_186 = arith.constant 0 : index
    %583 = vector.load %arg12[%c0_185, %c0_186] : memref<64x32xf32, #tpu.memory_space<vmem>>, vector<64x32xf32>
    tpu.vector_store %arg12[%c0_185, %c0_186], %582 {strides = array<i32>} : memref<64x32xf32, #tpu.memory_space<vmem>>, vector<64x32xf32>,
    return
  }
}

</mosaic_0001>

<llo_original>
// kernel: tpu_custom_call.1
$region0: #{tpu_custom_call.1}
  #allocation0 [shape = 'u32[]', space=smem, size = 0x4, offset = 0x4, fixed_abs, tag = 'smem constant byte address 0x4 - core index']
  #allocation1 [shape = 'u32[144,128]{1,0:T(1,128)}', space=vmem, size = 0x12000, scoped, tag = 'internal scratch']
  #allocation2 [shape = 'f32[64,128]{1,0:T(8,128)}', space=vmem, size = 0x8000, scoped, tag = 'scratch operand']
  %s0 = inlined_call_operand.vmem [shape: f32[64,32], index: 0, kind: input, shape index: {}]
  %s1 = inlined_call_operand.vmem [shape: f32[2,8,128], index: 1, kind: input, shape index: {}]
  %s2 = inlined_call_operand.vmem [shape: f32[32,384], index: 2, kind: input, shape index: {}]
  %s3 = inlined_call_operand.hbm [shape: f32[128,384], index: 3, kind: input, shape index: {}]
  %s4 = inlined_call_operand.vmem [shape: f32[1,384], index: 4, kind: input, shape index: {}]
  %s5 = inlined_call_operand.vmem [shape: f32[1,384], index: 5, kind: input, shape index: {}]
  %s6 = inlined_call_operand.hbm [shape: f32[128,384], index: 6, kind: input, shape index: {}]
  %s7 = inlined_call_operand.hbm [shape: f32[128,384], index: 7, kind: input, shape index: {}]
  %s8 = inlined_call_operand.vmem [shape: f32[1,384], index: 8, kind: input, shape index: {}]
  %s9 = inlined_call_operand.vmem [shape: f32[1,384], index: 9, kind: input, shape index: {}]
  %s10 = inlined_call_operand.vmem [shape: f32[128,32], index: 10, kind: input, shape index: {}]
  %s11 = inlined_call_operand.vmem [shape: f32[1,32], index: 11, kind: input, shape index: {}]
  %s12 = inlined_call_operand.vmem [shape: f32[64,32], index: 12, kind: output, shape index: {}]
  %s13 = sld [smem:[#allocation0]]
  $region70: #{tpu_custom_call.1} parent=0
    _
  %s15 = ssub.s32 1, %s13
  %s16 = scalar_select 0, %s15, %s13
  $region1: #{tpu_custom_call.1} parent=0
    #allocation3 [shape = 'u8[196608]{0}', space=vmem, size = 0x30000, scoped, tag = 'input window, operand 3, single buffered']
    #allocation4 [shape = 's32[1]{0}', space=sflag, size = 0x4, scoped, tag = 'scoped memory for tpu_custom_call.1']
    #allocation5 [shape = 'u8[196608]{0}', space=vmem, size = 0x30000, scoped, tag = 'input window, operand 6, single buffered']
    #allocation6 [shape = 's32[1]{0}', space=sflag, size = 0x4, scoped, tag = 'scoped memory for tpu_custom_call.1']
    #allocation7 [shape = 'u8[196608]{0}', space=vmem, size = 0x30000, scoped, tag = 'input window, operand 7, single buffered']
    %17 = vsyncpa [#allocation4], 0
    %18 = vsyncpa [#allocation6], 0
    // Predicated region
    $region2: #{tpu_custom_call.1} parent=1 // pred_check
      _
    $region3: #{tpu_custom_call.1} parent=1 // pred_check_branch
      %20 = sbr.rel (0) target = $region5
    $region4: #{tpu_custom_call.1} parent=1 // pred_region
      _
    $region5: #{tpu_custom_call.1} parent=1 // pred_fallthru
      _
    // Predicated region
    $region6: #{tpu_custom_call.1} parent=1 // pred_check
      _
    $region7: #{tpu_custom_call.1} parent=1 // pred_check_branch
      %22 = sbr.rel (0) target = $region9
    $region8: #{tpu_custom_call.1} parent=1 // pred_region
      _
    $region9: #{tpu_custom_call.1} parent=1 // pred_fallthru
      _
    // Predicated region
    $region10: #{tpu_custom_call.1} parent=1 // pred_check
      _
    $region11: #{tpu_custom_call.1} parent=1 // pred_check_branch
      %24 = sbr.rel (0) target = $region13
    $region12: #{tpu_custom_call.1} parent=1 // pred_region
      _
    $region13: #{tpu_custom_call.1} parent=1 // pred_fallthru
      _
    // Predicated region
    $region14: #{tpu_custom_call.1} parent=1 // pred_check
      _
    $region15: #{tpu_custom_call.1} parent=1 // pred_check_branch
      %26 = sbr.rel (0) target = $region17
    $region16: #{tpu_custom_call.1} parent=1 // pred_region
      %s28 = ssub.s32 6144, 6144
      %29 = vsyncadd [#allocation4], %s28
      %s30 = sshll.u32 [#allocation3], 4
      %s31 = int_to_ptr.vmem [resolvable:$true] %s30
      %36 = dma.hbm_to_vmem [thread:$0]  %s3, 6144, %s31, [#allocation4], 384, 384, 24
    $region17: #{tpu_custom_call.1} parent=1 // pred_fallthru
      _
    // Predicated region
    $region18: #{tpu_custom_call.1} parent=1 // pred_check
      _
    $region19: #{tpu_custom_call.1} parent=1 // pred_check_branch
      %38 = sbr.rel (0) target = $region21
    $region20: #{tpu_custom_call.1} parent=1 // pred_region
      _
    $region21: #{tpu_custom_call.1} parent=1 // pred_fallthru
      _
    // Predicated region
    $region22: #{tpu_custom_call.1} parent=1 // pred_check
      _
    $region23: #{tpu_custom_call.1} parent=1 // pred_check_branch
      %40 = sbr.rel (0) target = $region25
    $region24: #{tpu_custom_call.1} parent=1 // pred_region
      _
    $region25: #{tpu_custom_call.1} parent=1 // pred_fallthru
      _
    // Predicated region
    $region26: #{tpu_custom_call.1} parent=1 // pred_check
      _
    $region27: #{tpu_custom_call.1} parent=1 // pred_check_branch
      %42 = sbr.rel (0) target = $region29
    $region28: #{tpu_custom_call.1} parent=1 // pred_region
      %s44 = ssub.s32 6144, 6144
      %45 = vsyncadd [#allocation6], %s44
      %s46 = sshll.u32 [#allocation5], 4
      %s47 = int_to_ptr.vmem [resolvable:$true] %s46
      %52 = dma.hbm_to_vmem [thread:$0]  %s6, 6144, %s47, [#allocation6], 384, 384, 24
    $region29: #{tpu_custom_call.1} parent=1 // pred_fallthru
      _
    // Predicated region
    $region30: #{tpu_custom_call.1} parent=1 // pred_check
      _
    $region31: #{tpu_custom_call.1} parent=1 // pred_check_branch
      %54 = sbr.rel (0) target = $region33
    $region32: #{tpu_custom_call.1} parent=1 // pred_region
      %s56 = ssub.s32 6144, 6144
      %57 = vsyncadd [#allocation6], %s56
      %s58 = sshll.u32 [#allocation7], 4
      %s59 = int_to_ptr.vmem [resolvable:$true] %s58
      %64 = dma.hbm_to_vmem [thread:$0]  %s7, 6144, %s59, [#allocation6], 384, 384, 24
    $region33: #{tpu_custom_call.1} parent=1 // pred_fallthru
      _
    // Predicated region
    $region34: #{tpu_custom_call.1} parent=1 // pred_check
      _
    $region35: #{tpu_custom_call.1} parent=1 // pred_check_branch
      %66 = sbr.rel (0) target = $region37
    $region36: #{tpu_custom_call.1} parent=1 // pred_region
      _
    $region37: #{tpu_custom_call.1} parent=1 // pred_fallthru
      _
    // Predicated region
    $region38: #{tpu_custom_call.1} parent=1 // pred_check
      _
    $region39: #{tpu_custom_call.1} parent=1 // pred_check_branch
      %68 = sbr.rel (0) target = $region41
    $region40: #{tpu_custom_call.1} parent=1 // pred_region
      _
    $region41: #{tpu_custom_call.1} parent=1 // pred_fallthru
      _
    // Predicated region
    $region42: #{tpu_custom_call.1} parent=1 // pred_check
      _
    $region43: #{tpu_custom_call.1} parent=1 // pred_check_branch
      %70 = sbr.rel (0) target = $region45
    $region44: #{tpu_custom_call.1} parent=1 // pred_region
      _
    $region45: #{tpu_custom_call.1} parent=1 // pred_fallthru
      _
    // Predicated region
    $region46: #{tpu_custom_call.1} parent=1 // pred_check
      _
    $region47: #{tpu_custom_call.1} parent=1 // pred_check_branch
      %72 = sbr.rel (0) target = $region49
    $region48: #{tpu_custom_call.1} parent=1 // pred_region
      _
    $region49: #{tpu_custom_call.1} parent=1 // pred_fallthru
      _
    // Predicated region
    $region50: #{tpu_custom_call.1} parent=1 // pred_check
      _
    $region51: #{tpu_custom_call.1} parent=1 // pred_check_branch
      %74 = sbr.rel (0) target = $region53
    $region52: #{tpu_custom_call.1} parent=1 // pred_region
      %75 = dma.done [#allocation4], 6144
    $region53: #{tpu_custom_call.1} parent=1 // pred_fallthru
      _
    // Predicated region
    $region54: #{tpu_custom_call.1} parent=1 // pred_check
      _
    $region55: #{tpu_custom_call.1} parent=1 // pred_check_branch
      %77 = sbr.rel (0) target = $region57
    $region56: #{tpu_custom_call.1} parent=1 // pred_region
      %78 = dma.done [#allocation6], 6144
    $region57: #{tpu_custom_call.1} parent=1 // pred_fallthru
      _
    // Predicated region
    $region58: #{tpu_custom_call.1} parent=1 // pred_check
      _
    $region59: #{tpu_custom_call.1} parent=1 // pred_check_branch
      %80 = sbr.rel (0) target = $region61
    $region60: #{tpu_custom_call.1} parent=1 // pred_region
      %81 = dma.done [#allocation6], 6144
    $region61: #{tpu_custom_call.1} parent=1 // pred_fallthru
      _
    %v82 = vld [vmem:[%s0] sm:$0xff]
    %v83 = vld [vmem:[%s0 + $0x8] sm:$0xff]
    %v84 = vld [vmem:[%s0 + $0x10] sm:$0xff]
    %v85 = vld [vmem:[%s0 + $0x18] sm:$0xff]
    %v86 = vld [vmem:[%s0 + $0x20] sm:$0xff]
    %v87 = vld [vmem:[%s0 + $0x28] sm:$0xff]
    %v88 = vld [vmem:[%s0 + $0x30] sm:$0xff]
    %v89 = vld [vmem:[%s0 + $0x38] sm:$0xff]
    %v90 = vld [vmem:[%s2] sm:$0xff]
    %v91 = vld [vmem:[%s2 + $0x8] sm:$0xff]
    %v92 = vld [vmem:[%s2 + $0x10] sm:$0xff]
    %v93 = vld [vmem:[%s2 + $0x18] sm:$0xff]
    %v94 = vld [vmem:[%s2 + $0x20] sm:$0xff]
    %v95 = vld [vmem:[%s2 + $0x28] sm:$0xff]
    %v96 = vld [vmem:[%s2 + $0x30] sm:$0xff]
    %v97 = vld [vmem:[%s2 + $0x38] sm:$0xff]
    %v98 = vld [vmem:[%s2 + $0x40] sm:$0xff]
    %v99 = vld [vmem:[%s2 + $0x48] sm:$0xff]
    %v100 = vld [vmem:[%s2 + $0x50] sm:$0xff]
    %v101 = vld [vmem:[%s2 + $0x58] sm:$0xff]
    %v102 = vld [vmem:[%s4] sm:$0x7]
    %v104 = vlaneseq
    %v105 = vshrl.u32 %v104, 7
    %v106 = vsub.s32 0, %v105
    %v107 = vrot.slane %v102, %v106
    %v108 = vlaneseq
    %v109 = vshrl.u32 %v108, 7
    %v110 = vsub.s32 1, %v109
    %v111 = vrot.slane %v102, %v110
    %v112 = vlaneseq
    %v113 = vshrl.u32 %v112, 7
    %v114 = vsub.s32 2, %v113
    %v115 = vrot.slane %v102, %v114
    %vm119 = vcmask 261120
    %v121 = vsel %vm119, %v82, 0
    %v124 = vsel %vm119, %v83, 0
    %v127 = vsel %vm119, %v84, 0
    %v130 = vsel %vm119, %v85, 0
    %v133 = vsel %vm119, %v86, 0
    %v136 = vsel %vm119, %v87, 0
    %v139 = vsel %vm119, %v88, 0
    %v142 = vsel %vm119, %v89, 0
    %144 = vmatprep.subr.mxu0 0.0
    %145 = vmatpush1.msra.mxu0 0.0
    %146 = vmatprep.subr.mxu0 0.0
    %147 = vmatpush1.msra.mxu0 0.0
    %148 = vmatprep.subr.mxu0 0.0
    %149 = vmatpush1.msra.mxu0 0.0
    %150 = vmatprep.subr.mxu0 0.0
    %151 = vmatpush1.msra.mxu0 0.0
    %152 = vmatprep.subr.mxu0 0.0
    %153 = vmatpush1.msra.mxu0 0.0
    %154 = vmatprep.subr.mxu0 0.0
    %155 = vmatpush1.msra.mxu0 0.0
    %156 = vmatprep.subr.mxu0 0.0
    %157 = vmatpush1.msra.mxu0 0.0
    %158 = vmatprep.subr.mxu0 0.0
    %159 = vmatpush1.msra.mxu0 0.0
    %160 = vmatprep.subr.mxu0 0.0
    %161 = vmatpush1.msra.mxu0 0.0
    %162 = vmatprep.subr.mxu0 0.0
    %163 = vmatpush1.msra.mxu0 0.0
    %164 = vmatprep.subr.mxu0 0.0
    %165 = vmatpush1.msra.mxu0 0.0
    %166 = vmatprep.subr.mxu0 0.0
    %167 = vmatpush1.msra.mxu0 0.0
    %168 = vmatprep.subr.mxu0 %v100
    %169 = vmatpush1.msra.mxu0 %v99
    %170 = vmatprep.subr.mxu0 %v97
    %171 = vmatpush1.msra.mxu0 %v96
    %172 = vmatprep.subr.mxu0 %v94
    %173 = vmatpush1.msra.mxu0 %v93
    %174 = vmatprep.subr.mxu0 %v91
    %175 = vmatpush1.msra.mxu0 %v90
    %176 = vmatprep.subr.mxu0 0.0
    %177 = vmatpush2.msra.mxu0 0.0
    %178 = vmatprep.subr.mxu0 0.0
    %179 = vmatpush2.msra.mxu0 0.0
    %180 = vmatprep.subr.mxu0 0.0
    %181 = vmatpush2.msra.mxu0 0.0
    %182 = vmatprep.subr.mxu0 0.0
    %183 = vmatpush2.msra.mxu0 0.0
    %184 = vmatprep.subr.mxu0 0.0
    %185 = vmatpush2.msra.mxu0 0.0
    %186 = vmatprep.subr.mxu0 0.0
    %187 = vmatpush2.msra.mxu0 0.0
    %188 = vmatprep.subr.mxu0 0.0
    %189 = vmatpush2.msra.mxu0 0.0
    %190 = vmatprep.subr.mxu0 0.0
    %191 = vmatpush2.msra.mxu0 0.0
    %192 = vmatprep.subr.mxu0 0.0
    %193 = vmatpush2.msra.mxu0 0.0
    %194 = vmatprep.subr.mxu0 0.0
    %195 = vmatpush2.msra.mxu0 0.0
    %196 = vmatprep.subr.mxu0 0.0
    %197 = vmatpush2.msra.mxu0 0.0
    %198 = vmatprep.subr.mxu0 0.0
    %199 = vmatpush2.msra.mxu0 0.0
    %200 = vmatprep.subr.mxu0 0.0
    %201 = vmatpush2.msra.mxu0 0.0
    %202 = vmatprep.subr.mxu0 0.0
    %203 = vmatpush2.msra.mxu0 0.0
    %204 = vmatprep.subr.mxu0 0.0
    %205 = vmatpush2.msra.mxu0 0.0
    %206 = vmatprep.subr.mxu0 0.0
    %207 = vmatpush2.msra.mxu0 0.0
    %208 = vmatprep.mubr.f32.mxu0 0.0
    %209 = vmatmul.mubr.f32.gmra.mxu0 %v121
    %v210 = vpop.f32.mrf.mxu0
    %v211 = vadd.f32 %v107, %v210
    %v212 = vpop.f32.mrf.mxu0
    %v213 = vadd.f32 %v111, %v212
    %214 = vmatprep.mubr.f32.mxu0 0.0
    %215 = vmatmul.mubr.f32.gmra.mxu0 %v124
    %v216 = vpop.f32.mrf.mxu0
    %v217 = vadd.f32 %v107, %v216
    %v218 = vpop.f32.mrf.mxu0
    %v219 = vadd.f32 %v111, %v218
    %220 = vmatprep.mubr.f32.mxu0 0.0
    %221 = vmatmul.mubr.f32.gmra.mxu0 %v127
    %v222 = vpop.f32.mrf.mxu0
    %v223 = vadd.f32 %v107, %v222
    %v224 = vpop.f32.mrf.mxu0
    %v225 = vadd.f32 %v111, %v224
    %226 = vmatprep.mubr.f32.mxu0 0.0
    %227 = vmatmul.mubr.f32.gmra.mxu0 %v130
    %v228 = vpop.f32.mrf.mxu0
    %v229 = vadd.f32 %v107, %v228
    %v230 = vpop.f32.mrf.mxu0
    %v231 = vadd.f32 %v111, %v230
    %232 = vmatprep.mubr.f32.mxu0 0.0
    %233 = vmatmul.mubr.f32.gmra.mxu0 %v133
    %v234 = vpop.f32.mrf.mxu0
    %v235 = vadd.f32 %v107, %v234
    %v236 = vpop.f32.mrf.mxu0
    %v237 = vadd.f32 %v111, %v236
    %238 = vmatprep.mubr.f32.mxu0 0.0
    %239 = vmatmul.mubr.f32.gmra.mxu0 %v136
    %v240 = vpop.f32.mrf.mxu0
    %v241 = vadd.f32 %v107, %v240
    %v242 = vpop.f32.mrf.mxu0
    %v243 = vadd.f32 %v111, %v242
    %244 = vmatprep.mubr.f32.mxu0 0.0
    %245 = vmatmul.mubr.f32.gmra.mxu0 %v139
    %v246 = vpop.f32.mrf.mxu0
    %v247 = vadd.f32 %v107, %v246
    %v248 = vpop.f32.mrf.mxu0
    %v249 = vadd.f32 %v111, %v248
    %250 = vmatprep.mubr.f32.mxu0 0.0
    %251 = vmatmul.mubr.f32.gmra.mxu0 %v142
    %v252 = vpop.f32.mrf.mxu0
    %v253 = vadd.f32 %v107, %v252
    %v254 = vpop.f32.mrf.mxu0
    %v255 = vadd.f32 %v111, %v254
    %256 = vdwg.mxu0
    %257 = vmatprep.subr.mxu0 0.0
    %258 = vmatpush1.msra.mxu0 0.0
    %259 = vmatprep.subr.mxu0 0.0
    %260 = vmatpush1.msra.mxu0 0.0
    %261 = vmatprep.subr.mxu0 0.0
    %262 = vmatpush1.msra.mxu0 0.0
    %263 = vmatprep.subr.mxu0 0.0
    %264 = vmatpush1.msra.mxu0 0.0
    %265 = vmatprep.subr.mxu0 0.0
    %266 = vmatpush1.msra.mxu0 0.0
    %267 = vmatprep.subr.mxu0 0.0
    %268 = vmatpush1.msra.mxu0 0.0
    %269 = vmatprep.subr.mxu0 0.0
    %270 = vmatpush1.msra.mxu0 0.0
    %271 = vmatprep.subr.mxu0 0.0
    %272 = vmatpush1.msra.mxu0 0.0
    %273 = vmatprep.subr.mxu0 0.0
    %274 = vmatpush1.msra.mxu0 0.0
    %275 = vmatprep.subr.mxu0 0.0
    %276 = vmatpush1.msra.mxu0 0.0
    %277 = vmatprep.subr.mxu0 0.0
    %278 = vmatpush1.msra.mxu0 0.0
    %279 = vmatprep.subr.mxu0 0.0
    %280 = vmatpush1.msra.mxu0 0.0
    %281 = vmatprep.subr.mxu0 0.0
    %282 = vmatpush1.msra.mxu0 %v101
    %283 = vmatprep.subr.mxu0 0.0
    %284 = vmatpush1.msra.mxu0 %v98
    %285 = vmatprep.subr.mxu0 0.0
    %286 = vmatpush1.msra.mxu0 %v95
    %287 = vmatprep.subr.mxu0 0.0
    %288 = vmatpush1.msra.mxu0 %v92
    %289 = vmatprep.subr.mxu0 0.0
    %290 = vmatpush2.msra.mxu0 0.0
    %291 = vmatprep.subr.mxu0 0.0
    %292 = vmatpush2.msra.mxu0 0.0
    %293 = vmatprep.subr.mxu0 0.0
    %294 = vmatpush2.msra.mxu0 0.0
    %295 = vmatprep.subr.mxu0 0.0
    %296 = vmatpush2.msra.mxu0 0.0
    %297 = vmatprep.subr.mxu0 0.0
    %298 = vmatpush2.msra.mxu0 0.0
    %299 = vmatprep.subr.mxu0 0.0
    %300 = vmatpush2.msra.mxu0 0.0
    %301 = vmatprep.subr.mxu0 0.0
    %302 = vmatpush2.msra.mxu0 0.0
    %303 = vmatprep.subr.mxu0 0.0
    %304 = vmatpush2.msra.mxu0 0.0
    %305 = vmatprep.subr.mxu0 0.0
    %306 = vmatpush2.msra.mxu0 0.0
    %307 = vmatprep.subr.mxu0 0.0
    %308 = vmatpush2.msra.mxu0 0.0
    %309 = vmatprep.subr.mxu0 0.0
    %310 = vmatpush2.msra.mxu0 0.0
    %311 = vmatprep.subr.mxu0 0.0
    %312 = vmatpush2.msra.mxu0 0.0
    %313 = vmatprep.subr.mxu0 0.0
    %314 = vmatpush2.msra.mxu0 0.0
    %315 = vmatprep.subr.mxu0 0.0
    %316 = vmatpush2.msra.mxu0 0.0
    %317 = vmatprep.subr.mxu0 0.0
    %318 = vmatpush2.msra.mxu0 0.0
    %319 = vmatprep.subr.mxu0 0.0
    %320 = vmatpush2.msra.mxu0 0.0
    %321 = vmatprep.mubr.f32.mxu0 0.0
    %322 = vmatmul.mubr.f32.gmra.mxu0 %v121
    %v323 = vpop.f32.mrf.mxu0
    %v324 = vadd.f32 %v115, %v323
    %v325 = vpop.f32.mrf.mxu0
    %326 = vmatprep.mubr.f32.mxu0 0.0
    %327 = vmatmul.mubr.f32.gmra.mxu0 %v124
    %v328 = vpop.f32.mrf.mxu0
    %v329 = vadd.f32 %v115, %v328
    %v330 = vpop.f32.mrf.mxu0
    %331 = vmatprep.mubr.f32.mxu0 0.0
    %332 = vmatmul.mubr.f32.gmra.mxu0 %v127
    %v333 = vpop.f32.mrf.mxu0
    %v334 = vadd.f32 %v115, %v333
    %v335 = vpop.f32.mrf.mxu0
    %336 = vmatprep.mubr.f32.mxu0 0.0
    %337 = vmatmul.mubr.f32.gmra.mxu0 %v130
    %v338 = vpop.f32.mrf.mxu0
    %v339 = vadd.f32 %v115, %v338
    %v340 = vpop.f32.mrf.mxu0
    %341 = vmatprep.mubr.f32.mxu0 0.0
    %342 = vmatmul.mubr.f32.gmra.mxu0 %v133
    %v343 = vpop.f32.mrf.mxu0
    %v344 = vadd.f32 %v115, %v343
    %v345 = vpop.f32.mrf.mxu0
    %346 = vmatprep.mubr.f32.mxu0 0.0
    %347 = vmatmul.mubr.f32.gmra.mxu0 %v136
    %v348 = vpop.f32.mrf.mxu0
    %v349 = vadd.f32 %v115, %v348
    %v350 = vpop.f32.mrf.mxu0
    %351 = vmatprep.mubr.f32.mxu0 0.0
    %352 = vmatmul.mubr.f32.gmra.mxu0 %v139
    %v353 = vpop.f32.mrf.mxu0
    %v354 = vadd.f32 %v115, %v353
    %v355 = vpop.f32.mrf.mxu0
    %356 = vmatprep.mubr.f32.mxu0 0.0
    %357 = vmatmul.mubr.f32.gmra.mxu0 %v142
    %v358 = vpop.f32.mrf.mxu0
    %v359 = vadd.f32 %v115, %v358
    %v360 = vpop.f32.mrf.mxu0
    %361 = vdwg.mxu0
    %v362 = vld [vmem:[%s1] sm:$0xff]
    %v363 = vld [vmem:[#allocation3] sm:$0xff]
    %v364 = vld [vmem:[#allocation3 + $0x8] sm:$0xff]
    %v365 = vld [vmem:[#allocation3 + $0x10] sm:$0xff]
    %v366 = vld [vmem:[#allocation3 + $0x18] sm:$0xff]
    %v367 = vld [vmem:[#allocation3 + $0x20] sm:$0xff]
    %v368 = vld [vmem:[#allocation3 + $0x28] sm:$0xff]
    %v369 = vld [vmem:[#allocation3 + $0x30] sm:$0xff]
    %v370 = vld [vmem:[#allocation3 + $0x38] sm:$0xff]
    %v371 = vld [vmem:[#allocation3 + $0x40] sm:$0xff]
    %v372 = vld [vmem:[#allocation3 + $0x48] sm:$0xff]
    %v373 = vld [vmem:[#allocation3 + $0x50] sm:$0xff]
    %v374 = vld [vmem:[#allocation3 + $0x58] sm:$0xff]
    %v375 = vld [vmem:[#allocation3 + $0x60] sm:$0xff]
    %v376 = vld [vmem:[#allocation3 + $0x68] sm:$0xff]
    %v377 = vld [vmem:[#allocation3 + $0x70] sm:$0xff]
    %v378 = vld [vmem:[#allocation3 + $0x78] sm:$0xff]
    %v379 = vld [vmem:[#allocation3 + $0x80] sm:$0xff]
    %v380 = vld [vmem:[#allocation3 + $0x88] sm:$0xff]
    %v381 = vld [vmem:[#allocation3 + $0x90] sm:$0xff]
    %v382 = vld [vmem:[#allocation3 + $0x98] sm:$0xff]
    %v383 = vld [vmem:[#allocation3 + $0xa0] sm:$0xff]
    %v384 = vld [vmem:[#allocation3 + $0xa8] sm:$0xff]
    %v385 = vld [vmem:[#allocation3 + $0xb0] sm:$0xff]
    %v386 = vld [vmem:[#allocation3 + $0xb8] sm:$0xff]
    %v387 = vld [vmem:[#allocation3 + $0xc0] sm:$0xff]
    %v388 = vld [vmem:[#allocation3 + $0xc8] sm:$0xff]
    %v389 = vld [vmem:[#allocation3 + $0xd0] sm:$0xff]
    %v390 = vld [vmem:[#allocation3 + $0xd8] sm:$0xff]
    %v391 = vld [vmem:[#allocation3 + $0xe0] sm:$0xff]
    %v392 = vld [vmem:[#allocation3 + $0xe8] sm:$0xff]
    %v393 = vld [vmem:[#allocation3 + $0xf0] sm:$0xff]
    %v394 = vld [vmem:[#allocation3 + $0xf8] sm:$0xff]
    %v395 = vld [vmem:[#allocation3 + $0x100] sm:$0xff]
    %v396 = vld [vmem:[#allocation3 + $0x108] sm:$0xff]
    %v397 = vld [vmem:[#allocation3 + $0x110] sm:$0xff]
    %v398 = vld [vmem:[#allocation3 + $0x118] sm:$0xff]
    %v399 = vld [vmem:[#allocation3 + $0x120] sm:$0xff]
    %v400 = vld [vmem:[#allocation3 + $0x128] sm:$0xff]
    %v401 = vld [vmem:[#allocation3 + $0x130] sm:$0xff]
    %v402 = vld [vmem:[#allocation3 + $0x138] sm:$0xff]
    %v403 = vld [vmem:[#allocation3 + $0x140] sm:$0xff]
    %v404 = vld [vmem:[#allocation3 + $0x148] sm:$0xff]
    %v405 = vld [vmem:[#allocation3 + $0x150] sm:$0xff]
    %v406 = vld [vmem:[#allocation3 + $0x158] sm:$0xff]
    %v407 = vld [vmem:[#allocation3 + $0x160] sm:$0xff]
    %v408 = vld [vmem:[#allocation3 + $0x168] sm:$0xff]
    %v409 = vld [vmem:[#allocation3 + $0x170] sm:$0xff]
    %v410 = vld [vmem:[#allocation3 + $0x178] sm:$0xff]
    %v411 = vld [vmem:[%s5] sm:$0x7]
    %v413 = vlaneseq
    %v414 = vshrl.u32 %v413, 7
    %v415 = vsub.s32 0, %v414
    %v416 = vrot.slane %v411, %v415
    %v417 = vlaneseq
    %v418 = vshrl.u32 %v417, 7
    %v419 = vsub.s32 1, %v418
    %v420 = vrot.slane %v411, %v419
    %v421 = vlaneseq
    %v422 = vshrl.u32 %v421, 7
    %v423 = vsub.s32 2, %v422
    %v424 = vrot.slane %v411, %v423
    %428 = vmatprep.subr.mxu0 %v409
    %429 = vmatpush1.msra.mxu0 %v408
    %430 = vmatprep.subr.mxu0 %v406
    %431 = vmatpush1.msra.mxu0 %v405
    %432 = vmatprep.subr.mxu0 %v403
    %433 = vmatpush1.msra.mxu0 %v402
    %434 = vmatprep.subr.mxu0 %v400
    %435 = vmatpush1.msra.mxu0 %v399
    %436 = vmatprep.subr.mxu0 %v397
    %437 = vmatpush1.msra.mxu0 %v396
    %438 = vmatprep.subr.mxu0 %v394
    %439 = vmatpush1.msra.mxu0 %v393
    %440 = vmatprep.subr.mxu0 %v391
    %441 = vmatpush1.msra.mxu0 %v390
    %442 = vmatprep.subr.mxu0 %v388
    %443 = vmatpush1.msra.mxu0 %v387
    %444 = vmatprep.subr.mxu0 %v385
    %445 = vmatpush1.msra.mxu0 %v384
    %446 = vmatprep.subr.mxu0 %v382
    %447 = vmatpush1.msra.mxu0 %v381
    %448 = vmatprep.subr.mxu0 %v379
    %449 = vmatpush1.msra.mxu0 %v378
    %450 = vmatprep.subr.mxu0 %v376
    %451 = vmatpush1.msra.mxu0 %v375
    %452 = vmatprep.subr.mxu0 %v373
    %453 = vmatpush1.msra.mxu0 %v372
    %454 = vmatprep.subr.mxu0 %v370
    %455 = vmatpush1.msra.mxu0 %v369
    %456 = vmatprep.subr.mxu0 %v367
    %457 = vmatpush1.msra.mxu0 %v366
    %458 = vmatprep.subr.mxu0 %v364
    %459 = vmatpush1.msra.mxu0 %v363
    %460 = vmatprep.subr.mxu0 0.0
    %461 = vmatpush2.msra.mxu0 0.0
    %462 = vmatprep.subr.mxu0 0.0
    %463 = vmatpush2.msra.mxu0 0.0
    %464 = vmatprep.subr.mxu0 0.0
    %465 = vmatpush2.msra.mxu0 0.0
    %466 = vmatprep.subr.mxu0 0.0
    %467 = vmatpush2.msra.mxu0 0.0
    %468 = vmatprep.subr.mxu0 0.0
    %469 = vmatpush2.msra.mxu0 0.0
    %470 = vmatprep.subr.mxu0 0.0
    %471 = vmatpush2.msra.mxu0 0.0
    %472 = vmatprep.subr.mxu0 0.0
    %473 = vmatpush2.msra.mxu0 0.0
    %474 = vmatprep.subr.mxu0 0.0
    %475 = vmatpush2.msra.mxu0 0.0
    %476 = vmatprep.subr.mxu0 0.0
    %477 = vmatpush2.msra.mxu0 0.0
    %478 = vmatprep.subr.mxu0 0.0
    %479 = vmatpush2.msra.mxu0 0.0
    %480 = vmatprep.subr.mxu0 0.0
    %481 = vmatpush2.msra.mxu0 0.0
    %482 = vmatprep.subr.mxu0 0.0
    %483 = vmatpush2.msra.mxu0 0.0
    %484 = vmatprep.subr.mxu0 0.0
    %485 = vmatpush2.msra.mxu0 0.0
    %486 = vmatprep.subr.mxu0 0.0
    %487 = vmatpush2.msra.mxu0 0.0
    %488 = vmatprep.subr.mxu0 0.0
    %489 = vmatpush2.msra.mxu0 0.0
    %490 = vmatprep.subr.mxu0 0.0
    %491 = vmatpush2.msra.mxu0 0.0
    %492 = vmatprep.mubr.f32.mxu0 0.0
    %493 = vmatmul.mubr.f32.gmra.mxu0 %v362
    %v494 = vpop.f32.mrf.mxu0
    %v495 = vadd.f32 %v416, %v494
    %v496 = vpop.f32.mrf.mxu0
    %v497 = vadd.f32 %v420, %v496
    %498 = vdwg.mxu0
    %499 = vmatprep.subr.mxu0 0.0
    %500 = vmatpush1.msra.mxu0 %v410
    %501 = vmatprep.subr.mxu0 0.0
    %502 = vmatpush1.msra.mxu0 %v407
    %503 = vmatprep.subr.mxu0 0.0
    %504 = vmatpush1.msra.mxu0 %v404
    %505 = vmatprep.subr.mxu0 0.0
    %506 = vmatpush1.msra.mxu0 %v401
    %507 = vmatprep.subr.mxu0 0.0
    %508 = vmatpush1.msra.mxu0 %v398
    %509 = vmatprep.subr.mxu0 0.0
    %510 = vmatpush1.msra.mxu0 %v395
    %511 = vmatprep.subr.mxu0 0.0
    %512 = vmatpush1.msra.mxu0 %v392
    %513 = vmatprep.subr.mxu0 0.0
    %514 = vmatpush1.msra.mxu0 %v389
    %515 = vmatprep.subr.mxu0 0.0
    %516 = vmatpush1.msra.mxu0 %v386
    %517 = vmatprep.subr.mxu0 0.0
    %518 = vmatpush1.msra.mxu0 %v383
    %519 = vmatprep.subr.mxu0 0.0
    %520 = vmatpush1.msra.mxu0 %v380
    %521 = vmatprep.subr.mxu0 0.0
    %522 = vmatpush1.msra.mxu0 %v377
    %523 = vmatprep.subr.mxu0 0.0
    %524 = vmatpush1.msra.mxu0 %v374
    %525 = vmatprep.subr.mxu0 0.0
    %526 = vmatpush1.msra.mxu0 %v371
    %527 = vmatprep.subr.mxu0 0.0
    %528 = vmatpush1.msra.mxu0 %v368
    %529 = vmatprep.subr.mxu0 0.0
    %530 = vmatpush1.msra.mxu0 %v365
    %531 = vmatprep.subr.mxu0 0.0
    %532 = vmatpush2.msra.mxu0 0.0
    %533 = vmatprep.subr.mxu0 0.0
    %534 = vmatpush2.msra.mxu0 0.0
    %535 = vmatprep.subr.mxu0 0.0
    %536 = vmatpush2.msra.mxu0 0.0
    %537 = vmatprep.subr.mxu0 0.0
    %538 = vmatpush2.msra.mxu0 0.0
    %539 = vmatprep.subr.mxu0 0.0
    %540 = vmatpush2.msra.mxu0 0.0
    %541 = vmatprep.subr.mxu0 0.0
    %542 = vmatpush2.msra.mxu0 0.0
    %543 = vmatprep.subr.mxu0 0.0
    %544 = vmatpush2.msra.mxu0 0.0
    %545 = vmatprep.subr.mxu0 0.0
    %546 = vmatpush2.msra.mxu0 0.0
    %547 = vmatprep.subr.mxu0 0.0
    %548 = vmatpush2.msra.mxu0 0.0
    %549 = vmatprep.subr.mxu0 0.0
    %550 = vmatpush2.msra.mxu0 0.0
    %551 = vmatprep.subr.mxu0 0.0
    %552 = vmatpush2.msra.mxu0 0.0
    %553 = vmatprep.subr.mxu0 0.0
    %554 = vmatpush2.msra.mxu0 0.0
    %555 = vmatprep.subr.mxu0 0.0
    %556 = vmatpush2.msra.mxu0 0.0
    %557 = vmatprep.subr.mxu0 0.0
    %558 = vmatpush2.msra.mxu0 0.0
    %559 = vmatprep.subr.mxu0 0.0
    %560 = vmatpush2.msra.mxu0 0.0
    %561 = vmatprep.subr.mxu0 0.0
    %562 = vmatpush2.msra.mxu0 0.0
    %563 = vmatprep.mubr.f32.mxu0 0.0
    %564 = vmatmul.mubr.f32.gmra.mxu0 %v362
    %v565 = vpop.f32.mrf.mxu0
    %v566 = vadd.f32 %v424, %v565
    %v567 = vpop.f32.mrf.mxu0
    %568 = vdwg.mxu0
    %v569 = vadd.f32 %v211, %v495
    %v570 = vxor.u32 %v569, 2147483648
    %v571 = vmul.f32 %v570, 1.442695
    %v572 = vpow.pop %v571
    %v573 = vadd.f32 %v572, 1.0
    %v574 = vrcp.pop %v573
    %v575 = vmul.f32 1.0, %v574
    %v576 = vadd.f32 %v213, %v497
    %v577 = vxor.u32 %v576, 2147483648
    %v578 = vmul.f32 %v577, 1.442695
    %v579 = vpow.pop %v578
    %v580 = vadd.f32 %v579, 1.0
    %v581 = vrcp.pop %v580
    %v582 = vmul.f32 1.0, %v581
    %v583 = vmul.f32 %v575, %v566
    %v584 = vadd.f32 %v324, %v583
    %v585 = vtanh.pop %v584
    %v586 = vsub.f32 1.0, %v582
    %v587 = vmul.f32 %v586, %v585
    %v588 = vmul.f32 %v582, %v362
    %v589 = vadd.f32 %v587, %v588
    %590 = vst [vmem:[#allocation2] sm:$0xff] %v589
    %v591 = vld [vmem:[#allocation3] sm:$0xff]
    %v592 = vld [vmem:[#allocation3 + $0x8] sm:$0xff]
    %v593 = vld [vmem:[#allocation3 + $0x10] sm:$0xff]
    %v594 = vld [vmem:[#allocation3 + $0x18] sm:$0xff]
    %v595 = vld [vmem:[#allocation3 + $0x20] sm:$0xff]
    %v596 = vld [vmem:[#allocation3 + $0x28] sm:$0xff]
    %v597 = vld [vmem:[#allocation3 + $0x30] sm:$0xff]
    %v598 = vld [vmem:[#allocation3 + $0x38] sm:$0xff]
    %v599 = vld [vmem:[#allocation3 + $0x40] sm:$0xff]
    %v600 = vld [vmem:[#allocation3 + $0x48] sm:$0xff]
    %v601 = vld [vmem:[#allocation3 + $0x50] sm:$0xff]
    %v602 = vld [vmem:[#allocation3 + $0x58] sm:$0xff]
    %v603 = vld [vmem:[#allocation3 + $0x60] sm:$0xff]
    %v604 = vld [vmem:[#allocation3 + $0x68] sm:$0xff]
    %v605 = vld [vmem:[#allocation3 + $0x70] sm:$0xff]
    %v606 = vld [vmem:[#allocation3 + $0x78] sm:$0xff]
    %v607 = vld [vmem:[#allocation3 + $0x80] sm:$0xff]
    %v608 = vld [vmem:[#allocation3 + $0x88] sm:$0xff]
    %v609 = vld [vmem:[#allocation3 + $0x90] sm:$0xff]
    %v610 = vld [vmem:[#allocation3 + $0x98] sm:$0xff]
    %v611 = vld [vmem:[#allocation3 + $0xa0] sm:$0xff]
    %v612 = vld [vmem:[#allocation3 + $0xa8] sm:$0xff]
    %v613 = vld [vmem:[#allocation3 + $0xb0] sm:$0xff]
    %v614 = vld [vmem:[#allocation3 + $0xb8] sm:$0xff]
    %v615 = vld [vmem:[#allocation3 + $0xc0] sm:$0xff]
    %v616 = vld [vmem:[#allocation3 + $0xc8] sm:$0xff]
    %v617 = vld [vmem:[#allocation3 + $0xd0] sm:$0xff]
    %v618 = vld [vmem:[#allocation3 + $0xd8] sm:$0xff]
    %v619 = vld [vmem:[#allocation3 + $0xe0] sm:$0xff]
    %v620 = vld [vmem:[#allocation3 + $0xe8] sm:$0xff]
    %v621 = vld [vmem:[#allocation3 + $0xf0] sm:$0xff]
    %v622 = vld [vmem:[#allocation3 + $0xf8] sm:$0xff]
    %v623 = vld [vmem:[#allocation3 + $0x100] sm:$0xff]
    %v624 = vld [vmem:[#allocation3 + $0x108] sm:$0xff]
    %v625 = vld [vmem:[#allocation3 + $0x110] sm:$0xff]
    %v626 = vld [vmem:[#allocation3 + $0x118] sm:$0xff]
    %v627 = vld [vmem:[#allocation3 + $0x120] sm:$0xff]
    %v628 = vld [vmem:[#allocation3 + $0x128] sm:$0xff]
    %v629 = vld [vmem:[#allocation3 + $0x130] sm:$0xff]
    %v630 = vld [vmem:[#allocation3 + $0x138] sm:$0xff]
    %v631 = vld [vmem:[#allocation3 + $0x140] sm:$0xff]
    %v632 = vld [vmem:[#allocation3 + $0x148] sm:$0xff]
    %v633 = vld [vmem:[#allocation3 + $0x150] sm:$0xff]
    %v634 = vld [vmem:[#allocation3 + $0x158] sm:$0xff]
    %v635 = vld [vmem:[#allocation3 + $0x160] sm:$0xff]
    %v636 = vld [vmem:[#allocation3 + $0x168] sm:$0xff]
    %v637 = vld [vmem:[#allocation3 + $0x170] sm:$0xff]
    %v638 = vld [vmem:[#allocation3 + $0x178] sm:$0xff]
    %v639 = vld [vmem:[%s5] sm:$0x7]
    %v641 = vlaneseq
    %v642 = vshrl.u32 %v641, 7
    %v643 = vsub.s32 0, %v642
    %v644 = vrot.slane %v639, %v643
    %v645 = vlaneseq
    %v646 = vshrl.u32 %v645, 7
    %v647 = vsub.s32 1, %v646
    %v648 = vrot.slane %v639, %v647
    %v649 = vlaneseq
    %v650 = vshrl.u32 %v649, 7
    %v651 = vsub.s32 2, %v650
    %v652 = vrot.slane %v639, %v651
    %656 = vmatprep.subr.mxu0 %v637
    %657 = vmatpush1.msra.mxu0 %v636
    %658 = vmatprep.subr.mxu0 %v634
    %659 = vmatpush1.msra.mxu0 %v633
    %660 = vmatprep.subr.mxu0 %v631
    %661 = vmatpush1.msra.mxu0 %v630
    %662 = vmatprep.subr.mxu0 %v628
    %663 = vmatpush1.msra.mxu0 %v627
    %664 = vmatprep.subr.mxu0 %v625
    %665 = vmatpush1.msra.mxu0 %v624
    %666 = vmatprep.subr.mxu0 %v622
    %667 = vmatpush1.msra.mxu0 %v621
    %668 = vmatprep.subr.mxu0 %v619
    %669 = vmatpush1.msra.mxu0 %v618
    %670 = vmatprep.subr.mxu0 %v616
    %671 = vmatpush1.msra.mxu0 %v615
    %672 = vmatprep.subr.mxu0 %v613
    %673 = vmatpush1.msra.mxu0 %v612
    %674 = vmatprep.subr.mxu0 %v610
    %675 = vmatpush1.msra.mxu0 %v609
    %676 = vmatprep.subr.mxu0 %v607
    %677 = vmatpush1.msra.mxu0 %v606
    %678 = vmatprep.subr.mxu0 %v604
    %679 = vmatpush1.msra.mxu0 %v603
    %680 = vmatprep.subr.mxu0 %v601
    %681 = vmatpush1.msra.mxu0 %v600
    %682 = vmatprep.subr.mxu0 %v598
    %683 = vmatpush1.msra.mxu0 %v597
    %684 = vmatprep.subr.mxu0 %v595
    %685 = vmatpush1.msra.mxu0 %v594
    %686 = vmatprep.subr.mxu0 %v592
    %687 = vmatpush1.msra.mxu0 %v591
    %688 = vmatprep.subr.mxu0 0.0
    %689 = vmatpush2.msra.mxu0 0.0
    %690 = vmatprep.subr.mxu0 0.0
    %691 = vmatpush2.msra.mxu0 0.0
    %692 = vmatprep.subr.mxu0 0.0
    %693 = vmatpush2.msra.mxu0 0.0
    %694 = vmatprep.subr.mxu0 0.0
    %695 = vmatpush2.msra.mxu0 0.0
    %696 = vmatprep.subr.mxu0 0.0
    %697 = vmatpush2.msra.mxu0 0.0
    %698 = vmatprep.subr.mxu0 0.0
    %699 = vmatpush2.msra.mxu0 0.0
    %700 = vmatprep.subr.mxu0 0.0
    %701 = vmatpush2.msra.mxu0 0.0
    %702 = vmatprep.subr.mxu0 0.0
    %703 = vmatpush2.msra.mxu0 0.0
    %704 = vmatprep.subr.mxu0 0.0
    %705 = vmatpush2.msra.mxu0 0.0
    %706 = vmatprep.subr.mxu0 0.0
    %707 = vmatpush2.msra.mxu0 0.0
    %708 = vmatprep.subr.mxu0 0.0
    %709 = vmatpush2.msra.mxu0 0.0
    %710 = vmatprep.subr.mxu0 0.0
    %711 = vmatpush2.msra.mxu0 0.0
    %712 = vmatprep.subr.mxu0 0.0
    %713 = vmatpush2.msra.mxu0 0.0
    %714 = vmatprep.subr.mxu0 0.0
    %715 = vmatpush2.msra.mxu0 0.0
    %716 = vmatprep.subr.mxu0 0.0
    %717 = vmatpush2.msra.mxu0 0.0
    %718 = vmatprep.subr.mxu0 0.0
    %719 = vmatpush2.msra.mxu0 0.0
    %720 = vmatprep.mubr.f32.mxu0 0.0
    %721 = vmatmul.mubr.f32.gmra.mxu0 %v589
    %v722 = vpop.f32.mrf.mxu0
    %v723 = vadd.f32 %v644, %v722
    %v724 = vpop.f32.mrf.mxu0
    %v725 = vadd.f32 %v648, %v724
    %726 = vdwg.mxu0
    %727 = vmatprep.subr.mxu0 0.0
    %728 = vmatpush1.msra.mxu0 %v638
    %729 = vmatprep.subr.mxu0 0.0
    %730 = vmatpush1.msra.mxu0 %v635
    %731 = vmatprep.subr.mxu0 0.0
    %732 = vmatpush1.msra.mxu0 %v632
    %733 = vmatprep.subr.mxu0 0.0
    %734 = vmatpush1.msra.mxu0 %v629
    %735 = vmatprep.subr.mxu0 0.0
    %736 = vmatpush1.msra.mxu0 %v626
    %737 = vmatprep.subr.mxu0 0.0
    %738 = vmatpush1.msra.mxu0 %v623
    %739 = vmatprep.subr.mxu0 0.0
    %740 = vmatpush1.msra.mxu0 %v620
    %741 = vmatprep.subr.mxu0 0.0
    %742 = vmatpush1.msra.mxu0 %v617
    %743 = vmatprep.subr.mxu0 0.0
    %744 = vmatpush1.msra.mxu0 %v614
    %745 = vmatprep.subr.mxu0 0.0
    %746 = vmatpush1.msra.mxu0 %v611
    %747 = vmatprep.subr.mxu0 0.0
    %748 = vmatpush1.msra.mxu0 %v608
    %749 = vmatprep.subr.mxu0 0.0
    %750 = vmatpush1.msra.mxu0 %v605
    %751 = vmatprep.subr.mxu0 0.0
    %752 = vmatpush1.msra.mxu0 %v602
    %753 = vmatprep.subr.mxu0 0.0
    %754 = vmatpush1.msra.mxu0 %v599
    %755 = vmatprep.subr.mxu0 0.0
    %756 = vmatpush1.msra.mxu0 %v596
    %757 = vmatprep.subr.mxu0 0.0
    %758 = vmatpush1.msra.mxu0 %v593
    %759 = vmatprep.subr.mxu0 0.0
    %760 = vmatpush2.msra.mxu0 0.0
    %761 = vmatprep.subr.mxu0 0.0
    %762 = vmatpush2.msra.mxu0 0.0
    %763 = vmatprep.subr.mxu0 0.0
    %764 = vmatpush2.msra.mxu0 0.0
    %765 = vmatprep.subr.mxu0 0.0
    %766 = vmatpush2.msra.mxu0 0.0
    %767 = vmatprep.subr.mxu0 0.0
    %768 = vmatpush2.msra.mxu0 0.0
    %769 = vmatprep.subr.mxu0 0.0
    %770 = vmatpush2.msra.mxu0 0.0
    %771 = vmatprep.subr.mxu0 0.0
    %772 = vmatpush2.msra.mxu0 0.0
    %773 = vmatprep.subr.mxu0 0.0
    %774 = vmatpush2.msra.mxu0 0.0
    %775 = vmatprep.subr.mxu0 0.0
    %776 = vmatpush2.msra.mxu0 0.0
    %777 = vmatprep.subr.mxu0 0.0
    %778 = vmatpush2.msra.mxu0 0.0
    %779 = vmatprep.subr.mxu0 0.0
    %780 = vmatpush2.msra.mxu0 0.0
    %781 = vmatprep.subr.mxu0 0.0
    %782 = vmatpush2.msra.mxu0 0.0
    %783 = vmatprep.subr.mxu0 0.0
    %784 = vmatpush2.msra.mxu0 0.0
    %785 = vmatprep.subr.mxu0 0.0
    %786 = vmatpush2.msra.mxu0 0.0
    %787 = vmatprep.subr.mxu0 0.0
    %788 = vmatpush2.msra.mxu0 0.0
    %789 = vmatprep.subr.mxu0 0.0
    %790 = vmatpush2.msra.mxu0 0.0
    %791 = vmatprep.mubr.f32.mxu0 0.0
    %792 = vmatmul.mubr.f32.gmra.mxu0 %v589
    %v793 = vpop.f32.mrf.mxu0
    %v794 = vadd.f32 %v652, %v793
    %v795 = vpop.f32.mrf.mxu0
    %796 = vdwg.mxu0
    %v797 = vadd.f32 %v217, %v723
    %v798 = vxor.u32 %v797, 2147483648
    %v799 = vmul.f32 %v798, 1.442695
    %v800 = vpow.pop %v799
    %v801 = vadd.f32 %v800, 1.0
    %v802 = vrcp.pop %v801
    %v803 = vmul.f32 1.0, %v802
    %v804 = vadd.f32 %v219, %v725
    %v805 = vxor.u32 %v804, 2147483648
    %v806 = vmul.f32 %v805, 1.442695
    %v807 = vpow.pop %v806
    %v808 = vadd.f32 %v807, 1.0
    %v809 = vrcp.pop %v808
    %v810 = vmul.f32 1.0, %v809
    %v811 = vmul.f32 %v803, %v794
    %v812 = vadd.f32 %v329, %v811
    %v813 = vtanh.pop %v812
    %v814 = vsub.f32 1.0, %v810
    %v815 = vmul.f32 %v814, %v813
    %v816 = vmul.f32 %v810, %v589
    %v817 = vadd.f32 %v815, %v816
    %818 = vst [vmem:[#allocation2 + $0x8] sm:$0xff] %v817
    %v819 = vld [vmem:[#allocation3] sm:$0xff]
    %v820 = vld [vmem:[#allocation3 + $0x8] sm:$0xff]
    %v821 = vld [vmem:[#allocation3 + $0x10] sm:$0xff]
    %v822 = vld [vmem:[#allocation3 + $0x18] sm:$0xff]
    %v823 = vld [vmem:[#allocation3 + $0x20] sm:$0xff]
    %v824 = vld [vmem:[#allocation3 + $0x28] sm:$0xff]
    %v825 = vld [vmem:[#allocation3 + $0x30] sm:$0xff]
    %v826 = vld [vmem:[#allocation3 + $0x38] sm:$0xff]
    %v827 = vld [vmem:[#allocation3 + $0x40] sm:$0xff]
    %v828 = vld [vmem:[#allocation3 + $0x48] sm:$0xff]
    %v829 = vld [vmem:[#allocation3 + $0x50] sm:$0xff]
    %v830 = vld [vmem:[#allocation3 + $0x58] sm:$0xff]
    %v831 = vld [vmem:[#allocation3 + $0x60] sm:$0xff]
    %v832 = vld [vmem:[#allocation3 + $0x68] sm:$0xff]
    %v833 = vld [vmem:[#allocation3 + $0x70] sm:$0xff]
    %v834 = vld [vmem:[#allocation3 + $0x78] sm:$0xff]
    %v835 = vld [vmem:[#allocation3 + $0x80] sm:$0xff]
    %v836 = vld [vmem:[#allocation3 + $0x88] sm:$0xff]
    %v837 = vld [vmem:[#allocation3 + $0x90] sm:$0xff]
    %v838 = vld [vmem:[#allocation3 + $0x98] sm:$0xff]
    %v839 = vld [vmem:[#allocation3 + $0xa0] sm:$0xff]
    %v840 = vld [vmem:[#allocation3 + $0xa8] sm:$0xff]
    %v841 = vld [vmem:[#allocation3 + $0xb0] sm:$0xff]
    %v842 = vld [vmem:[#allocation3 + $0xb8] sm:$0xff]
    %v843 = vld [vmem:[#allocation3 + $0xc0] sm:$0xff]
    %v844 = vld [vmem:[#allocation3 + $0xc8] sm:$0xff]
    %v845 = vld [vmem:[#allocation3 + $0xd0] sm:$0xff]
    %v846 = vld [vmem:[#allocation3 + $0xd8] sm:$0xff]
    %v847 = vld [vmem:[#allocation3 + $0xe0] sm:$0xff]
    %v848 = vld [vmem:[#allocation3 + $0xe8] sm:$0xff]
    %v849 = vld [vmem:[#allocation3 + $0xf0] sm:$0xff]
    %v850 = vld [vmem:[#allocation3 + $0xf8] sm:$0xff]
    %v851 = vld [vmem:[#allocation3 + $0x100] sm:$0xff]
    %v852 = vld [vmem:[#allocation3 + $0x108] sm:$0xff]
    %v853 = vld [vmem:[#allocation3 + $0x110] sm:$0xff]
    %v854 = vld [vmem:[#allocation3 + $0x118] sm:$0xff]
    %v855 = vld [vmem:[#allocation3 + $0x120] sm:$0xff]
    %v856 = vld [vmem:[#allocation3 + $0x128] sm:$0xff]
    %v857 = vld [vmem:[#allocation3 + $0x130] sm:$0xff]
    %v858 = vld [vmem:[#allocation3 + $0x138] sm:$0xff]
    %v859 = vld [vmem:[#allocation3 + $0x140] sm:$0xff]
    %v860 = vld [vmem:[#allocation3 + $0x148] sm:$0xff]
    %v861 = vld [vmem:[#allocation3 + $0x150] sm:$0xff]
    %v862 = vld [vmem:[#allocation3 + $0x158] sm:$0xff]
    %v863 = vld [vmem:[#allocation3 + $0x160] sm:$0xff]
    %v864 = vld [vmem:[#allocation3 + $0x168] sm:$0xff]
    %v865 = vld [vmem:[#allocation3 + $0x170] sm:$0xff]
    %v866 = vld [vmem:[#allocation3 + $0x178] sm:$0xff]
    %v867 = vld [vmem:[%s5] sm:$0x7]
    %v869 = vlaneseq
    %v870 = vshrl.u32 %v869, 7
    %v871 = vsub.s32 0, %v870
    %v872 = vrot.slane %v867, %v871
    %v873 = vlaneseq
    %v874 = vshrl.u32 %v873, 7
    %v875 = vsub.s32 1, %v874
    %v876 = vrot.slane %v867, %v875
    %v877 = vlaneseq
    %v878 = vshrl.u32 %v877, 7
    %v879 = vsub.s32 2, %v878
    %v880 = vrot.slane %v867, %v879
    %884 = vmatprep.subr.mxu0 %v865
    %885 = vmatpush1.msra.mxu0 %v864
    %886 = vmatprep.subr.mxu0 %v862
    %887 = vmatpush1.msra.mxu0 %v861
    %888 = vmatprep.subr.mxu0 %v859
    %889 = vmatpush1.msra.mxu0 %v858
    %890 = vmatprep.subr.mxu0 %v856
    %891 = vmatpush1.msra.mxu0 %v855
    %892 = vmatprep.subr.mxu0 %v853
    %893 = vmatpush1.msra.mxu0 %v852
    %894 = vmatprep.subr.mxu0 %v850
    %895 = vmatpush1.msra.mxu0 %v849
    %896 = vmatprep.subr.mxu0 %v847
    %897 = vmatpush1.msra.mxu0 %v846
    %898 = vmatprep.subr.mxu0 %v844
    %899 = vmatpush1.msra.mxu0 %v843
    %900 = vmatprep.subr.mxu0 %v841
    %901 = vmatpush1.msra.mxu0 %v840
    %902 = vmatprep.subr.mxu0 %v838
    %903 = vmatpush1.msra.mxu0 %v837
    %904 = vmatprep.subr.mxu0 %v835
    %905 = vmatpush1.msra.mxu0 %v834
    %906 = vmatprep.subr.mxu0 %v832
    %907 = vmatpush1.msra.mxu0 %v831
    %908 = vmatprep.subr.mxu0 %v829
    %909 = vmatpush1.msra.mxu0 %v828
    %910 = vmatprep.subr.mxu0 %v826
    %911 = vmatpush1.msra.mxu0 %v825
    %912 = vmatprep.subr.mxu0 %v823
    %913 = vmatpush1.msra.mxu0 %v822
    %914 = vmatprep.subr.mxu0 %v820
    %915 = vmatpush1.msra.mxu0 %v819
    %916 = vmatprep.subr.mxu0 0.0
    %917 = vmatpush2.msra.mxu0 0.0
    %918 = vmatprep.subr.mxu0 0.0
    %919 = vmatpush2.msra.mxu0 0.0
    %920 = vmatprep.subr.mxu0 0.0
    %921 = vmatpush2.msra.mxu0 0.0
    %922 = vmatprep.subr.mxu0 0.0
    %923 = vmatpush2.msra.mxu0 0.0
    %924 = vmatprep.subr.mxu0 0.0
    %925 = vmatpush2.msra.mxu0 0.0
    %926 = vmatprep.subr.mxu0 0.0
    %927 = vmatpush2.msra.mxu0 0.0
    %928 = vmatprep.subr.mxu0 0.0
    %929 = vmatpush2.msra.mxu0 0.0
    %930 = vmatprep.subr.mxu0 0.0
    %931 = vmatpush2.msra.mxu0 0.0
    %932 = vmatprep.subr.mxu0 0.0
    %933 = vmatpush2.msra.mxu0 0.0
    %934 = vmatprep.subr.mxu0 0.0
    %935 = vmatpush2.msra.mxu0 0.0
    %936 = vmatprep.subr.mxu0 0.0
    %937 = vmatpush2.msra.mxu0 0.0
    %938 = vmatprep.subr.mxu0 0.0
    %939 = vmatpush2.msra.mxu0 0.0
    %940 = vmatprep.subr.mxu0 0.0
    %941 = vmatpush2.msra.mxu0 0.0
    %942 = vmatprep.subr.mxu0 0.0
    %943 = vmatpush2.msra.mxu0 0.0
    %944 = vmatprep.subr.mxu0 0.0
    %945 = vmatpush2.msra.mxu0 0.0
    %946 = vmatprep.subr.mxu0 0.0
    %947 = vmatpush2.msra.mxu0 0.0
    %948 = vmatprep.mubr.f32.mxu0 0.0
    %949 = vmatmul.mubr.f32.gmra.mxu0 %v817
    %v950 = vpop.f32.mrf.mxu0
    %v951 = vadd.f32 %v872, %v950
    %v952 = vpop.f32.mrf.mxu0
    %v953 = vadd.f32 %v876, %v952
    %954 = vdwg.mxu0
    %955 = vmatprep.subr.mxu0 0.0
    %956 = vmatpush1.msra.mxu0 %v866
    %957 = vmatprep.subr.mxu0 0.0
    %958 = vmatpush1.msra.mxu0 %v863
    %959 = vmatprep.subr.mxu0 0.0
    %960 = vmatpush1.msra.mxu0 %v860
    %961 = vmatprep.subr.mxu0 0.0
    %962 = vmatpush1.msra.mxu0 %v857
    %963 = vmatprep.subr.mxu0 0.0
    %964 = vmatpush1.msra.mxu0 %v854
    %965 = vmatprep.subr.mxu0 0.0
    %966 = vmatpush1.msra.mxu0 %v851
    %967 = vmatprep.subr.mxu0 0.0
    %968 = vmatpush1.msra.mxu0 %v848
    %969 = vmatprep.subr.mxu0 0.0
    %970 = vmatpush1.msra.mxu0 %v845
    %971 = vmatprep.subr.mxu0 0.0
    %972 = vmatpush1.msra.mxu0 %v842
    %973 = vmatprep.subr.mxu0 0.0
    %974 = vmatpush1.msra.mxu0 %v839
    %975 = vmatprep.subr.mxu0 0.0
    %976 = vmatpush1.msra.mxu0 %v836
    %977 = vmatprep.subr.mxu0 0.0
    %978 = vmatpush1.msra.mxu0 %v833
    %979 = vmatprep.subr.mxu0 0.0
    %980 = vmatpush1.msra.mxu0 %v830
    %981 = vmatprep.subr.mxu0 0.0
    %982 = vmatpush1.msra.mxu0 %v827
    %983 = vmatprep.subr.mxu0 0.0
    %984 = vmatpush1.msra.mxu0 %v824
    %985 = vmatprep.subr.mxu0 0.0
    %986 = vmatpush1.msra.mxu0 %v821
    %987 = vmatprep.subr.mxu0 0.0
    %988 = vmatpush2.msra.mxu0 0.0
    %989 = vmatprep.subr.mxu0 0.0
    %990 = vmatpush2.msra.mxu0 0.0
    %991 = vmatprep.subr.mxu0 0.0
    %992 = vmatpush2.msra.mxu0 0.0
    %993 = vmatprep.subr.mxu0 0.0
    %994 = vmatpush2.msra.mxu0 0.0
    %995 = vmatprep.subr.mxu0 0.0
    %996 = vmatpush2.msra.mxu0 0.0
    %997 = vmatprep.subr.mxu0 0.0
    %998 = vmatpush2.msra.mxu0 0.0
    %999 = vmatprep.subr.mxu0 0.0
    %1000 = vmatpush2.msra.mxu0 0.0
    %1001 = vmatprep.subr.mxu0 0.0
    %1002 = vmatpush2.msra.mxu0 0.0
    %1003 = vmatprep.subr.mxu0 0.0
    %1004 = vmatpush2.msra.mxu0 0.0
    %1005 = vmatprep.subr.mxu0 0.0
    %1006 = vmatpush2.msra.mxu0 0.0
    %1007 = vmatprep.subr.mxu0 0.0
    %1008 = vmatpush2.msra.mxu0 0.0
    %1009 = vmatprep.subr.mxu0 0.0
    %1010 = vmatpush2.msra.mxu0 0.0
    %1011 = vmatprep.subr.mxu0 0.0
    %1012 = vmatpush2.msra.mxu0 0.0
    %1013 = vmatprep.subr.mxu0 0.0
    %1014 = vmatpush2.msra.mxu0 0.0
    %1015 = vmatprep.subr.mxu0 0.0
    %1016 = vmatpush2.msra.mxu0 0.0
    %1017 = vmatprep.subr.mxu0 0.0
    %1018 = vmatpush2.msra.mxu0 0.0
    %1019 = vmatprep.mubr.f32.mxu0 0.0
    %1020 = vmatmul.mubr.f32.gmra.mxu0 %v817
    %v1021 = vpop.f32.mrf.mxu0
    %v1022 = vadd.f32 %v880, %v1021
    %v1023 = vpop.f32.mrf.mxu0
    %1024 = vdwg.mxu0
    %v1025 = vadd.f32 %v223, %v951
    %v1026 = vxor.u32 %v1025, 2147483648
    %v1027 = vmul.f32 %v1026, 1.442695
    %v1028 = vpow.pop %v1027
    %v1029 = vadd.f32 %v1028, 1.0
    %v1030 = vrcp.pop %v1029
    %v1031 = vmul.f32 1.0, %v1030
    %v1032 = vadd.f32 %v225, %v953
    %v1033 = vxor.u32 %v1032, 2147483648
    %v1034 = vmul.f32 %v1033, 1.442695
    %v1035 = vpow.pop %v1034
    %v1036 = vadd.f32 %v1035, 1.0
    %v1037 = vrcp.pop %v1036
    %v1038 = vmul.f32 1.0, %v1037
    %v1039 = vmul.f32 %v1031, %v1022
    %v1040 = vadd.f32 %v334, %v1039
    %v1041 = vtanh.pop %v1040
    %v1042 = vsub.f32 1.0, %v1038
    %v1043 = vmul.f32 %v1042, %v1041
    %v1044 = vmul.f32 %v1038, %v817
    %v1045 = vadd.f32 %v1043, %v1044
    %1046 = vst [vmem:[#allocation2 + $0x10] sm:$0xff] %v1045
    %v1047 = vld [vmem:[#allocation3] sm:$0xff]
    %v1048 = vld [vmem:[#allocation3 + $0x8] sm:$0xff]
    %v1049 = vld [vmem:[#allocation3 + $0x10] sm:$0xff]
    %v1050 = vld [vmem:[#allocation3 + $0x18] sm:$0xff]
    %v1051 = vld [vmem:[#allocation3 + $0x20] sm:$0xff]
    %v1052 = vld [vmem:[#allocation3 + $0x28] sm:$0xff]
    %v1053 = vld [vmem:[#allocation3 + $0x30] sm:$0xff]
    %v1054 = vld [vmem:[#allocation3 + $0x38] sm:$0xff]
    %v1055 = vld [vmem:[#allocation3 + $0x40] sm:$0xff]
    %v1056 = vld [vmem:[#allocation3 + $0x48] sm:$0xff]
    %v1057 = vld [vmem:[#allocation3 + $0x50] sm:$0xff]
    %v1058 = vld [vmem:[#allocation3 + $0x58] sm:$0xff]
    %v1059 = vld [vmem:[#allocation3 + $0x60] sm:$0xff]
    %v1060 = vld [vmem:[#allocation3 + $0x68] sm:$0xff]
    %v1061 = vld [vmem:[#allocation3 + $0x70] sm:$0xff]
    %v1062 = vld [vmem:[#allocation3 + $0x78] sm:$0xff]
    %v1063 = vld [vmem:[#allocation3 + $0x80] sm:$0xff]
    %v1064 = vld [vmem:[#allocation3 + $0x88] sm:$0xff]
    %v1065 = vld [vmem:[#allocation3 + $0x90] sm:$0xff]
    %v1066 = vld [vmem:[#allocation3 + $0x98] sm:$0xff]
    %v1067 = vld [vmem:[#allocation3 + $0xa0] sm:$0xff]
    %v1068 = vld [vmem:[#allocation3 + $0xa8] sm:$0xff]
    %v1069 = vld [vmem:[#allocation3 + $0xb0] sm:$0xff]
    %v1070 = vld [vmem:[#allocation3 + $0xb8] sm:$0xff]
    %v1071 = vld [vmem:[#allocation3 + $0xc0] sm:$0xff]
    %v1072 = vld [vmem:[#allocation3 + $0xc8] sm:$0xff]
    %v1073 = vld [vmem:[#allocation3 + $0xd0] sm:$0xff]
    %v1074 = vld [vmem:[#allocation3 + $0xd8] sm:$0xff]
    %v1075 = vld [vmem:[#allocation3 + $0xe0] sm:$0xff]
    %v1076 = vld [vmem:[#allocation3 + $0xe8] sm:$0xff]
    %v1077 = vld [vmem:[#allocation3 + $0xf0] sm:$0xff]
    %v1078 = vld [vmem:[#allocation3 + $0xf8] sm:$0xff]
    %v1079 = vld [vmem:[#allocation3 + $0x100] sm:$0xff]
    %v1080 = vld [vmem:[#allocation3 + $0x108] sm:$0xff]
    %v1081 = vld [vmem:[#allocation3 + $0x110] sm:$0xff]
    %v1082 = vld [vmem:[#allocation3 + $0x118] sm:$0xff]
    %v1083 = vld [vmem:[#allocation3 + $0x120] sm:$0xff]
    %v1084 = vld [vmem:[#allocation3 + $0x128] sm:$0xff]
    %v1085 = vld [vmem:[#allocation3 + $0x130] sm:$0xff]
    %v1086 = vld [vmem:[#allocation3 + $0x138] sm:$0xff]
    %v1087 = vld [vmem:[#allocation3 + $0x140] sm:$0xff]
    %v1088 = vld [vmem:[#allocation3 + $0x148] sm:$0xff]
    %v1089 = vld [vmem:[#allocation3 + $0x150] sm:$0xff]
    %v1090 = vld [vmem:[#allocation3 + $0x158] sm:$0xff]
    %v1091 = vld [vmem:[#allocation3 + $0x160] sm:$0xff]
    %v1092 = vld [vmem:[#allocation3 + $0x168] sm:$0xff]
    %v1093 = vld [vmem:[#allocation3 + $0x170] sm:$0xff]
    %v1094 = vld [vmem:[#allocation3 + $0x178] sm:$0xff]
    %v1095 = vld [vmem:[%s5] sm:$0x7]
    %v1097 = vlaneseq
    %v1098 = vshrl.u32 %v1097, 7
    %v1099 = vsub.s32 0, %v1098
    %v1100 = vrot.slane %v1095, %v1099
    %v1101 = vlaneseq
    %v1102 = vshrl.u32 %v1101, 7
    %v1103 = vsub.s32 1, %v1102
    %v1104 = vrot.slane %v1095, %v1103
    %v1105 = vlaneseq
    %v1106 = vshrl.u32 %v1105, 7
    %v1107 = vsub.s32 2, %v1106
    %v1108 = vrot.slane %v1095, %v1107
    %1112 = vmatprep.subr.mxu0 %v1093
    %1113 = vmatpush1.msra.mxu0 %v1092
    %1114 = vmatprep.subr.mxu0 %v1090
    %1115 = vmatpush1.msra.mxu0 %v1089
    %1116 = vmatprep.subr.mxu0 %v1087
    %1117 = vmatpush1.msra.mxu0 %v1086
    %1118 = vmatprep.subr.mxu0 %v1084
    %1119 = vmatpush1.msra.mxu0 %v1083
    %1120 = vmatprep.subr.mxu0 %v1081
    %1121 = vmatpush1.msra.mxu0 %v1080
    %1122 = vmatprep.subr.mxu0 %v1078
    %1123 = vmatpush1.msra.mxu0 %v1077
    %1124 = vmatprep.subr.mxu0 %v1075
    %1125 = vmatpush1.msra.mxu0 %v1074
    %1126 = vmatprep.subr.mxu0 %v1072
    %1127 = vmatpush1.msra.mxu0 %v1071
    %1128 = vmatprep.subr.mxu0 %v1069
    %1129 = vmatpush1.msra.mxu0 %v1068
    %1130 = vmatprep.subr.mxu0 %v1066
    %1131 = vmatpush1.msra.mxu0 %v1065
    %1132 = vmatprep.subr.mxu0 %v1063
    %1133 = vmatpush1.msra.mxu0 %v1062
    %1134 = vmatprep.subr.mxu0 %v1060
    %1135 = vmatpush1.msra.mxu0 %v1059
    %1136 = vmatprep.subr.mxu0 %v1057
    %1137 = vmatpush1.msra.mxu0 %v1056
    %1138 = vmatprep.subr.mxu0 %v1054
    %1139 = vmatpush1.msra.mxu0 %v1053
    %1140 = vmatprep.subr.mxu0 %v1051
    %1141 = vmatpush1.msra.mxu0 %v1050
    %1142 = vmatprep.subr.mxu0 %v1048
    %1143 = vmatpush1.msra.mxu0 %v1047
    %1144 = vmatprep.subr.mxu0 0.0
    %1145 = vmatpush2.msra.mxu0 0.0
    %1146 = vmatprep.subr.mxu0 0.0
    %1147 = vmatpush2.msra.mxu0 0.0
    %1148 = vmatprep.subr.mxu0 0.0
    %1149 = vmatpush2.msra.mxu0 0.0
    %1150 = vmatprep.subr.mxu0 0.0
    %1151 = vmatpush2.msra.mxu0 0.0
    %1152 = vmatprep.subr.mxu0 0.0
    %1153 = vmatpush2.msra.mxu0 0.0
    %1154 = vmatprep.subr.mxu0 0.0
    %1155 = vmatpush2.msra.mxu0 0.0
    %1156 = vmatprep.subr.mxu0 0.0
    %1157 = vmatpush2.msra.mxu0 0.0
    %1158 = vmatprep.subr.mxu0 0.0
    %1159 = vmatpush2.msra.mxu0 0.0
    %1160 = vmatprep.subr.mxu0 0.0
    %1161 = vmatpush2.msra.mxu0 0.0
    %1162 = vmatprep.subr.mxu0 0.0
    %1163 = vmatpush2.msra.mxu0 0.0
    %1164 = vmatprep.subr.mxu0 0.0
    %1165 = vmatpush2.msra.mxu0 0.0
    %1166 = vmatprep.subr.mxu0 0.0
    %1167 = vmatpush2.msra.mxu0 0.0
    %1168 = vmatprep.subr.mxu0 0.0
    %1169 = vmatpush2.msra.mxu0 0.0
    %1170 = vmatprep.subr.mxu0 0.0
    %1171 = vmatpush2.msra.mxu0 0.0
    %1172 = vmatprep.subr.mxu0 0.0
    %1173 = vmatpush2.msra.mxu0 0.0
    %1174 = vmatprep.subr.mxu0 0.0
    %1175 = vmatpush2.msra.mxu0 0.0
    %1176 = vmatprep.mubr.f32.mxu0 0.0
    %1177 = vmatmul.mubr.f32.gmra.mxu0 %v1045
    %v1178 = vpop.f32.mrf.mxu0
    %v1179 = vadd.f32 %v1100, %v1178
    %v1180 = vpop.f32.mrf.mxu0
    %v1181 = vadd.f32 %v1104, %v1180
    %1182 = vdwg.mxu0
    %1183 = vmatprep.subr.mxu0 0.0
    %1184 = vmatpush1.msra.mxu0 %v1094
    %1185 = vmatprep.subr.mxu0 0.0
    %1186 = vmatpush1.msra.mxu0 %v1091
    %1187 = vmatprep.subr.mxu0 0.0
    %1188 = vmatpush1.msra.mxu0 %v1088
    %1189 = vmatprep.subr.mxu0 0.0
    %1190 = vmatpush1.msra.mxu0 %v1085
    %1191 = vmatprep.subr.mxu0 0.0
    %1192 = vmatpush1.msra.mxu0 %v1082
    %1193 = vmatprep.subr.mxu0 0.0
    %1194 = vmatpush1.msra.mxu0 %v1079
    %1195 = vmatprep.subr.mxu0 0.0
    %1196 = vmatpush1.msra.mxu0 %v1076
    %1197 = vmatprep.subr.mxu0 0.0
    %1198 = vmatpush1.msra.mxu0 %v1073
    %1199 = vmatprep.subr.mxu0 0.0
    %1200 = vmatpush1.msra.mxu0 %v1070
    %1201 = vmatprep.subr.mxu0 0.0
    %1202 = vmatpush1.msra.mxu0 %v1067
    %1203 = vmatprep.subr.mxu0 0.0
    %1204 = vmatpush1.msra.mxu0 %v1064
    %1205 = vmatprep.subr.mxu0 0.0
    %1206 = vmatpush1.msra.mxu0 %v1061
    %1207 = vmatprep.subr.mxu0 0.0
    %1208 = vmatpush1.msra.mxu0 %v1058
    %1209 = vmatprep.subr.mxu0 0.0
    %1210 = vmatpush1.msra.mxu0 %v1055
    %1211 = vmatprep.subr.mxu0 0.0
    %1212 = vmatpush1.msra.mxu0 %v1052
    %1213 = vmatprep.subr.mxu0 0.0
    %1214 = vmatpush1.msra.mxu0 %v1049
    %1215 = vmatprep.subr.mxu0 0.0
    %1216 = vmatpush2.msra.mxu0 0.0
    %1217 = vmatprep.subr.mxu0 0.0
    %1218 = vmatpush2.msra.mxu0 0.0
    %1219 = vmatprep.subr.mxu0 0.0
    %1220 = vmatpush2.msra.mxu0 0.0
    %1221 = vmatprep.subr.mxu0 0.0
    %1222 = vmatpush2.msra.mxu0 0.0
    %1223 = vmatprep.subr.mxu0 0.0
    %1224 = vmatpush2.msra.mxu0 0.0
    %1225 = vmatprep.subr.mxu0 0.0
    %1226 = vmatpush2.msra.mxu0 0.0
    %1227 = vmatprep.subr.mxu0 0.0
    %1228 = vmatpush2.msra.mxu0 0.0
    %1229 = vmatprep.subr.mxu0 0.0
    %1230 = vmatpush2.msra.mxu0 0.0
    %1231 = vmatprep.subr.mxu0 0.0
    %1232 = vmatpush2.msra.mxu0 0.0
    %1233 = vmatprep.subr.mxu0 0.0
    %1234 = vmatpush2.msra.mxu0 0.0
    %1235 = vmatprep.subr.mxu0 0.0
    %1236 = vmatpush2.msra.mxu0 0.0
    %1237 = vmatprep.subr.mxu0 0.0
    %1238 = vmatpush2.msra.mxu0 0.0
    %1239 = vmatprep.subr.mxu0 0.0
    %1240 = vmatpush2.msra.mxu0 0.0
    %1241 = vmatprep.subr.mxu0 0.0
    %1242 = vmatpush2.msra.mxu0 0.0
    %1243 = vmatprep.subr.mxu0 0.0
    %1244 = vmatpush2.msra.mxu0 0.0
    %1245 = vmatprep.subr.mxu0 0.0
    %1246 = vmatpush2.msra.mxu0 0.0
    %1247 = vmatprep.mubr.f32.mxu0 0.0
    %1248 = vmatmul.mubr.f32.gmra.mxu0 %v1045
    %v1249 = vpop.f32.mrf.mxu0
    %v1250 = vadd.f32 %v1108, %v1249
    %v1251 = vpop.f32.mrf.mxu0
    %1252 = vdwg.mxu0
    %v1253 = vadd.f32 %v229, %v1179
    %v1254 = vxor.u32 %v1253, 2147483648
    %v1255 = vmul.f32 %v1254, 1.442695
    %v1256 = vpow.pop %v1255
    %v1257 = vadd.f32 %v1256, 1.0
    %v1258 = vrcp.pop %v1257
    %v1259 = vmul.f32 1.0, %v1258
    %v1260 = vadd.f32 %v231, %v1181
    %v1261 = vxor.u32 %v1260, 2147483648
    %v1262 = vmul.f32 %v1261, 1.442695
    %v1263 = vpow.pop %v1262
    %v1264 = vadd.f32 %v1263, 1.0
    %v1265 = vrcp.pop %v1264
    %v1266 = vmul.f32 1.0, %v1265
    %v1267 = vmul.f32 %v1259, %v1250
    %v1268 = vadd.f32 %v339, %v1267
    %v1269 = vtanh.pop %v1268
    %v1270 = vsub.f32 1.0, %v1266
    %v1271 = vmul.f32 %v1270, %v1269
    %v1272 = vmul.f32 %v1266, %v1045
    %v1273 = vadd.f32 %v1271, %v1272
    %1274 = vst [vmem:[#allocation2 + $0x18] sm:$0xff] %v1273
    %v1275 = vld [vmem:[#allocation3] sm:$0xff]
    %v1276 = vld [vmem:[#allocation3 + $0x8] sm:$0xff]
    %v1277 = vld [vmem:[#allocation3 + $0x10] sm:$0xff]
    %v1278 = vld [vmem:[#allocation3 + $0x18] sm:$0xff]
    %v1279 = vld [vmem:[#allocation3 + $0x20] sm:$0xff]
    %v1280 = vld [vmem:[#allocation3 + $0x28] sm:$0xff]
    %v1281 = vld [vmem:[#allocation3 + $0x30] sm:$0xff]
    %v1282 = vld [vmem:[#allocation3 + $0x38] sm:$0xff]
    %v1283 = vld [vmem:[#allocation3 + $0x40] sm:$0xff]
    %v1284 = vld [vmem:[#allocation3 + $0x48] sm:$0xff]
    %v1285 = vld [vmem:[#allocation3 + $0x50] sm:$0xff]
    %v1286 = vld [vmem:[#allocation3 + $0x58] sm:$0xff]
    %v1287 = vld [vmem:[#allocation3 + $0x60] sm:$0xff]
    %v1288 = vld [vmem:[#allocation3 + $0x68] sm:$0xff]
    %v1289 = vld [vmem:[#allocation3 + $0x70] sm:$0xff]
    %v1290 = vld [vmem:[#allocation3 + $0x78] sm:$0xff]
    %v1291 = vld [vmem:[#allocation3 + $0x80] sm:$0xff]
    %v1292 = vld [vmem:[#allocation3 + $0x88] sm:$0xff]
    %v1293 = vld [vmem:[#allocation3 + $0x90] sm:$0xff]
    %v1294 = vld [vmem:[#allocation3 + $0x98] sm:$0xff]
    %v1295 = vld [vmem:[#allocation3 + $0xa0] sm:$0xff]
    %v1296 = vld [vmem:[#allocation3 + $0xa8] sm:$0xff]
    %v1297 = vld [vmem:[#allocation3 + $0xb0] sm:$0xff]
    %v1298 = vld [vmem:[#allocation3 + $0xb8] sm:$0xff]
    %v1299 = vld [vmem:[#allocation3 + $0xc0] sm:$0xff]
    %v1300 = vld [vmem:[#allocation3 + $0xc8] sm:$0xff]
    %v1301 = vld [vmem:[#allocation3 + $0xd0] sm:$0xff]
    %v1302 = vld [vmem:[#allocation3 + $0xd8] sm:$0xff]
    %v1303 = vld [vmem:[#allocation3 + $0xe0] sm:$0xff]
    %v1304 = vld [vmem:[#allocation3 + $0xe8] sm:$0xff]
    %v1305 = vld [vmem:[#allocation3 + $0xf0] sm:$0xff]
    %v1306 = vld [vmem:[#allocation3 + $0xf8] sm:$0xff]
    %v1307 = vld [vmem:[#allocation3 + $0x100] sm:$0xff]
    %v1308 = vld [vmem:[#allocation3 + $0x108] sm:$0xff]
    %v1309 = vld [vmem:[#allocation3 + $0x110] sm:$0xff]
    %v1310 = vld [vmem:[#allocation3 + $0x118] sm:$0xff]
    %v1311 = vld [vmem:[#allocation3 + $0x120] sm:$0xff]
    %v1312 = vld [vmem:[#allocation3 + $0x128] sm:$0xff]
    %v1313 = vld [vmem:[#allocation3 + $0x130] sm:$0xff]
    %v1314 = vld [vmem:[#allocation3 + $0x138] sm:$0xff]
    %v1315 = vld [vmem:[#allocation3 + $0x140] sm:$0xff]
    %v1316 = vld [vmem:[#allocation3 + $0x148] sm:$0xff]
    %v1317 = vld [vmem:[#allocation3 + $0x150] sm:$0xff]
    %v1318 = vld [vmem:[#allocation3 + $0x158] sm:$0xff]
    %v1319 = vld [vmem:[#allocation3 + $0x160] sm:$0xff]
    %v1320 = vld [vmem:[#allocation3 + $0x168] sm:$0xff]
    %v1321 = vld [vmem:[#allocation3 + $0x170] sm:$0xff]
    %v1322 = vld [vmem:[#allocation3 + $0x178] sm:$0xff]
    %v1323 = vld [vmem:[%s5] sm:$0x7]
    %v1325 = vlaneseq
    %v1326 = vshrl.u32 %v1325, 7
    %v1327 = vsub.s32 0, %v1326
    %v1328 = vrot.slane %v1323, %v1327
    %v1329 = vlaneseq
    %v1330 = vshrl.u32 %v1329, 7
    %v1331 = vsub.s32 1, %v1330
    %v1332 = vrot.slane %v1323, %v1331
    %v1333 = vlaneseq
    %v1334 = vshrl.u32 %v1333, 7
    %v1335 = vsub.s32 2, %v1334
    %v1336 = vrot.slane %v1323, %v1335
    %1340 = vmatprep.subr.mxu0 %v1321
    %1341 = vmatpush1.msra.mxu0 %v1320
    %1342 = vmatprep.subr.mxu0 %v1318
    %1343 = vmatpush1.msra.mxu0 %v1317
    %1344 = vmatprep.subr.mxu0 %v1315
    %1345 = vmatpush1.msra.mxu0 %v1314
    %1346 = vmatprep.subr.mxu0 %v1312
    %1347 = vmatpush1.msra.mxu0 %v1311
    %1348 = vmatprep.subr.mxu0 %v1309
    %1349 = vmatpush1.msra.mxu0 %v1308
    %1350 = vmatprep.subr.mxu0 %v1306
    %1351 = vmatpush1.msra.mxu0 %v1305
    %1352 = vmatprep.subr.mxu0 %v1303
    %1353 = vmatpush1.msra.mxu0 %v1302
    %1354 = vmatprep.subr.mxu0 %v1300
    %1355 = vmatpush1.msra.mxu0 %v1299
    %1356 = vmatprep.subr.mxu0 %v1297
    %1357 = vmatpush1.msra.mxu0 %v1296
    %1358 = vmatprep.subr.mxu0 %v1294
    %1359 = vmatpush1.msra.mxu0 %v1293
    %1360 = vmatprep.subr.mxu0 %v1291
    %1361 = vmatpush1.msra.mxu0 %v1290
    %1362 = vmatprep.subr.mxu0 %v1288
    %1363 = vmatpush1.msra.mxu0 %v1287
    %1364 = vmatprep.subr.mxu0 %v1285
    %1365 = vmatpush1.msra.mxu0 %v1284
    %1366 = vmatprep.subr.mxu0 %v1282
    %1367 = vmatpush1.msra.mxu0 %v1281
    %1368 = vmatprep.subr.mxu0 %v1279
    %1369 = vmatpush1.msra.mxu0 %v1278
    %1370 = vmatprep.subr.mxu0 %v1276
    %1371 = vmatpush1.msra.mxu0 %v1275
    %1372 = vmatprep.subr.mxu0 0.0
    %1373 = vmatpush2.msra.mxu0 0.0
    %1374 = vmatprep.subr.mxu0 0.0
    %1375 = vmatpush2.msra.mxu0 0.0
    %1376 = vmatprep.subr.mxu0 0.0
    %1377 = vmatpush2.msra.mxu0 0.0
    %1378 = vmatprep.subr.mxu0 0.0
    %1379 = vmatpush2.msra.mxu0 0.0
    %1380 = vmatprep.subr.mxu0 0.0
    %1381 = vmatpush2.msra.mxu0 0.0
    %1382 = vmatprep.subr.mxu0 0.0
    %1383 = vmatpush2.msra.mxu0 0.0
    %1384 = vmatprep.subr.mxu0 0.0
    %1385 = vmatpush2.msra.mxu0 0.0
    %1386 = vmatprep.subr.mxu0 0.0
    %1387 = vmatpush2.msra.mxu0 0.0
    %1388 = vmatprep.subr.mxu0 0.0
    %1389 = vmatpush2.msra.mxu0 0.0
    %1390 = vmatprep.subr.mxu0 0.0
    %1391 = vmatpush2.msra.mxu0 0.0
    %1392 = vmatprep.subr.mxu0 0.0
    %1393 = vmatpush2.msra.mxu0 0.0
    %1394 = vmatprep.subr.mxu0 0.0
    %1395 = vmatpush2.msra.mxu0 0.0
    %1396 = vmatprep.subr.mxu0 0.0
    %1397 = vmatpush2.msra.mxu0 0.0
    %1398 = vmatprep.subr.mxu0 0.0
    %1399 = vmatpush2.msra.mxu0 0.0
    %1400 = vmatprep.subr.mxu0 0.0
    %1401 = vmatpush2.msra.mxu0 0.0
    %1402 = vmatprep.subr.mxu0 0.0
    %1403 = vmatpush2.msra.mxu0 0.0
    %1404 = vmatprep.mubr.f32.mxu0 0.0
    %1405 = vmatmul.mubr.f32.gmra.mxu0 %v1273
    %v1406 = vpop.f32.mrf.mxu0
    %v1407 = vadd.f32 %v1328, %v1406
    %v1408 = vpop.f32.mrf.mxu0
    %v1409 = vadd.f32 %v1332, %v1408
    %1410 = vdwg.mxu0
    %1411 = vmatprep.subr.mxu0 0.0
    %1412 = vmatpush1.msra.mxu0 %v1322
    %1413 = vmatprep.subr.mxu0 0.0
    %1414 = vmatpush1.msra.mxu0 %v1319
    %1415 = vmatprep.subr.mxu0 0.0
    %1416 = vmatpush1.msra.mxu0 %v1316
    %1417 = vmatprep.subr.mxu0 0.0
    %1418 = vmatpush1.msra.mxu0 %v1313
    %1419 = vmatprep.subr.mxu0 0.0
    %1420 = vmatpush1.msra.mxu0 %v1310
    %1421 = vmatprep.subr.mxu0 0.0
    %1422 = vmatpush1.msra.mxu0 %v1307
    %1423 = vmatprep.subr.mxu0 0.0
    %1424 = vmatpush1.msra.mxu0 %v1304
    %1425 = vmatprep.subr.mxu0 0.0
    %1426 = vmatpush1.msra.mxu0 %v1301
    %1427 = vmatprep.subr.mxu0 0.0
    %1428 = vmatpush1.msra.mxu0 %v1298
    %1429 = vmatprep.subr.mxu0 0.0
    %1430 = vmatpush1.msra.mxu0 %v1295
    %1431 = vmatprep.subr.mxu0 0.0
    %1432 = vmatpush1.msra.mxu0 %v1292
    %1433 = vmatprep.subr.mxu0 0.0
    %1434 = vmatpush1.msra.mxu0 %v1289
    %1435 = vmatprep.subr.mxu0 0.0
    %1436 = vmatpush1.msra.mxu0 %v1286
    %1437 = vmatprep.subr.mxu0 0.0
    %1438 = vmatpush1.msra.mxu0 %v1283
    %1439 = vmatprep.subr.mxu0 0.0
    %1440 = vmatpush1.msra.mxu0 %v1280
    %1441 = vmatprep.subr.mxu0 0.0
    %1442 = vmatpush1.msra.mxu0 %v1277
    %1443 = vmatprep.subr.mxu0 0.0
    %1444 = vmatpush2.msra.mxu0 0.0
    %1445 = vmatprep.subr.mxu0 0.0
    %1446 = vmatpush2.msra.mxu0 0.0
    %1447 = vmatprep.subr.mxu0 0.0
    %1448 = vmatpush2.msra.mxu0 0.0
    %1449 = vmatprep.subr.mxu0 0.0
    %1450 = vmatpush2.msra.mxu0 0.0
    %1451 = vmatprep.subr.mxu0 0.0
    %1452 = vmatpush2.msra.mxu0 0.0
    %1453 = vmatprep.subr.mxu0 0.0
    %1454 = vmatpush2.msra.mxu0 0.0
    %1455 = vmatprep.subr.mxu0 0.0
    %1456 = vmatpush2.msra.mxu0 0.0
    %1457 = vmatprep.subr.mxu0 0.0
    %1458 = vmatpush2.msra.mxu0 0.0
    %1459 = vmatprep.subr.mxu0 0.0
    %1460 = vmatpush2.msra.mxu0 0.0
    %1461 = vmatprep.subr.mxu0 0.0
    %1462 = vmatpush2.msra.mxu0 0.0
    %1463 = vmatprep.subr.mxu0 0.0
    %1464 = vmatpush2.msra.mxu0 0.0
    %1465 = vmatprep.subr.mxu0 0.0
    %1466 = vmatpush2.msra.mxu0 0.0
    %1467 = vmatprep.subr.mxu0 0.0
    %1468 = vmatpush2.msra.mxu0 0.0
    %1469 = vmatprep.subr.mxu0 0.0
    %1470 = vmatpush2.msra.mxu0 0.0
    %1471 = vmatprep.subr.mxu0 0.0
    %1472 = vmatpush2.msra.mxu0 0.0
    %1473 = vmatprep.subr.mxu0 0.0
    %1474 = vmatpush2.msra.mxu0 0.0
    %1475 = vmatprep.mubr.f32.mxu0 0.0
    %1476 = vmatmul.mubr.f32.gmra.mxu0 %v1273
    %v1477 = vpop.f32.mrf.mxu0
    %v1478 = vadd.f32 %v1336, %v1477
    %v1479 = vpop.f32.mrf.mxu0
    %1480 = vdwg.mxu0
    %v1481 = vadd.f32 %v235, %v1407
    %v1482 = vxor.u32 %v1481, 2147483648
    %v1483 = vmul.f32 %v1482, 1.442695
    %v1484 = vpow.pop %v1483
    %v1485 = vadd.f32 %v1484, 1.0
    %v1486 = vrcp.pop %v1485
    %v1487 = vmul.f32 1.0, %v1486
    %v1488 = vadd.f32 %v237, %v1409
    %v1489 = vxor.u32 %v1488, 2147483648
    %v1490 = vmul.f32 %v1489, 1.442695
    %v1491 = vpow.pop %v1490
    %v1492 = vadd.f32 %v1491, 1.0
    %v1493 = vrcp.pop %v1492
    %v1494 = vmul.f32 1.0, %v1493
    %v1495 = vmul.f32 %v1487, %v1478
    %v1496 = vadd.f32 %v344, %v1495
    %v1497 = vtanh.pop %v1496
    %v1498 = vsub.f32 1.0, %v1494
    %v1499 = vmul.f32 %v1498, %v1497
    %v1500 = vmul.f32 %v1494, %v1273
    %v1501 = vadd.f32 %v1499, %v1500
    %1502 = vst [vmem:[#allocation2 + $0x20] sm:$0xff] %v1501
    %v1503 = vld [vmem:[#allocation3] sm:$0xff]
    %v1504 = vld [vmem:[#allocation3 + $0x8] sm:$0xff]
    %v1505 = vld [vmem:[#allocation3 + $0x10] sm:$0xff]
    %v1506 = vld [vmem:[#allocation3 + $0x18] sm:$0xff]
    %v1507 = vld [vmem:[#allocation3 + $0x20] sm:$0xff]
    %v1508 = vld [vmem:[#allocation3 + $0x28] sm:$0xff]
    %v1509 = vld [vmem:[#allocation3 + $0x30] sm:$0xff]
    %v1510 = vld [vmem:[#allocation3 + $0x38] sm:$0xff]
    %v1511 = vld [vmem:[#allocation3 + $0x40] sm:$0xff]
    %v1512 = vld [vmem:[#allocation3 + $0x48] sm:$0xff]
    %v1513 = vld [vmem:[#allocation3 + $0x50] sm:$0xff]
    %v1514 = vld [vmem:[#allocation3 + $0x58] sm:$0xff]
    %v1515 = vld [vmem:[#allocation3 + $0x60] sm:$0xff]
    %v1516 = vld [vmem:[#allocation3 + $0x68] sm:$0xff]
    %v1517 = vld [vmem:[#allocation3 + $0x70] sm:$0xff]
    %v1518 = vld [vmem:[#allocation3 + $0x78] sm:$0xff]
    %v1519 = vld [vmem:[#allocation3 + $0x80] sm:$0xff]
    %v1520 = vld [vmem:[#allocation3 + $0x88] sm:$0xff]
    %v1521 = vld [vmem:[#allocation3 + $0x90] sm:$0xff]
    %v1522 = vld [vmem:[#allocation3 + $0x98] sm:$0xff]
    %v1523 = vld [vmem:[#allocation3 + $0xa0] sm:$0xff]
    %v1524 = vld [vmem:[#allocation3 + $0xa8] sm:$0xff]
    %v1525 = vld [vmem:[#allocation3 + $0xb0] sm:$0xff]
    %v1526 = vld [vmem:[#allocation3 + $0xb8] sm:$0xff]
    %v1527 = vld [vmem:[#allocation3 + $0xc0] sm:$0xff]
    %v1528 = vld [vmem:[#allocation3 + $0xc8] sm:$0xff]
    %v1529 = vld [vmem:[#allocation3 + $0xd0] sm:$0xff]
    %v1530 = vld [vmem:[#allocation3 + $0xd8] sm:$0xff]
    %v1531 = vld [vmem:[#allocation3 + $0xe0] sm:$0xff]
    %v1532 = vld [vmem:[#allocation3 + $0xe8] sm:$0xff]
    %v1533 = vld [vmem:[#allocation3 + $0xf0] sm:$0xff]
    %v1534 = vld [vmem:[#allocation3 + $0xf8] sm:$0xff]
    %v1535 = vld [vmem:[#allocation3 + $0x100] sm:$0xff]
    %v1536 = vld [vmem:[#allocation3 + $0x108] sm:$0xff]
    %v1537 = vld [vmem:[#allocation3 + $0x110] sm:$0xff]
    %v1538 = vld [vmem:[#allocation3 + $0x118] sm:$0xff]
    %v1539 = vld [vmem:[#allocation3 + $0x120] sm:$0xff]
    %v1540 = vld [vmem:[#allocation3 + $0x128] sm:$0xff]
    %v1541 = vld [vmem:[#allocation3 + $0x130] sm:$0xff]
    %v1542 = vld [vmem:[#allocation3 + $0x138] sm:$0xff]
    %v1543 = vld [vmem:[#allocation3 + $0x140] sm:$0xff]
    %v1544 = vld [vmem:[#allocation3 + $0x148] sm:$0xff]
    %v1545 = vld [vmem:[#allocation3 + $0x150] sm:$0xff]
    %v1546 = vld [vmem:[#allocation3 + $0x158] sm:$0xff]
    %v1547 = vld [vmem:[#allocation3 + $0x160] sm:$0xff]
    %v1548 = vld [vmem:[#allocation3 + $0x168] sm:$0xff]
    %v1549 = vld [vmem:[#allocation3 + $0x170] sm:$0xff]
    %v1550 = vld [vmem:[#allocation3 + $0x178] sm:$0xff]
    %v1551 = vld [vmem:[%s5] sm:$0x7]
    %v1553 = vlaneseq
    %v1554 = vshrl.u32 %v1553, 7
    %v1555 = vsub.s32 0, %v1554
    %v1556 = vrot.slane %v1551, %v1555
    %v1557 = vlaneseq
    %v1558 = vshrl.u32 %v1557, 7
    %v1559 = vsub.s32 1, %v1558
    %v1560 = vrot.slane %v1551, %v1559
    %v1561 = vlaneseq
    %v1562 = vshrl.u32 %v1561, 7
    %v1563 = vsub.s32 2, %v1562
    %v1564 = vrot.slane %v1551, %v1563
    %1568 = vmatprep.subr.mxu0 %v1549
    %1569 = vmatpush1.msra.mxu0 %v1548
    %1570 = vmatprep.subr.mxu0 %v1546
    %1571 = vmatpush1.msra.mxu0 %v1545
    %1572 = vmatprep.subr.mxu0 %v1543
    %1573 = vmatpush1.msra.mxu0 %v1542
    %1574 = vmatprep.subr.mxu0 %v1540
    %1575 = vmatpush1.msra.mxu0 %v1539
    %1576 = vmatprep.subr.mxu0 %v1537
    %1577 = vmatpush1.msra.mxu0 %v1536
    %1578 = vmatprep.subr.mxu0 %v1534
    %1579 = vmatpush1.msra.mxu0 %v1533
    %1580 = vmatprep.subr.mxu0 %v1531
    %1581 = vmatpush1.msra.mxu0 %v1530
    %1582 = vmatprep.subr.mxu0 %v1528
    %1583 = vmatpush1.msra.mxu0 %v1527
    %1584 = vmatprep.subr.mxu0 %v1525
    %1585 = vmatpush1.msra.mxu0 %v1524
    %1586 = vmatprep.subr.mxu0 %v1522
    %1587 = vmatpush1.msra.mxu0 %v1521
    %1588 = vmatprep.subr.mxu0 %v1519
    %1589 = vmatpush1.msra.mxu0 %v1518
    %1590 = vmatprep.subr.mxu0 %v1516
    %1591 = vmatpush1.msra.mxu0 %v1515
    %1592 = vmatprep.subr.mxu0 %v1513
    %1593 = vmatpush1.msra.mxu0 %v1512
    %1594 = vmatprep.subr.mxu0 %v1510
    %1595 = vmatpush1.msra.mxu0 %v1509
    %1596 = vmatprep.subr.mxu0 %v1507
    %1597 = vmatpush1.msra.mxu0 %v1506
    %1598 = vmatprep.subr.mxu0 %v1504
    %1599 = vmatpush1.msra.mxu0 %v1503
    %1600 = vmatprep.subr.mxu0 0.0
    %1601 = vmatpush2.msra.mxu0 0.0
    %1602 = vmatprep.subr.mxu0 0.0
    %1603 = vmatpush2.msra.mxu0 0.0
    %1604 = vmatprep.subr.mxu0 0.0
    %1605 = vmatpush2.msra.mxu0 0.0
    %1606 = vmatprep.subr.mxu0 0.0
    %1607 = vmatpush2.msra.mxu0 0.0
    %1608 = vmatprep.subr.mxu0 0.0
    %1609 = vmatpush2.msra.mxu0 0.0
    %1610 = vmatprep.subr.mxu0 0.0
    %1611 = vmatpush2.msra.mxu0 0.0
    %1612 = vmatprep.subr.mxu0 0.0
    %1613 = vmatpush2.msra.mxu0 0.0
    %1614 = vmatprep.subr.mxu0 0.0
    %1615 = vmatpush2.msra.mxu0 0.0
    %1616 = vmatprep.subr.mxu0 0.0
    %1617 = vmatpush2.msra.mxu0 0.0
    %1618 = vmatprep.subr.mxu0 0.0
    %1619 = vmatpush2.msra.mxu0 0.0
    %1620 = vmatprep.subr.mxu0 0.0
    %1621 = vmatpush2.msra.mxu0 0.0
    %1622 = vmatprep.subr.mxu0 0.0
    %1623 = vmatpush2.msra.mxu0 0.0
    %1624 = vmatprep.subr.mxu0 0.0
    %1625 = vmatpush2.msra.mxu0 0.0
    %1626 = vmatprep.subr.mxu0 0.0
    %1627 = vmatpush2.msra.mxu0 0.0
    %1628 = vmatprep.subr.mxu0 0.0
    %1629 = vmatpush2.msra.mxu0 0.0
    %1630 = vmatprep.subr.mxu0 0.0
    %1631 = vmatpush2.msra.mxu0 0.0
    %1632 = vmatprep.mubr.f32.mxu0 0.0
    %1633 = vmatmul.mubr.f32.gmra.mxu0 %v1501
    %v1634 = vpop.f32.mrf.mxu0
    %v1635 = vadd.f32 %v1556, %v1634
    %v1636 = vpop.f32.mrf.mxu0
    %v1637 = vadd.f32 %v1560, %v1636
    %1638 = vdwg.mxu0
    %1639 = vmatprep.subr.mxu0 0.0
    %1640 = vmatpush1.msra.mxu0 %v1550
    %1641 = vmatprep.subr.mxu0 0.0
    %1642 = vmatpush1.msra.mxu0 %v1547
    %1643 = vmatprep.subr.mxu0 0.0
    %1644 = vmatpush1.msra.mxu0 %v1544
    %1645 = vmatprep.subr.mxu0 0.0
    %1646 = vmatpush1.msra.mxu0 %v1541
    %1647 = vmatprep.subr.mxu0 0.0
    %1648 = vmatpush1.msra.mxu0 %v1538
    %1649 = vmatprep.subr.mxu0 0.0
    %1650 = vmatpush1.msra.mxu0 %v1535
    %1651 = vmatprep.subr.mxu0 0.0
    %1652 = vmatpush1.msra.mxu0 %v1532
    %1653 = vmatprep.subr.mxu0 0.0
    %1654 = vmatpush1.msra.mxu0 %v1529
    %1655 = vmatprep.subr.mxu0 0.0
    %1656 = vmatpush1.msra.mxu0 %v1526
    %1657 = vmatprep.subr.mxu0 0.0
    %1658 = vmatpush1.msra.mxu0 %v1523
    %1659 = vmatprep.subr.mxu0 0.0
    %1660 = vmatpush1.msra.mxu0 %v1520
    %1661 = vmatprep.subr.mxu0 0.0
    %1662 = vmatpush1.msra.mxu0 %v1517
    %1663 = vmatprep.subr.mxu0 0.0
    %1664 = vmatpush1.msra.mxu0 %v1514
    %1665 = vmatprep.subr.mxu0 0.0
    %1666 = vmatpush1.msra.mxu0 %v1511
    %1667 = vmatprep.subr.mxu0 0.0
    %1668 = vmatpush1.msra.mxu0 %v1508
    %1669 = vmatprep.subr.mxu0 0.0
    %1670 = vmatpush1.msra.mxu0 %v1505
    %1671 = vmatprep.subr.mxu0 0.0
    %1672 = vmatpush2.msra.mxu0 0.0
    %1673 = vmatprep.subr.mxu0 0.0
    %1674 = vmatpush2.msra.mxu0 0.0
    %1675 = vmatprep.subr.mxu0 0.0
    %1676 = vmatpush2.msra.mxu0 0.0
    %1677 = vmatprep.subr.mxu0 0.0
    %1678 = vmatpush2.msra.mxu0 0.0
    %1679 = vmatprep.subr.mxu0 0.0
    %1680 = vmatpush2.msra.mxu0 0.0
    %1681 = vmatprep.subr.mxu0 0.0
    %1682 = vmatpush2.msra.mxu0 0.0
    %1683 = vmatprep.subr.mxu0 0.0
    %1684 = vmatpush2.msra.mxu0 0.0
    %1685 = vmatprep.subr.mxu0 0.0
    %1686 = vmatpush2.msra.mxu0 0.0
    %1687 = vmatprep.subr.mxu0 0.0
    %1688 = vmatpush2.msra.mxu0 0.0
    %1689 = vmatprep.subr.mxu0 0.0
    %1690 = vmatpush2.msra.mxu0 0.0
    %1691 = vmatprep.subr.mxu0 0.0
    %1692 = vmatpush2.msra.mxu0 0.0
    %1693 = vmatprep.subr.mxu0 0.0
    %1694 = vmatpush2.msra.mxu0 0.0
    %1695 = vmatprep.subr.mxu0 0.0
    %1696 = vmatpush2.msra.mxu0 0.0
    %1697 = vmatprep.subr.mxu0 0.0
    %1698 = vmatpush2.msra.mxu0 0.0
    %1699 = vmatprep.subr.mxu0 0.0
    %1700 = vmatpush2.msra.mxu0 0.0
    %1701 = vmatprep.subr.mxu0 0.0
    %1702 = vmatpush2.msra.mxu0 0.0
    %1703 = vmatprep.mubr.f32.mxu0 0.0
    %1704 = vmatmul.mubr.f32.gmra.mxu0 %v1501
    %v1705 = vpop.f32.mrf.mxu0
    %v1706 = vadd.f32 %v1564, %v1705
    %v1707 = vpop.f32.mrf.mxu0
    %1708 = vdwg.mxu0
    %v1709 = vadd.f32 %v241, %v1635
    %v1710 = vxor.u32 %v1709, 2147483648
    %v1711 = vmul.f32 %v1710, 1.442695
    %v1712 = vpow.pop %v1711
    %v1713 = vadd.f32 %v1712, 1.0
    %v1714 = vrcp.pop %v1713
    %v1715 = vmul.f32 1.0, %v1714
    %v1716 = vadd.f32 %v243, %v1637
    %v1717 = vxor.u32 %v1716, 2147483648
    %v1718 = vmul.f32 %v1717, 1.442695
    %v1719 = vpow.pop %v1718
    %v1720 = vadd.f32 %v1719, 1.0
    %v1721 = vrcp.pop %v1720
    %v1722 = vmul.f32 1.0, %v1721
    %v1723 = vmul.f32 %v1715, %v1706
    %v1724 = vadd.f32 %v349, %v1723
    %v1725 = vtanh.pop %v1724
    %v1726 = vsub.f32 1.0, %v1722
    %v1727 = vmul.f32 %v1726, %v1725
    %v1728 = vmul.f32 %v1722, %v1501
    %v1729 = vadd.f32 %v1727, %v1728
    %1730 = vst [vmem:[#allocation2 + $0x28] sm:$0xff] %v1729
    %v1731 = vld [vmem:[#allocation3] sm:$0xff]
    %v1732 = vld [vmem:[#allocation3 + $0x8] sm:$0xff]
    %v1733 = vld [vmem:[#allocation3 + $0x10] sm:$0xff]
    %v1734 = vld [vmem:[#allocation3 + $0x18] sm:$0xff]
    %v1735 = vld [vmem:[#allocation3 + $0x20] sm:$0xff]
    %v1736 = vld [vmem:[#allocation3 + $0x28] sm:$0xff]
    %v1737 = vld [vmem:[#allocation3 + $0x30] sm:$0xff]
    %v1738 = vld [vmem:[#allocation3 + $0x38] sm:$0xff]
    %v1739 = vld [vmem:[#allocation3 + $0x40] sm:$0xff]
    %v1740 = vld [vmem:[#allocation3 + $0x48] sm:$0xff]
    %v1741 = vld [vmem:[#allocation3 + $0x50] sm:$0xff]
    %v1742 = vld [vmem:[#allocation3 + $0x58] sm:$0xff]
    %v1743 = vld [vmem:[#allocation3 + $0x60] sm:$0xff]
    %v1744 = vld [vmem:[#allocation3 + $0x68] sm:$0xff]
    %v1745 = vld [vmem:[#allocation3 + $0x70] sm:$0xff]
    %v1746 = vld [vmem:[#allocation3 + $0x78] sm:$0xff]
    %v1747 = vld [vmem:[#allocation3 + $0x80] sm:$0xff]
    %v1748 = vld [vmem:[#allocation3 + $0x88] sm:$0xff]
    %v1749 = vld [vmem:[#allocation3 + $0x90] sm:$0xff]
    %v1750 = vld [vmem:[#allocation3 + $0x98] sm:$0xff]
    %v1751 = vld [vmem:[#allocation3 + $0xa0] sm:$0xff]
    %v1752 = vld [vmem:[#allocation3 + $0xa8] sm:$0xff]
    %v1753 = vld [vmem:[#allocation3 + $0xb0] sm:$0xff]
    %v1754 = vld [vmem:[#allocation3 + $0xb8] sm:$0xff]
    %v1755 = vld [vmem:[#allocation3 + $0xc0] sm:$0xff]
    %v1756 = vld [vmem:[#allocation3 + $0xc8] sm:$0xff]
    %v1757 = vld [vmem:[#allocation3 + $0xd0] sm:$0xff]
    %v1758 = vld [vmem:[#allocation3 + $0xd8] sm:$0xff]
    %v1759 = vld [vmem:[#allocation3 + $0xe0] sm:$0xff]
    %v1760 = vld [vmem:[#allocation3 + $0xe8] sm:$0xff]
    %v1761 = vld [vmem:[#allocation3 + $0xf0] sm:$0xff]
    %v1762 = vld [vmem:[#allocation3 + $0xf8] sm:$0xff]
    %v1763 = vld [vmem:[#allocation3 + $0x100] sm:$0xff]
    %v1764 = vld [vmem:[#allocation3 + $0x108] sm:$0xff]
    %v1765 = vld [vmem:[#allocation3 + $0x110] sm:$0xff]
    %v1766 = vld [vmem:[#allocation3 + $0x118] sm:$0xff]
    %v1767 = vld [vmem:[#allocation3 + $0x120] sm:$0xff]
    %v1768 = vld [vmem:[#allocation3 + $0x128] sm:$0xff]
    %v1769 = vld [vmem:[#allocation3 + $0x130] sm:$0xff]
    %v1770 = vld [vmem:[#allocation3 + $0x138] sm:$0xff]
    %v1771 = vld [vmem:[#allocation3 + $0x140] sm:$0xff]
    %v1772 = vld [vmem:[#allocation3 + $0x148] sm:$0xff]
    %v1773 = vld [vmem:[#allocation3 + $0x150] sm:$0xff]
    %v1774 = vld [vmem:[#allocation3 + $0x158] sm:$0xff]
    %v1775 = vld [vmem:[#allocation3 + $0x160] sm:$0xff]
    %v1776 = vld [vmem:[#allocation3 + $0x168] sm:$0xff]
    %v1777 = vld [vmem:[#allocation3 + $0x170] sm:$0xff]
    %v1778 = vld [vmem:[#allocation3 + $0x178] sm:$0xff]
    %v1779 = vld [vmem:[%s5] sm:$0x7]
    %v1781 = vlaneseq
    %v1782 = vshrl.u32 %v1781, 7
    %v1783 = vsub.s32 0, %v1782
    %v1784 = vrot.slane %v1779, %v1783
    %v1785 = vlaneseq
    %v1786 = vshrl.u32 %v1785, 7
    %v1787 = vsub.s32 1, %v1786
    %v1788 = vrot.slane %v1779, %v1787
    %v1789 = vlaneseq
    %v1790 = vshrl.u32 %v1789, 7
    %v1791 = vsub.s32 2, %v1790
    %v1792 = vrot.slane %v1779, %v1791
    %1796 = vmatprep.subr.mxu0 %v1777
    %1797 = vmatpush1.msra.mxu0 %v1776
    %1798 = vmatprep.subr.mxu0 %v1774
    %1799 = vmatpush1.msra.mxu0 %v1773
    %1800 = vmatprep.subr.mxu0 %v1771
    %1801 = vmatpush1.msra.mxu0 %v1770
    %1802 = vmatprep.subr.mxu0 %v1768
    %1803 = vmatpush1.msra.mxu0 %v1767
    %1804 = vmatprep.subr.mxu0 %v1765
    %1805 = vmatpush1.msra.mxu0 %v1764
    %1806 = vmatprep.subr.mxu0 %v1762
    %1807 = vmatpush1.msra.mxu0 %v1761
    %1808 = vmatprep.subr.mxu0 %v1759
    %1809 = vmatpush1.msra.mxu0 %v1758
    %1810 = vmatprep.subr.mxu0 %v1756
    %1811 = vmatpush1.msra.mxu0 %v1755
    %1812 = vmatprep.subr.mxu0 %v1753
    %1813 = vmatpush1.msra.mxu0 %v1752
    %1814 = vmatprep.subr.mxu0 %v1750
    %1815 = vmatpush1.msra.mxu0 %v1749
    %1816 = vmatprep.subr.mxu0 %v1747
    %1817 = vmatpush1.msra.mxu0 %v1746
    %1818 = vmatprep.subr.mxu0 %v1744
    %1819 = vmatpush1.msra.mxu0 %v1743
    %1820 = vmatprep.subr.mxu0 %v1741
    %1821 = vmatpush1.msra.mxu0 %v1740
    %1822 = vmatprep.subr.mxu0 %v1738
    %1823 = vmatpush1.msra.mxu0 %v1737
    %1824 = vmatprep.subr.mxu0 %v1735
    %1825 = vmatpush1.msra.mxu0 %v1734
    %1826 = vmatprep.subr.mxu0 %v1732
    %1827 = vmatpush1.msra.mxu0 %v1731
    %1828 = vmatprep.subr.mxu0 0.0
    %1829 = vmatpush2.msra.mxu0 0.0
    %1830 = vmatprep.subr.mxu0 0.0
    %1831 = vmatpush2.msra.mxu0 0.0
    %1832 = vmatprep.subr.mxu0 0.0
    %1833 = vmatpush2.msra.mxu0 0.0
    %1834 = vmatprep.subr.mxu0 0.0
    %1835 = vmatpush2.msra.mxu0 0.0
    %1836 = vmatprep.subr.mxu0 0.0
    %1837 = vmatpush2.msra.mxu0 0.0
    %1838 = vmatprep.subr.mxu0 0.0
    %1839 = vmatpush2.msra.mxu0 0.0
    %1840 = vmatprep.subr.mxu0 0.0
    %1841 = vmatpush2.msra.mxu0 0.0
    %1842 = vmatprep.subr.mxu0 0.0
    %1843 = vmatpush2.msra.mxu0 0.0
    %1844 = vmatprep.subr.mxu0 0.0
    %1845 = vmatpush2.msra.mxu0 0.0
    %1846 = vmatprep.subr.mxu0 0.0
    %1847 = vmatpush2.msra.mxu0 0.0
    %1848 = vmatprep.subr.mxu0 0.0
    %1849 = vmatpush2.msra.mxu0 0.0
    %1850 = vmatprep.subr.mxu0 0.0
    %1851 = vmatpush2.msra.mxu0 0.0
    %1852 = vmatprep.subr.mxu0 0.0
    %1853 = vmatpush2.msra.mxu0 0.0
    %1854 = vmatprep.subr.mxu0 0.0
    %1855 = vmatpush2.msra.mxu0 0.0
    %1856 = vmatprep.subr.mxu0 0.0
    %1857 = vmatpush2.msra.mxu0 0.0
    %1858 = vmatprep.subr.mxu0 0.0
    %1859 = vmatpush2.msra.mxu0 0.0
    %1860 = vmatprep.mubr.f32.mxu0 0.0
    %1861 = vmatmul.mubr.f32.gmra.mxu0 %v1729
    %v1862 = vpop.f32.mrf.mxu0
    %v1863 = vadd.f32 %v1784, %v1862
    %v1864 = vpop.f32.mrf.mxu0
    %v1865 = vadd.f32 %v1788, %v1864
    %1866 = vdwg.mxu0
    %1867 = vmatprep.subr.mxu0 0.0
    %1868 = vmatpush1.msra.mxu0 %v1778
    %1869 = vmatprep.subr.mxu0 0.0
    %1870 = vmatpush1.msra.mxu0 %v1775
    %1871 = vmatprep.subr.mxu0 0.0
    %1872 = vmatpush1.msra.mxu0 %v1772
    %1873 = vmatprep.subr.mxu0 0.0
    %1874 = vmatpush1.msra.mxu0 %v1769
    %1875 = vmatprep.subr.mxu0 0.0
    %1876 = vmatpush1.msra.mxu0 %v1766
    %1877 = vmatprep.subr.mxu0 0.0
    %1878 = vmatpush1.msra.mxu0 %v1763
    %1879 = vmatprep.subr.mxu0 0.0
    %1880 = vmatpush1.msra.mxu0 %v1760
    %1881 = vmatprep.subr.mxu0 0.0
    %1882 = vmatpush1.msra.mxu0 %v1757
    %1883 = vmatprep.subr.mxu0 0.0
    %1884 = vmatpush1.msra.mxu0 %v1754
    %1885 = vmatprep.subr.mxu0 0.0
    %1886 = vmatpush1.msra.mxu0 %v1751
    %1887 = vmatprep.subr.mxu0 0.0
    %1888 = vmatpush1.msra.mxu0 %v1748
    %1889 = vmatprep.subr.mxu0 0.0
    %1890 = vmatpush1.msra.mxu0 %v1745
    %1891 = vmatprep.subr.mxu0 0.0
    %1892 = vmatpush1.msra.mxu0 %v1742
    %1893 = vmatprep.subr.mxu0 0.0
    %1894 = vmatpush1.msra.mxu0 %v1739
    %1895 = vmatprep.subr.mxu0 0.0
    %1896 = vmatpush1.msra.mxu0 %v1736
    %1897 = vmatprep.subr.mxu0 0.0
    %1898 = vmatpush1.msra.mxu0 %v1733
    %1899 = vmatprep.subr.mxu0 0.0
    %1900 = vmatpush2.msra.mxu0 0.0
    %1901 = vmatprep.subr.mxu0 0.0
    %1902 = vmatpush2.msra.mxu0 0.0
    %1903 = vmatprep.subr.mxu0 0.0
    %1904 = vmatpush2.msra.mxu0 0.0
    %1905 = vmatprep.subr.mxu0 0.0
    %1906 = vmatpush2.msra.mxu0 0.0
    %1907 = vmatprep.subr.mxu0 0.0
    %1908 = vmatpush2.msra.mxu0 0.0
    %1909 = vmatprep.subr.mxu0 0.0
    %1910 = vmatpush2.msra.mxu0 0.0
    %1911 = vmatprep.subr.mxu0 0.0
    %1912 = vmatpush2.msra.mxu0 0.0
    %1913 = vmatprep.subr.mxu0 0.0
    %1914 = vmatpush2.msra.mxu0 0.0
    %1915 = vmatprep.subr.mxu0 0.0
    %1916 = vmatpush2.msra.mxu0 0.0
    %1917 = vmatprep.subr.mxu0 0.0
    %1918 = vmatpush2.msra.mxu0 0.0
    %1919 = vmatprep.subr.mxu0 0.0
    %1920 = vmatpush2.msra.mxu0 0.0
    %1921 = vmatprep.subr.mxu0 0.0
    %1922 = vmatpush2.msra.mxu0 0.0
    %1923 = vmatprep.subr.mxu0 0.0
    %1924 = vmatpush2.msra.mxu0 0.0
    %1925 = vmatprep.subr.mxu0 0.0
    %1926 = vmatpush2.msra.mxu0 0.0
    %1927 = vmatprep.subr.mxu0 0.0
    %1928 = vmatpush2.msra.mxu0 0.0
    %1929 = vmatprep.subr.mxu0 0.0
    %1930 = vmatpush2.msra.mxu0 0.0
    %1931 = vmatprep.mubr.f32.mxu0 0.0
    %1932 = vmatmul.mubr.f32.gmra.mxu0 %v1729
    %v1933 = vpop.f32.mrf.mxu0
    %v1934 = vadd.f32 %v1792, %v1933
    %v1935 = vpop.f32.mrf.mxu0
    %1936 = vdwg.mxu0
    %v1937 = vadd.f32 %v247, %v1863
    %v1938 = vxor.u32 %v1937, 2147483648
    %v1939 = vmul.f32 %v1938, 1.442695
    %v1940 = vpow.pop %v1939
    %v1941 = vadd.f32 %v1940, 1.0
    %v1942 = vrcp.pop %v1941
    %v1943 = vmul.f32 1.0, %v1942
    %v1944 = vadd.f32 %v249, %v1865
    %v1945 = vxor.u32 %v1944, 2147483648
    %v1946 = vmul.f32 %v1945, 1.442695
    %v1947 = vpow.pop %v1946
    %v1948 = vadd.f32 %v1947, 1.0
    %v1949 = vrcp.pop %v1948
    %v1950 = vmul.f32 1.0, %v1949
    %v1951 = vmul.f32 %v1943, %v1934
    %v1952 = vadd.f32 %v354, %v1951
    %v1953 = vtanh.pop %v1952
    %v1954 = vsub.f32 1.0, %v1950
    %v1955 = vmul.f32 %v1954, %v1953
    %v1956 = vmul.f32 %v1950, %v1729
    %v1957 = vadd.f32 %v1955, %v1956
    %1958 = vst [vmem:[#allocation2 + $0x30] sm:$0xff] %v1957
    %v1959 = vld [vmem:[#allocation3] sm:$0xff]
    %v1960 = vld [vmem:[#allocation3 + $0x8] sm:$0xff]
    %v1961 = vld [vmem:[#allocation3 + $0x10] sm:$0xff]
    %v1962 = vld [vmem:[#allocation3 + $0x18] sm:$0xff]
    %v1963 = vld [vmem:[#allocation3 + $0x20] sm:$0xff]
    %v1964 = vld [vmem:[#allocation3 + $0x28] sm:$0xff]
    %v1965 = vld [vmem:[#allocation3 + $0x30] sm:$0xff]
    %v1966 = vld [vmem:[#allocation3 + $0x38] sm:$0xff]
    %v1967 = vld [vmem:[#allocation3 + $0x40] sm:$0xff]
    %v1968 = vld [vmem:[#allocation3 + $0x48] sm:$0xff]
    %v1969 = vld [vmem:[#allocation3 + $0x50] sm:$0xff]
    %v1970 = vld [vmem:[#allocation3 + $0x58] sm:$0xff]
    %v1971 = vld [vmem:[#allocation3 + $0x60] sm:$0xff]
    %v1972 = vld [vmem:[#allocation3 + $0x68] sm:$0xff]
    %v1973 = vld [vmem:[#allocation3 + $0x70] sm:$0xff]
    %v1974 = vld [vmem:[#allocation3 + $0x78] sm:$0xff]
    %v1975 = vld [vmem:[#allocation3 + $0x80] sm:$0xff]
    %v1976 = vld [vmem:[#allocation3 + $0x88] sm:$0xff]
    %v1977 = vld [vmem:[#allocation3 + $0x90] sm:$0xff]
    %v1978 = vld [vmem:[#allocation3 + $0x98] sm:$0xff]
    %v1979 = vld [vmem:[#allocation3 + $0xa0] sm:$0xff]
    %v1980 = vld [vmem:[#allocation3 + $0xa8] sm:$0xff]
    %v1981 = vld [vmem:[#allocation3 + $0xb0] sm:$0xff]
    %v1982 = vld [vmem:[#allocation3 + $0xb8] sm:$0xff]
    %v1983 = vld [vmem:[#allocation3 + $0xc0] sm:$0xff]
    %v1984 = vld [vmem:[#allocation3 + $0xc8] sm:$0xff]
    %v1985 = vld [vmem:[#allocation3 + $0xd0] sm:$0xff]
    %v1986 = vld [vmem:[#allocation3 + $0xd8] sm:$0xff]
    %v1987 = vld [vmem:[#allocation3 + $0xe0] sm:$0xff]
    %v1988 = vld [vmem:[#allocation3 + $0xe8] sm:$0xff]
    %v1989 = vld [vmem:[#allocation3 + $0xf0] sm:$0xff]
    %v1990 = vld [vmem:[#allocation3 + $0xf8] sm:$0xff]
    %v1991 = vld [vmem:[#allocation3 + $0x100] sm:$0xff]
    %v1992 = vld [vmem:[#allocation3 + $0x108] sm:$0xff]
    %v1993 = vld [vmem:[#allocation3 + $0x110] sm:$0xff]
    %v1994 = vld [vmem:[#allocation3 + $0x118] sm:$0xff]
    %v1995 = vld [vmem:[#allocation3 + $0x120] sm:$0xff]
    %v1996 = vld [vmem:[#allocation3 + $0x128] sm:$0xff]
    %v1997 = vld [vmem:[#allocation3 + $0x130] sm:$0xff]
    %v1998 = vld [vmem:[#allocation3 + $0x138] sm:$0xff]
    %v1999 = vld [vmem:[#allocation3 + $0x140] sm:$0xff]
    %v2000 = vld [vmem:[#allocation3 + $0x148] sm:$0xff]
    %v2001 = vld [vmem:[#allocation3 + $0x150] sm:$0xff]
    %v2002 = vld [vmem:[#allocation3 + $0x158] sm:$0xff]
    %v2003 = vld [vmem:[#allocation3 + $0x160] sm:$0xff]
    %v2004 = vld [vmem:[#allocation3 + $0x168] sm:$0xff]
    %v2005 = vld [vmem:[#allocation3 + $0x170] sm:$0xff]
    %v2006 = vld [vmem:[#allocation3 + $0x178] sm:$0xff]
    %v2007 = vld [vmem:[%s5] sm:$0x7]
    %v2009 = vlaneseq
    %v2010 = vshrl.u32 %v2009, 7
    %v2011 = vsub.s32 0, %v2010
    %v2012 = vrot.slane %v2007, %v2011
    %v2013 = vlaneseq
    %v2014 = vshrl.u32 %v2013, 7
    %v2015 = vsub.s32 1, %v2014
    %v2016 = vrot.slane %v2007, %v2015
    %v2017 = vlaneseq
    %v2018 = vshrl.u32 %v2017, 7
    %v2019 = vsub.s32 2, %v2018
    %v2020 = vrot.slane %v2007, %v2019
    %2024 = vmatprep.subr.mxu0 %v2005
    %2025 = vmatpush1.msra.mxu0 %v2004
    %2026 = vmatprep.subr.mxu0 %v2002
    %2027 = vmatpush1.msra.mxu0 %v2001
    %2028 = vmatprep.subr.mxu0 %v1999
    %2029 = vmatpush1.msra.mxu0 %v1998
    %2030 = vmatprep.subr.mxu0 %v1996
    %2031 = vmatpush1.msra.mxu0 %v1995
    %2032 = vmatprep.subr.mxu0 %v1993
    %2033 = vmatpush1.msra.mxu0 %v1992
    %2034 = vmatprep.subr.mxu0 %v1990
    %2035 = vmatpush1.msra.mxu0 %v1989
    %2036 = vmatprep.subr.mxu0 %v1987
    %2037 = vmatpush1.msra.mxu0 %v1986
    %2038 = vmatprep.subr.mxu0 %v1984
    %2039 = vmatpush1.msra.mxu0 %v1983
    %2040 = vmatprep.subr.mxu0 %v1981
    %2041 = vmatpush1.msra.mxu0 %v1980
    %2042 = vmatprep.subr.mxu0 %v1978
    %2043 = vmatpush1.msra.mxu0 %v1977
    %2044 = vmatprep.subr.mxu0 %v1975
    %2045 = vmatpush1.msra.mxu0 %v1974
    %2046 = vmatprep.subr.mxu0 %v1972
    %2047 = vmatpush1.msra.mxu0 %v1971
    %2048 = vmatprep.subr.mxu0 %v1969
    %2049 = vmatpush1.msra.mxu0 %v1968
    %2050 = vmatprep.subr.mxu0 %v1966
    %2051 = vmatpush1.msra.mxu0 %v1965
    %2052 = vmatprep.subr.mxu0 %v1963
    %2053 = vmatpush1.msra.mxu0 %v1962
    %2054 = vmatprep.subr.mxu0 %v1960
    %2055 = vmatpush1.msra.mxu0 %v1959
    %2056 = vmatprep.subr.mxu0 0.0
    %2057 = vmatpush2.msra.mxu0 0.0
    %2058 = vmatprep.subr.mxu0 0.0
    %2059 = vmatpush2.msra.mxu0 0.0
    %2060 = vmatprep.subr.mxu0 0.0
    %2061 = vmatpush2.msra.mxu0 0.0
    %2062 = vmatprep.subr.mxu0 0.0
    %2063 = vmatpush2.msra.mxu0 0.0
    %2064 = vmatprep.subr.mxu0 0.0
    %2065 = vmatpush2.msra.mxu0 0.0
    %2066 = vmatprep.subr.mxu0 0.0
    %2067 = vmatpush2.msra.mxu0 0.0
    %2068 = vmatprep.subr.mxu0 0.0
    %2069 = vmatpush2.msra.mxu0 0.0
    %2070 = vmatprep.subr.mxu0 0.0
    %2071 = vmatpush2.msra.mxu0 0.0
    %2072 = vmatprep.subr.mxu0 0.0
    %2073 = vmatpush2.msra.mxu0 0.0
    %2074 = vmatprep.subr.mxu0 0.0
    %2075 = vmatpush2.msra.mxu0 0.0
    %2076 = vmatprep.subr.mxu0 0.0
    %2077 = vmatpush2.msra.mxu0 0.0
    %2078 = vmatprep.subr.mxu0 0.0
    %2079 = vmatpush2.msra.mxu0 0.0
    %2080 = vmatprep.subr.mxu0 0.0
    %2081 = vmatpush2.msra.mxu0 0.0
    %2082 = vmatprep.subr.mxu0 0.0
    %2083 = vmatpush2.msra.mxu0 0.0
    %2084 = vmatprep.subr.mxu0 0.0
    %2085 = vmatpush2.msra.mxu0 0.0
    %2086 = vmatprep.subr.mxu0 0.0
    %2087 = vmatpush2.msra.mxu0 0.0
    %2088 = vmatprep.mubr.f32.mxu0 0.0
    %2089 = vmatmul.mubr.f32.gmra.mxu0 %v1957
    %v2090 = vpop.f32.mrf.mxu0
    %v2091 = vadd.f32 %v2012, %v2090
    %v2092 = vpop.f32.mrf.mxu0
    %v2093 = vadd.f32 %v2016, %v2092
    %2094 = vdwg.mxu0
    %2095 = vmatprep.subr.mxu0 0.0
    %2096 = vmatpush1.msra.mxu0 %v2006
    %2097 = vmatprep.subr.mxu0 0.0
    %2098 = vmatpush1.msra.mxu0 %v2003
    %2099 = vmatprep.subr.mxu0 0.0
    %2100 = vmatpush1.msra.mxu0 %v2000
    %2101 = vmatprep.subr.mxu0 0.0
    %2102 = vmatpush1.msra.mxu0 %v1997
    %2103 = vmatprep.subr.mxu0 0.0
    %2104 = vmatpush1.msra.mxu0 %v1994
    %2105 = vmatprep.subr.mxu0 0.0
    %2106 = vmatpush1.msra.mxu0 %v1991
    %2107 = vmatprep.subr.mxu0 0.0
    %2108 = vmatpush1.msra.mxu0 %v1988
    %2109 = vmatprep.subr.mxu0 0.0
    %2110 = vmatpush1.msra.mxu0 %v1985
    %2111 = vmatprep.subr.mxu0 0.0
    %2112 = vmatpush1.msra.mxu0 %v1982
    %2113 = vmatprep.subr.mxu0 0.0
    %2114 = vmatpush1.msra.mxu0 %v1979
    %2115 = vmatprep.subr.mxu0 0.0
    %2116 = vmatpush1.msra.mxu0 %v1976
    %2117 = vmatprep.subr.mxu0 0.0
    %2118 = vmatpush1.msra.mxu0 %v1973
    %2119 = vmatprep.subr.mxu0 0.0
    %2120 = vmatpush1.msra.mxu0 %v1970
    %2121 = vmatprep.subr.mxu0 0.0
    %2122 = vmatpush1.msra.mxu0 %v1967
    %2123 = vmatprep.subr.mxu0 0.0
    %2124 = vmatpush1.msra.mxu0 %v1964
    %2125 = vmatprep.subr.mxu0 0.0
    %2126 = vmatpush1.msra.mxu0 %v1961
    %2127 = vmatprep.subr.mxu0 0.0
    %2128 = vmatpush2.msra.mxu0 0.0
    %2129 = vmatprep.subr.mxu0 0.0
    %2130 = vmatpush2.msra.mxu0 0.0
    %2131 = vmatprep.subr.mxu0 0.0
    %2132 = vmatpush2.msra.mxu0 0.0
    %2133 = vmatprep.subr.mxu0 0.0
    %2134 = vmatpush2.msra.mxu0 0.0
    %2135 = vmatprep.subr.mxu0 0.0
    %2136 = vmatpush2.msra.mxu0 0.0
    %2137 = vmatprep.subr.mxu0 0.0
    %2138 = vmatpush2.msra.mxu0 0.0
    %2139 = vmatprep.subr.mxu0 0.0
    %2140 = vmatpush2.msra.mxu0 0.0
    %2141 = vmatprep.subr.mxu0 0.0
    %2142 = vmatpush2.msra.mxu0 0.0
    %2143 = vmatprep.subr.mxu0 0.0
    %2144 = vmatpush2.msra.mxu0 0.0
    %2145 = vmatprep.subr.mxu0 0.0
    %2146 = vmatpush2.msra.mxu0 0.0
    %2147 = vmatprep.subr.mxu0 0.0
    %2148 = vmatpush2.msra.mxu0 0.0
    %2149 = vmatprep.subr.mxu0 0.0
    %2150 = vmatpush2.msra.mxu0 0.0
    %2151 = vmatprep.subr.mxu0 0.0
    %2152 = vmatpush2.msra.mxu0 0.0
    %2153 = vmatprep.subr.mxu0 0.0
    %2154 = vmatpush2.msra.mxu0 0.0
    %2155 = vmatprep.subr.mxu0 0.0
    %2156 = vmatpush2.msra.mxu0 0.0
    %2157 = vmatprep.subr.mxu0 0.0
    %2158 = vmatpush2.msra.mxu0 0.0
    %2159 = vmatprep.mubr.f32.mxu0 0.0
    %2160 = vmatmul.mubr.f32.gmra.mxu0 %v1957
    %v2161 = vpop.f32.mrf.mxu0
    %v2162 = vadd.f32 %v2020, %v2161
    %v2163 = vpop.f32.mrf.mxu0
    %2164 = vdwg.mxu0
    %v2165 = vadd.f32 %v253, %v2091
    %v2166 = vxor.u32 %v2165, 2147483648
    %v2167 = vmul.f32 %v2166, 1.442695
    %v2168 = vpow.pop %v2167
    %v2169 = vadd.f32 %v2168, 1.0
    %v2170 = vrcp.pop %v2169
    %v2171 = vmul.f32 1.0, %v2170
    %v2172 = vadd.f32 %v255, %v2093
    %v2173 = vxor.u32 %v2172, 2147483648
    %v2174 = vmul.f32 %v2173, 1.442695
    %v2175 = vpow.pop %v2174
    %v2176 = vadd.f32 %v2175, 1.0
    %v2177 = vrcp.pop %v2176
    %v2178 = vmul.f32 1.0, %v2177
    %v2179 = vmul.f32 %v2171, %v2162
    %v2180 = vadd.f32 %v359, %v2179
    %v2181 = vtanh.pop %v2180
    %v2182 = vsub.f32 1.0, %v2178
    %v2183 = vmul.f32 %v2182, %v2181
    %v2184 = vmul.f32 %v2178, %v1957
    %v2185 = vadd.f32 %v2183, %v2184
    %2186 = vst [vmem:[#allocation2 + $0x38] sm:$0xff] %v2185
    %v2187 = vld [vmem:[#allocation2] sm:$0xff]
    %v2188 = vld [vmem:[#allocation2 + $0x8] sm:$0xff]
    %v2189 = vld [vmem:[#allocation2 + $0x10] sm:$0xff]
    %v2190 = vld [vmem:[#allocation2 + $0x18] sm:$0xff]
    %v2191 = vld [vmem:[#allocation2 + $0x20] sm:$0xff]
    %v2192 = vld [vmem:[#allocation2 + $0x28] sm:$0xff]
    %v2193 = vld [vmem:[#allocation2 + $0x30] sm:$0xff]
    %v2194 = vld [vmem:[#allocation2 + $0x38] sm:$0xff]
    %v2195 = vld [vmem:[#allocation5] sm:$0xff]
    %v2196 = vld [vmem:[#allocation5 + $0x8] sm:$0xff]
    %v2197 = vld [vmem:[#allocation5 + $0x10] sm:$0xff]
    %v2198 = vld [vmem:[#allocation5 + $0x18] sm:$0xff]
    %v2199 = vld [vmem:[#allocation5 + $0x20] sm:$0xff]
    %v2200 = vld [vmem:[#allocation5 + $0x28] sm:$0xff]
    %v2201 = vld [vmem:[#allocation5 + $0x30] sm:$0xff]
    %v2202 = vld [vmem:[#allocation5 + $0x38] sm:$0xff]
    %v2203 = vld [vmem:[#allocation5 + $0x40] sm:$0xff]
    %v2204 = vld [vmem:[#allocation5 + $0x48] sm:$0xff]
    %v2205 = vld [vmem:[#allocation5 + $0x50] sm:$0xff]
    %v2206 = vld [vmem:[#allocation5 + $0x58] sm:$0xff]
    %v2207 = vld [vmem:[#allocation5 + $0x60] sm:$0xff]
    %v2208 = vld [vmem:[#allocation5 + $0x68] sm:$0xff]
    %v2209 = vld [vmem:[#allocation5 + $0x70] sm:$0xff]
    %v2210 = vld [vmem:[#allocation5 + $0x78] sm:$0xff]
    %v2211 = vld [vmem:[#allocation5 + $0x80] sm:$0xff]
    %v2212 = vld [vmem:[#allocation5 + $0x88] sm:$0xff]
    %v2213 = vld [vmem:[#allocation5 + $0x90] sm:$0xff]
    %v2214 = vld [vmem:[#allocation5 + $0x98] sm:$0xff]
    %v2215 = vld [vmem:[#allocation5 + $0xa0] sm:$0xff]
    %v2216 = vld [vmem:[#allocation5 + $0xa8] sm:$0xff]
    %v2217 = vld [vmem:[#allocation5 + $0xb0] sm:$0xff]
    %v2218 = vld [vmem:[#allocation5 + $0xb8] sm:$0xff]
    %v2219 = vld [vmem:[#allocation5 + $0xc0] sm:$0xff]
    %v2220 = vld [vmem:[#allocation5 + $0xc8] sm:$0xff]
    %v2221 = vld [vmem:[#allocation5 + $0xd0] sm:$0xff]
    %v2222 = vld [vmem:[#allocation5 + $0xd8] sm:$0xff]
    %v2223 = vld [vmem:[#allocation5 + $0xe0] sm:$0xff]
    %v2224 = vld [vmem:[#allocation5 + $0xe8] sm:$0xff]
    %v2225 = vld [vmem:[#allocation5 + $0xf0] sm:$0xff]
    %v2226 = vld [vmem:[#allocation5 + $0xf8] sm:$0xff]
    %v2227 = vld [vmem:[#allocation5 + $0x100] sm:$0xff]
    %v2228 = vld [vmem:[#allocation5 + $0x108] sm:$0xff]
    %v2229 = vld [vmem:[#allocation5 + $0x110] sm:$0xff]
    %v2230 = vld [vmem:[#allocation5 + $0x118] sm:$0xff]
    %v2231 = vld [vmem:[#allocation5 + $0x120] sm:$0xff]
    %v2232 = vld [vmem:[#allocation5 + $0x128] sm:$0xff]
    %v2233 = vld [vmem:[#allocation5 + $0x130] sm:$0xff]
    %v2234 = vld [vmem:[#allocation5 + $0x138] sm:$0xff]
    %v2235 = vld [vmem:[#allocation5 + $0x140] sm:$0xff]
    %v2236 = vld [vmem:[#allocation5 + $0x148] sm:$0xff]
    %v2237 = vld [vmem:[#allocation5 + $0x150] sm:$0xff]
    %v2238 = vld [vmem:[#allocation5 + $0x158] sm:$0xff]
    %v2239 = vld [vmem:[#allocation5 + $0x160] sm:$0xff]
    %v2240 = vld [vmem:[#allocation5 + $0x168] sm:$0xff]
    %v2241 = vld [vmem:[#allocation5 + $0x170] sm:$0xff]
    %v2242 = vld [vmem:[#allocation5 + $0x178] sm:$0xff]
    %v2243 = vld [vmem:[%s8] sm:$0x7]
    %v2245 = vlaneseq
    %v2246 = vshrl.u32 %v2245, 7
    %v2247 = vsub.s32 0, %v2246
    %v2248 = vrot.slane %v2243, %v2247
    %v2249 = vlaneseq
    %v2250 = vshrl.u32 %v2249, 7
    %v2251 = vsub.s32 1, %v2250
    %v2252 = vrot.slane %v2243, %v2251
    %v2253 = vlaneseq
    %v2254 = vshrl.u32 %v2253, 7
    %v2255 = vsub.s32 2, %v2254
    %v2256 = vrot.slane %v2243, %v2255
    %2260 = vmatprep.subr.mxu0 %v2241
    %2261 = vmatpush1.msra.mxu0 %v2240
    %2262 = vmatprep.subr.mxu0 %v2238
    %2263 = vmatpush1.msra.mxu0 %v2237
    %2264 = vmatprep.subr.mxu0 %v2235
    %2265 = vmatpush1.msra.mxu0 %v2234
    %2266 = vmatprep.subr.mxu0 %v2232
    %2267 = vmatpush1.msra.mxu0 %v2231
    %2268 = vmatprep.subr.mxu0 %v2229
    %2269 = vmatpush1.msra.mxu0 %v2228
    %2270 = vmatprep.subr.mxu0 %v2226
    %2271 = vmatpush1.msra.mxu0 %v2225
    %2272 = vmatprep.subr.mxu0 %v2223
    %2273 = vmatpush1.msra.mxu0 %v2222
    %2274 = vmatprep.subr.mxu0 %v2220
    %2275 = vmatpush1.msra.mxu0 %v2219
    %2276 = vmatprep.subr.mxu0 %v2217
    %2277 = vmatpush1.msra.mxu0 %v2216
    %2278 = vmatprep.subr.mxu0 %v2214
    %2279 = vmatpush1.msra.mxu0 %v2213
    %2280 = vmatprep.subr.mxu0 %v2211
    %2281 = vmatpush1.msra.mxu0 %v2210
    %2282 = vmatprep.subr.mxu0 %v2208
    %2283 = vmatpush1.msra.mxu0 %v2207
    %2284 = vmatprep.subr.mxu0 %v2205
    %2285 = vmatpush1.msra.mxu0 %v2204
    %2286 = vmatprep.subr.mxu0 %v2202
    %2287 = vmatpush1.msra.mxu0 %v2201
    %2288 = vmatprep.subr.mxu0 %v2199
    %2289 = vmatpush1.msra.mxu0 %v2198
    %2290 = vmatprep.subr.mxu0 %v2196
    %2291 = vmatpush1.msra.mxu0 %v2195
    %2292 = vmatprep.subr.mxu0 0.0
    %2293 = vmatpush2.msra.mxu0 0.0
    %2294 = vmatprep.subr.mxu0 0.0
    %2295 = vmatpush2.msra.mxu0 0.0
    %2296 = vmatprep.subr.mxu0 0.0
    %2297 = vmatpush2.msra.mxu0 0.0
    %2298 = vmatprep.subr.mxu0 0.0
    %2299 = vmatpush2.msra.mxu0 0.0
    %2300 = vmatprep.subr.mxu0 0.0
    %2301 = vmatpush2.msra.mxu0 0.0
    %2302 = vmatprep.subr.mxu0 0.0
    %2303 = vmatpush2.msra.mxu0 0.0
    %2304 = vmatprep.subr.mxu0 0.0
    %2305 = vmatpush2.msra.mxu0 0.0
    %2306 = vmatprep.subr.mxu0 0.0
    %2307 = vmatpush2.msra.mxu0 0.0
    %2308 = vmatprep.subr.mxu0 0.0
    %2309 = vmatpush2.msra.mxu0 0.0
    %2310 = vmatprep.subr.mxu0 0.0
    %2311 = vmatpush2.msra.mxu0 0.0
    %2312 = vmatprep.subr.mxu0 0.0
    %2313 = vmatpush2.msra.mxu0 0.0
    %2314 = vmatprep.subr.mxu0 0.0
    %2315 = vmatpush2.msra.mxu0 0.0
    %2316 = vmatprep.subr.mxu0 0.0
    %2317 = vmatpush2.msra.mxu0 0.0
    %2318 = vmatprep.subr.mxu0 0.0
    %2319 = vmatpush2.msra.mxu0 0.0
    %2320 = vmatprep.subr.mxu0 0.0
    %2321 = vmatpush2.msra.mxu0 0.0
    %2322 = vmatprep.subr.mxu0 0.0
    %2323 = vmatpush2.msra.mxu0 0.0
    %2324 = vmatprep.mubr.f32.mxu0 0.0
    %2325 = vmatmul.mubr.f32.gmra.mxu0 %v2187
    %v2326 = vpop.f32.mrf.mxu0
    %v2327 = vadd.f32 %v2248, %v2326
    %v2328 = vpop.f32.mrf.mxu0
    %v2329 = vadd.f32 %v2252, %v2328
    %2330 = vmatprep.mubr.f32.mxu0 0.0
    %2331 = vmatmul.mubr.f32.gmra.mxu0 %v2188
    %v2332 = vpop.f32.mrf.mxu0
    %v2333 = vadd.f32 %v2248, %v2332
    %v2334 = vpop.f32.mrf.mxu0
    %v2335 = vadd.f32 %v2252, %v2334
    %2336 = vmatprep.mubr.f32.mxu0 0.0
    %2337 = vmatmul.mubr.f32.gmra.mxu0 %v2189
    %v2338 = vpop.f32.mrf.mxu0
    %v2339 = vadd.f32 %v2248, %v2338
    %v2340 = vpop.f32.mrf.mxu0
    %v2341 = vadd.f32 %v2252, %v2340
    %2342 = vmatprep.mubr.f32.mxu0 0.0
    %2343 = vmatmul.mubr.f32.gmra.mxu0 %v2190
    %v2344 = vpop.f32.mrf.mxu0
    %v2345 = vadd.f32 %v2248, %v2344
    %v2346 = vpop.f32.mrf.mxu0
    %v2347 = vadd.f32 %v2252, %v2346
    %2348 = vmatprep.mubr.f32.mxu0 0.0
    %2349 = vmatmul.mubr.f32.gmra.mxu0 %v2191
    %v2350 = vpop.f32.mrf.mxu0
    %v2351 = vadd.f32 %v2248, %v2350
    %v2352 = vpop.f32.mrf.mxu0
    %v2353 = vadd.f32 %v2252, %v2352
    %2354 = vmatprep.mubr.f32.mxu0 0.0
    %2355 = vmatmul.mubr.f32.gmra.mxu0 %v2192
    %v2356 = vpop.f32.mrf.mxu0
    %v2357 = vadd.f32 %v2248, %v2356
    %v2358 = vpop.f32.mrf.mxu0
    %v2359 = vadd.f32 %v2252, %v2358
    %2360 = vmatprep.mubr.f32.mxu0 0.0
    %2361 = vmatmul.mubr.f32.gmra.mxu0 %v2193
    %v2362 = vpop.f32.mrf.mxu0
    %v2363 = vadd.f32 %v2248, %v2362
    %v2364 = vpop.f32.mrf.mxu0
    %v2365 = vadd.f32 %v2252, %v2364
    %2366 = vmatprep.mubr.f32.mxu0 0.0
    %2367 = vmatmul.mubr.f32.gmra.mxu0 %v2194
    %v2368 = vpop.f32.mrf.mxu0
    %v2369 = vadd.f32 %v2248, %v2368
    %v2370 = vpop.f32.mrf.mxu0
    %v2371 = vadd.f32 %v2252, %v2370
    %2372 = vdwg.mxu0
    %2373 = vmatprep.subr.mxu0 0.0
    %2374 = vmatpush1.msra.mxu0 %v2242
    %2375 = vmatprep.subr.mxu0 0.0
    %2376 = vmatpush1.msra.mxu0 %v2239
    %2377 = vmatprep.subr.mxu0 0.0
    %2378 = vmatpush1.msra.mxu0 %v2236
    %2379 = vmatprep.subr.mxu0 0.0
    %2380 = vmatpush1.msra.mxu0 %v2233
    %2381 = vmatprep.subr.mxu0 0.0
    %2382 = vmatpush1.msra.mxu0 %v2230
    %2383 = vmatprep.subr.mxu0 0.0
    %2384 = vmatpush1.msra.mxu0 %v2227
    %2385 = vmatprep.subr.mxu0 0.0
    %2386 = vmatpush1.msra.mxu0 %v2224
    %2387 = vmatprep.subr.mxu0 0.0
    %2388 = vmatpush1.msra.mxu0 %v2221
    %2389 = vmatprep.subr.mxu0 0.0
    %2390 = vmatpush1.msra.mxu0 %v2218
    %2391 = vmatprep.subr.mxu0 0.0
    %2392 = vmatpush1.msra.mxu0 %v2215
    %2393 = vmatprep.subr.mxu0 0.0
    %2394 = vmatpush1.msra.mxu0 %v2212
    %2395 = vmatprep.subr.mxu0 0.0
    %2396 = vmatpush1.msra.mxu0 %v2209
    %2397 = vmatprep.subr.mxu0 0.0
    %2398 = vmatpush1.msra.mxu0 %v2206
    %2399 = vmatprep.subr.mxu0 0.0
    %2400 = vmatpush1.msra.mxu0 %v2203
    %2401 = vmatprep.subr.mxu0 0.0
    %2402 = vmatpush1.msra.mxu0 %v2200
    %2403 = vmatprep.subr.mxu0 0.0
    %2404 = vmatpush1.msra.mxu0 %v2197
    %2405 = vmatprep.subr.mxu0 0.0
    %2406 = vmatpush2.msra.mxu0 0.0
    %2407 = vmatprep.subr.mxu0 0.0
    %2408 = vmatpush2.msra.mxu0 0.0
    %2409 = vmatprep.subr.mxu0 0.0
    %2410 = vmatpush2.msra.mxu0 0.0
    %2411 = vmatprep.subr.mxu0 0.0
    %2412 = vmatpush2.msra.mxu0 0.0
    %2413 = vmatprep.subr.mxu0 0.0
    %2414 = vmatpush2.msra.mxu0 0.0
    %2415 = vmatprep.subr.mxu0 0.0
    %2416 = vmatpush2.msra.mxu0 0.0
    %2417 = vmatprep.subr.mxu0 0.0
    %2418 = vmatpush2.msra.mxu0 0.0
    %2419 = vmatprep.subr.mxu0 0.0
    %2420 = vmatpush2.msra.mxu0 0.0
    %2421 = vmatprep.subr.mxu0 0.0
    %2422 = vmatpush2.msra.mxu0 0.0
    %2423 = vmatprep.subr.mxu0 0.0
    %2424 = vmatpush2.msra.mxu0 0.0
    %2425 = vmatprep.subr.mxu0 0.0
    %2426 = vmatpush2.msra.mxu0 0.0
    %2427 = vmatprep.subr.mxu0 0.0
    %2428 = vmatpush2.msra.mxu0 0.0
    %2429 = vmatprep.subr.mxu0 0.0
    %2430 = vmatpush2.msra.mxu0 0.0
    %2431 = vmatprep.subr.mxu0 0.0
    %2432 = vmatpush2.msra.mxu0 0.0
    %2433 = vmatprep.subr.mxu0 0.0
    %2434 = vmatpush2.msra.mxu0 0.0
    %2435 = vmatprep.subr.mxu0 0.0
    %2436 = vmatpush2.msra.mxu0 0.0
    %2437 = vmatprep.mubr.f32.mxu0 0.0
    %2438 = vmatmul.mubr.f32.gmra.mxu0 %v2187
    %v2439 = vpop.f32.mrf.mxu0
    %v2440 = vadd.f32 %v2256, %v2439
    %v2441 = vpop.f32.mrf.mxu0
    %2442 = vmatprep.mubr.f32.mxu0 0.0
    %2443 = vmatmul.mubr.f32.gmra.mxu0 %v2188
    %v2444 = vpop.f32.mrf.mxu0
    %v2445 = vadd.f32 %v2256, %v2444
    %v2446 = vpop.f32.mrf.mxu0
    %2447 = vmatprep.mubr.f32.mxu0 0.0
    %2448 = vmatmul.mubr.f32.gmra.mxu0 %v2189
    %v2449 = vpop.f32.mrf.mxu0
    %v2450 = vadd.f32 %v2256, %v2449
    %v2451 = vpop.f32.mrf.mxu0
    %2452 = vmatprep.mubr.f32.mxu0 0.0
    %2453 = vmatmul.mubr.f32.gmra.mxu0 %v2190
    %v2454 = vpop.f32.mrf.mxu0
    %v2455 = vadd.f32 %v2256, %v2454
    %v2456 = vpop.f32.mrf.mxu0
    %2457 = vmatprep.mubr.f32.mxu0 0.0
    %2458 = vmatmul.mubr.f32.gmra.mxu0 %v2191
    %v2459 = vpop.f32.mrf.mxu0
    %v2460 = vadd.f32 %v2256, %v2459
    %v2461 = vpop.f32.mrf.mxu0
    %2462 = vmatprep.mubr.f32.mxu0 0.0
    %2463 = vmatmul.mubr.f32.gmra.mxu0 %v2192
    %v2464 = vpop.f32.mrf.mxu0
    %v2465 = vadd.f32 %v2256, %v2464
    %v2466 = vpop.f32.mrf.mxu0
    %2467 = vmatprep.mubr.f32.mxu0 0.0
    %2468 = vmatmul.mubr.f32.gmra.mxu0 %v2193
    %v2469 = vpop.f32.mrf.mxu0
    %v2470 = vadd.f32 %v2256, %v2469
    %v2471 = vpop.f32.mrf.mxu0
    %2472 = vmatprep.mubr.f32.mxu0 0.0
    %2473 = vmatmul.mubr.f32.gmra.mxu0 %v2194
    %v2474 = vpop.f32.mrf.mxu0
    %v2475 = vadd.f32 %v2256, %v2474
    %v2476 = vpop.f32.mrf.mxu0
    %2477 = vdwg.mxu0
    %s2478 = scalar_lea.vmem %s1, 8
    %v2479 = vld [vmem:[%s2478] sm:$0xff]
    %v2480 = vld [vmem:[#allocation7] sm:$0xff]
    %v2481 = vld [vmem:[#allocation7 + $0x8] sm:$0xff]
    %v2482 = vld [vmem:[#allocation7 + $0x10] sm:$0xff]
    %v2483 = vld [vmem:[#allocation7 + $0x18] sm:$0xff]
    %v2484 = vld [vmem:[#allocation7 + $0x20] sm:$0xff]
    %v2485 = vld [vmem:[#allocation7 + $0x28] sm:$0xff]
    %v2486 = vld [vmem:[#allocation7 + $0x30] sm:$0xff]
    %v2487 = vld [vmem:[#allocation7 + $0x38] sm:$0xff]
    %v2488 = vld [vmem:[#allocation7 + $0x40] sm:$0xff]
    %v2489 = vld [vmem:[#allocation7 + $0x48] sm:$0xff]
    %v2490 = vld [vmem:[#allocation7 + $0x50] sm:$0xff]
    %v2491 = vld [vmem:[#allocation7 + $0x58] sm:$0xff]
    %v2492 = vld [vmem:[#allocation7 + $0x60] sm:$0xff]
    %v2493 = vld [vmem:[#allocation7 + $0x68] sm:$0xff]
    %v2494 = vld [vmem:[#allocation7 + $0x70] sm:$0xff]
    %v2495 = vld [vmem:[#allocation7 + $0x78] sm:$0xff]
    %v2496 = vld [vmem:[#allocation7 + $0x80] sm:$0xff]
    %v2497 = vld [vmem:[#allocation7 + $0x88] sm:$0xff]
    %v2498 = vld [vmem:[#allocation7 + $0x90] sm:$0xff]
    %v2499 = vld [vmem:[#allocation7 + $0x98] sm:$0xff]
    %v2500 = vld [vmem:[#allocation7 + $0xa0] sm:$0xff]
    %v2501 = vld [vmem:[#allocation7 + $0xa8] sm:$0xff]
    %v2502 = vld [vmem:[#allocation7 + $0xb0] sm:$0xff]
    %v2503 = vld [vmem:[#allocation7 + $0xb8] sm:$0xff]
    %v2504 = vld [vmem:[#allocation7 + $0xc0] sm:$0xff]
    %v2505 = vld [vmem:[#allocation7 + $0xc8] sm:$0xff]
    %v2506 = vld [vmem:[#allocation7 + $0xd0] sm:$0xff]
    %v2507 = vld [vmem:[#allocation7 + $0xd8] sm:$0xff]
    %v2508 = vld [vmem:[#allocation7 + $0xe0] sm:$0xff]
    %v2509 = vld [vmem:[#allocation7 + $0xe8] sm:$0xff]
    %v2510 = vld [vmem:[#allocation7 + $0xf0] sm:$0xff]
    %v2511 = vld [vmem:[#allocation7 + $0xf8] sm:$0xff]
    %v2512 = vld [vmem:[#allocation7 + $0x100] sm:$0xff]
    %v2513 = vld [vmem:[#allocation7 + $0x108] sm:$0xff]
    %v2514 = vld [vmem:[#allocation7 + $0x110] sm:$0xff]
    %v2515 = vld [vmem:[#allocation7 + $0x118] sm:$0xff]
    %v2516 = vld [vmem:[#allocation7 + $0x120] sm:$0xff]
    %v2517 = vld [vmem:[#allocation7 + $0x128] sm:$0xff]
    %v2518 = vld [vmem:[#allocation7 + $0x130] sm:$0xff]
    %v2519 = vld [vmem:[#allocation7 + $0x138] sm:$0xff]
    %v2520 = vld [vmem:[#allocation7 + $0x140] sm:$0xff]
    %v2521 = vld [vmem:[#allocation7 + $0x148] sm:$0xff]
    %v2522 = vld [vmem:[#allocation7 + $0x150] sm:$0xff]
    %v2523 = vld [vmem:[#allocation7 + $0x158] sm:$0xff]
    %v2524 = vld [vmem:[#allocation7 + $0x160] sm:$0xff]
    %v2525 = vld [vmem:[#allocation7 + $0x168] sm:$0xff]
    %v2526 = vld [vmem:[#allocation7 + $0x170] sm:$0xff]
    %v2527 = vld [vmem:[#allocation7 + $0x178] sm:$0xff]
    %v2528 = vld [vmem:[%s9] sm:$0x7]
    %v2530 = vlaneseq
    %v2531 = vshrl.u32 %v2530, 7
    %v2532 = vsub.s32 0, %v2531
    %v2533 = vrot.slane %v2528, %v2532
    %v2534 = vlaneseq
    %v2535 = vshrl.u32 %v2534, 7
    %v2536 = vsub.s32 1, %v2535
    %v2537 = vrot.slane %v2528, %v2536
    %v2538 = vlaneseq
    %v2539 = vshrl.u32 %v2538, 7
    %v2540 = vsub.s32 2, %v2539
    %v2541 = vrot.slane %v2528, %v2540
    %2545 = vmatprep.subr.mxu0 %v2526
    %2546 = vmatpush1.msra.mxu0 %v2525
    %2547 = vmatprep.subr.mxu0 %v2523
    %2548 = vmatpush1.msra.mxu0 %v2522
    %2549 = vmatprep.subr.mxu0 %v2520
    %2550 = vmatpush1.msra.mxu0 %v2519
    %2551 = vmatprep.subr.mxu0 %v2517
    %2552 = vmatpush1.msra.mxu0 %v2516
    %2553 = vmatprep.subr.mxu0 %v2514
    %2554 = vmatpush1.msra.mxu0 %v2513
    %2555 = vmatprep.subr.mxu0 %v2511
    %2556 = vmatpush1.msra.mxu0 %v2510
    %2557 = vmatprep.subr.mxu0 %v2508
    %2558 = vmatpush1.msra.mxu0 %v2507
    %2559 = vmatprep.subr.mxu0 %v2505
    %2560 = vmatpush1.msra.mxu0 %v2504
    %2561 = vmatprep.subr.mxu0 %v2502
    %2562 = vmatpush1.msra.mxu0 %v2501
    %2563 = vmatprep.subr.mxu0 %v2499
    %2564 = vmatpush1.msra.mxu0 %v2498
    %2565 = vmatprep.subr.mxu0 %v2496
    %2566 = vmatpush1.msra.mxu0 %v2495
    %2567 = vmatprep.subr.mxu0 %v2493
    %2568 = vmatpush1.msra.mxu0 %v2492
    %2569 = vmatprep.subr.mxu0 %v2490
    %2570 = vmatpush1.msra.mxu0 %v2489
    %2571 = vmatprep.subr.mxu0 %v2487
    %2572 = vmatpush1.msra.mxu0 %v2486
    %2573 = vmatprep.subr.mxu0 %v2484
    %2574 = vmatpush1.msra.mxu0 %v2483
    %2575 = vmatprep.subr.mxu0 %v2481
    %2576 = vmatpush1.msra.mxu0 %v2480
    %2577 = vmatprep.subr.mxu0 0.0
    %2578 = vmatpush2.msra.mxu0 0.0
    %2579 = vmatprep.subr.mxu0 0.0
    %2580 = vmatpush2.msra.mxu0 0.0
    %2581 = vmatprep.subr.mxu0 0.0
    %2582 = vmatpush2.msra.mxu0 0.0
    %2583 = vmatprep.subr.mxu0 0.0
    %2584 = vmatpush2.msra.mxu0 0.0
    %2585 = vmatprep.subr.mxu0 0.0
    %2586 = vmatpush2.msra.mxu0 0.0
    %2587 = vmatprep.subr.mxu0 0.0
    %2588 = vmatpush2.msra.mxu0 0.0
    %2589 = vmatprep.subr.mxu0 0.0
    %2590 = vmatpush2.msra.mxu0 0.0
    %2591 = vmatprep.subr.mxu0 0.0
    %2592 = vmatpush2.msra.mxu0 0.0
    %2593 = vmatprep.subr.mxu0 0.0
    %2594 = vmatpush2.msra.mxu0 0.0
    %2595 = vmatprep.subr.mxu0 0.0
    %2596 = vmatpush2.msra.mxu0 0.0
    %2597 = vmatprep.subr.mxu0 0.0
    %2598 = vmatpush2.msra.mxu0 0.0
    %2599 = vmatprep.subr.mxu0 0.0
    %2600 = vmatpush2.msra.mxu0 0.0
    %2601 = vmatprep.subr.mxu0 0.0
    %2602 = vmatpush2.msra.mxu0 0.0
    %2603 = vmatprep.subr.mxu0 0.0
    %2604 = vmatpush2.msra.mxu0 0.0
    %2605 = vmatprep.subr.mxu0 0.0
    %2606 = vmatpush2.msra.mxu0 0.0
    %2607 = vmatprep.subr.mxu0 0.0
    %2608 = vmatpush2.msra.mxu0 0.0
    %2609 = vmatprep.mubr.f32.mxu0 0.0
    %2610 = vmatmul.mubr.f32.gmra.mxu0 %v2479
    %v2611 = vpop.f32.mrf.mxu0
    %v2612 = vadd.f32 %v2533, %v2611
    %v2613 = vpop.f32.mrf.mxu0
    %v2614 = vadd.f32 %v2537, %v2613
    %2615 = vdwg.mxu0
    %2616 = vmatprep.subr.mxu0 0.0
    %2617 = vmatpush1.msra.mxu0 %v2527
    %2618 = vmatprep.subr.mxu0 0.0
    %2619 = vmatpush1.msra.mxu0 %v2524
    %2620 = vmatprep.subr.mxu0 0.0
    %2621 = vmatpush1.msra.mxu0 %v2521
    %2622 = vmatprep.subr.mxu0 0.0
    %2623 = vmatpush1.msra.mxu0 %v2518
    %2624 = vmatprep.subr.mxu0 0.0
    %2625 = vmatpush1.msra.mxu0 %v2515
    %2626 = vmatprep.subr.mxu0 0.0
    %2627 = vmatpush1.msra.mxu0 %v2512
    %2628 = vmatprep.subr.mxu0 0.0
    %2629 = vmatpush1.msra.mxu0 %v2509
    %2630 = vmatprep.subr.mxu0 0.0
    %2631 = vmatpush1.msra.mxu0 %v2506
    %2632 = vmatprep.subr.mxu0 0.0
    %2633 = vmatpush1.msra.mxu0 %v2503
    %2634 = vmatprep.subr.mxu0 0.0
    %2635 = vmatpush1.msra.mxu0 %v2500
    %2636 = vmatprep.subr.mxu0 0.0
    %2637 = vmatpush1.msra.mxu0 %v2497
    %2638 = vmatprep.subr.mxu0 0.0
    %2639 = vmatpush1.msra.mxu0 %v2494
    %2640 = vmatprep.subr.mxu0 0.0
    %2641 = vmatpush1.msra.mxu0 %v2491
    %2642 = vmatprep.subr.mxu0 0.0
    %2643 = vmatpush1.msra.mxu0 %v2488
    %2644 = vmatprep.subr.mxu0 0.0
    %2645 = vmatpush1.msra.mxu0 %v2485
    %2646 = vmatprep.subr.mxu0 0.0
    %2647 = vmatpush1.msra.mxu0 %v2482
    %2648 = vmatprep.subr.mxu0 0.0
    %2649 = vmatpush2.msra.mxu0 0.0
    %2650 = vmatprep.subr.mxu0 0.0
    %2651 = vmatpush2.msra.mxu0 0.0
    %2652 = vmatprep.subr.mxu0 0.0
    %2653 = vmatpush2.msra.mxu0 0.0
    %2654 = vmatprep.subr.mxu0 0.0
    %2655 = vmatpush2.msra.mxu0 0.0
    %2656 = vmatprep.subr.mxu0 0.0
    %2657 = vmatpush2.msra.mxu0 0.0
    %2658 = vmatprep.subr.mxu0 0.0
    %2659 = vmatpush2.msra.mxu0 0.0
    %2660 = vmatprep.subr.mxu0 0.0
    %2661 = vmatpush2.msra.mxu0 0.0
    %2662 = vmatprep.subr.mxu0 0.0
    %2663 = vmatpush2.msra.mxu0 0.0
    %2664 = vmatprep.subr.mxu0 0.0
    %2665 = vmatpush2.msra.mxu0 0.0
    %2666 = vmatprep.subr.mxu0 0.0
    %2667 = vmatpush2.msra.mxu0 0.0
    %2668 = vmatprep.subr.mxu0 0.0
    %2669 = vmatpush2.msra.mxu0 0.0
    %2670 = vmatprep.subr.mxu0 0.0
    %2671 = vmatpush2.msra.mxu0 0.0
    %2672 = vmatprep.subr.mxu0 0.0
    %2673 = vmatpush2.msra.mxu0 0.0
    %2674 = vmatprep.subr.mxu0 0.0
    %2675 = vmatpush2.msra.mxu0 0.0
    %2676 = vmatprep.subr.mxu0 0.0
    %2677 = vmatpush2.msra.mxu0 0.0
    %2678 = vmatprep.subr.mxu0 0.0
    %2679 = vmatpush2.msra.mxu0 0.0
    %2680 = vmatprep.mubr.f32.mxu0 0.0
    %2681 = vmatmul.mubr.f32.gmra.mxu0 %v2479
    %v2682 = vpop.f32.mrf.mxu0
    %v2683 = vadd.f32 %v2541, %v2682
    %v2684 = vpop.f32.mrf.mxu0
    %2685 = vdwg.mxu0
    %v2686 = vadd.f32 %v2327, %v2612
    %v2687 = vxor.u32 %v2686, 2147483648
    %v2688 = vmul.f32 %v2687, 1.442695
    %v2689 = vpow.pop %v2688
    %v2690 = vadd.f32 %v2689, 1.0
    %v2691 = vrcp.pop %v2690
    %v2692 = vmul.f32 1.0, %v2691
    %v2693 = vadd.f32 %v2329, %v2614
    %v2694 = vxor.u32 %v2693, 2147483648
    %v2695 = vmul.f32 %v2694, 1.442695
    %v2696 = vpow.pop %v2695
    %v2697 = vadd.f32 %v2696, 1.0
    %v2698 = vrcp.pop %v2697
    %v2699 = vmul.f32 1.0, %v2698
    %v2700 = vmul.f32 %v2692, %v2683
    %v2701 = vadd.f32 %v2440, %v2700
    %v2702 = vtanh.pop %v2701
    %v2703 = vsub.f32 1.0, %v2699
    %v2704 = vmul.f32 %v2703, %v2702
    %v2705 = vmul.f32 %v2699, %v2479
    %v2706 = vadd.f32 %v2704, %v2705
    %2707 = vst [vmem:[#allocation2] sm:$0xff] %v2706
    %v2708 = vld [vmem:[#allocation7] sm:$0xff]
    %v2709 = vld [vmem:[#allocation7 + $0x8] sm:$0xff]
    %v2710 = vld [vmem:[#allocation7 + $0x10] sm:$0xff]
    %v2711 = vld [vmem:[#allocation7 + $0x18] sm:$0xff]
    %v2712 = vld [vmem:[#allocation7 + $0x20] sm:$0xff]
    %v2713 = vld [vmem:[#allocation7 + $0x28] sm:$0xff]
    %v2714 = vld [vmem:[#allocation7 + $0x30] sm:$0xff]
    %v2715 = vld [vmem:[#allocation7 + $0x38] sm:$0xff]
    %v2716 = vld [vmem:[#allocation7 + $0x40] sm:$0xff]
    %v2717 = vld [vmem:[#allocation7 + $0x48] sm:$0xff]
    %v2718 = vld [vmem:[#allocation7 + $0x50] sm:$0xff]
    %v2719 = vld [vmem:[#allocation7 + $0x58] sm:$0xff]
    %v2720 = vld [vmem:[#allocation7 + $0x60] sm:$0xff]
    %v2721 = vld [vmem:[#allocation7 + $0x68] sm:$0xff]
    %v2722 = vld [vmem:[#allocation7 + $0x70] sm:$0xff]
    %v2723 = vld [vmem:[#allocation7 + $0x78] sm:$0xff]
    %v2724 = vld [vmem:[#allocation7 + $0x80] sm:$0xff]
    %v2725 = vld [vmem:[#allocation7 + $0x88] sm:$0xff]
    %v2726 = vld [vmem:[#allocation7 + $0x90] sm:$0xff]
    %v2727 = vld [vmem:[#allocation7 + $0x98] sm:$0xff]
    %v2728 = vld [vmem:[#allocation7 + $0xa0] sm:$0xff]
    %v2729 = vld [vmem:[#allocation7 + $0xa8] sm:$0xff]
    %v2730 = vld [vmem:[#allocation7 + $0xb0] sm:$0xff]
    %v2731 = vld [vmem:[#allocation7 + $0xb8] sm:$0xff]
    %v2732 = vld [vmem:[#allocation7 + $0xc0] sm:$0xff]
    %v2733 = vld [vmem:[#allocation7 + $0xc8] sm:$0xff]
    %v2734 = vld [vmem:[#allocation7 + $0xd0] sm:$0xff]
    %v2735 = vld [vmem:[#allocation7 + $0xd8] sm:$0xff]
    %v2736 = vld [vmem:[#allocation7 + $0xe0] sm:$0xff]
    %v2737 = vld [vmem:[#allocation7 + $0xe8] sm:$0xff]
    %v2738 = vld [vmem:[#allocation7 + $0xf0] sm:$0xff]
    %v2739 = vld [vmem:[#allocation7 + $0xf8] sm:$0xff]
    %v2740 = vld [vmem:[#allocation7 + $0x100] sm:$0xff]
    %v2741 = vld [vmem:[#allocation7 + $0x108] sm:$0xff]
    %v2742 = vld [vmem:[#allocation7 + $0x110] sm:$0xff]
    %v2743 = vld [vmem:[#allocation7 + $0x118] sm:$0xff]
    %v2744 = vld [vmem:[#allocation7 + $0x120] sm:$0xff]
    %v2745 = vld [vmem:[#allocation7 + $0x128] sm:$0xff]
    %v2746 = vld [vmem:[#allocation7 + $0x130] sm:$0xff]
    %v2747 = vld [vmem:[#allocation7 + $0x138] sm:$0xff]
    %v2748 = vld [vmem:[#allocation7 + $0x140] sm:$0xff]
    %v2749 = vld [vmem:[#allocation7 + $0x148] sm:$0xff]
    %v2750 = vld [vmem:[#allocation7 + $0x150] sm:$0xff]
    %v2751 = vld [vmem:[#allocation7 + $0x158] sm:$0xff]
    %v2752 = vld [vmem:[#allocation7 + $0x160] sm:$0xff]
    %v2753 = vld [vmem:[#allocation7 + $0x168] sm:$0xff]
    %v2754 = vld [vmem:[#allocation7 + $0x170] sm:$0xff]
    %v2755 = vld [vmem:[#allocation7 + $0x178] sm:$0xff]
    %v2756 = vld [vmem:[%s9] sm:$0x7]
    %v2758 = vlaneseq
    %v2759 = vshrl.u32 %v2758, 7
    %v2760 = vsub.s32 0, %v2759
    %v2761 = vrot.slane %v2756, %v2760
    %v2762 = vlaneseq
    %v2763 = vshrl.u32 %v2762, 7
    %v2764 = vsub.s32 1, %v2763
    %v2765 = vrot.slane %v2756, %v2764
    %v2766 = vlaneseq
    %v2767 = vshrl.u32 %v2766, 7
    %v2768 = vsub.s32 2, %v2767
    %v2769 = vrot.slane %v2756, %v2768
    %2773 = vmatprep.subr.mxu0 %v2754
    %2774 = vmatpush1.msra.mxu0 %v2753
    %2775 = vmatprep.subr.mxu0 %v2751
    %2776 = vmatpush1.msra.mxu0 %v2750
    %2777 = vmatprep.subr.mxu0 %v2748
    %2778 = vmatpush1.msra.mxu0 %v2747
    %2779 = vmatprep.subr.mxu0 %v2745
    %2780 = vmatpush1.msra.mxu0 %v2744
    %2781 = vmatprep.subr.mxu0 %v2742
    %2782 = vmatpush1.msra.mxu0 %v2741
    %2783 = vmatprep.subr.mxu0 %v2739
    %2784 = vmatpush1.msra.mxu0 %v2738
    %2785 = vmatprep.subr.mxu0 %v2736
    %2786 = vmatpush1.msra.mxu0 %v2735
    %2787 = vmatprep.subr.mxu0 %v2733
    %2788 = vmatpush1.msra.mxu0 %v2732
    %2789 = vmatprep.subr.mxu0 %v2730
    %2790 = vmatpush1.msra.mxu0 %v2729
    %2791 = vmatprep.subr.mxu0 %v2727
    %2792 = vmatpush1.msra.mxu0 %v2726
    %2793 = vmatprep.subr.mxu0 %v2724
    %2794 = vmatpush1.msra.mxu0 %v2723
    %2795 = vmatprep.subr.mxu0 %v2721
    %2796 = vmatpush1.msra.mxu0 %v2720
    %2797 = vmatprep.subr.mxu0 %v2718
    %2798 = vmatpush1.msra.mxu0 %v2717
    %2799 = vmatprep.subr.mxu0 %v2715
    %2800 = vmatpush1.msra.mxu0 %v2714
    %2801 = vmatprep.subr.mxu0 %v2712
    %2802 = vmatpush1.msra.mxu0 %v2711
    %2803 = vmatprep.subr.mxu0 %v2709
    %2804 = vmatpush1.msra.mxu0 %v2708
    %2805 = vmatprep.subr.mxu0 0.0
    %2806 = vmatpush2.msra.mxu0 0.0
    %2807 = vmatprep.subr.mxu0 0.0
    %2808 = vmatpush2.msra.mxu0 0.0
    %2809 = vmatprep.subr.mxu0 0.0
    %2810 = vmatpush2.msra.mxu0 0.0
    %2811 = vmatprep.subr.mxu0 0.0
    %2812 = vmatpush2.msra.mxu0 0.0
    %2813 = vmatprep.subr.mxu0 0.0
    %2814 = vmatpush2.msra.mxu0 0.0
    %2815 = vmatprep.subr.mxu0 0.0
    %2816 = vmatpush2.msra.mxu0 0.0
    %2817 = vmatprep.subr.mxu0 0.0
    %2818 = vmatpush2.msra.mxu0 0.0
    %2819 = vmatprep.subr.mxu0 0.0
    %2820 = vmatpush2.msra.mxu0 0.0
    %2821 = vmatprep.subr.mxu0 0.0
    %2822 = vmatpush2.msra.mxu0 0.0
    %2823 = vmatprep.subr.mxu0 0.0
    %2824 = vmatpush2.msra.mxu0 0.0
    %2825 = vmatprep.subr.mxu0 0.0
    %2826 = vmatpush2.msra.mxu0 0.0
    %2827 = vmatprep.subr.mxu0 0.0
    %2828 = vmatpush2.msra.mxu0 0.0
    %2829 = vmatprep.subr.mxu0 0.0
    %2830 = vmatpush2.msra.mxu0 0.0
    %2831 = vmatprep.subr.mxu0 0.0
    %2832 = vmatpush2.msra.mxu0 0.0
    %2833 = vmatprep.subr.mxu0 0.0
    %2834 = vmatpush2.msra.mxu0 0.0
    %2835 = vmatprep.subr.mxu0 0.0
    %2836 = vmatpush2.msra.mxu0 0.0
    %2837 = vmatprep.mubr.f32.mxu0 0.0
    %2838 = vmatmul.mubr.f32.gmra.mxu0 %v2706
    %v2839 = vpop.f32.mrf.mxu0
    %v2840 = vadd.f32 %v2761, %v2839
    %v2841 = vpop.f32.mrf.mxu0
    %v2842 = vadd.f32 %v2765, %v2841
    %2843 = vdwg.mxu0
    %2844 = vmatprep.subr.mxu0 0.0
    %2845 = vmatpush1.msra.mxu0 %v2755
    %2846 = vmatprep.subr.mxu0 0.0
    %2847 = vmatpush1.msra.mxu0 %v2752
    %2848 = vmatprep.subr.mxu0 0.0
    %2849 = vmatpush1.msra.mxu0 %v2749
    %2850 = vmatprep.subr.mxu0 0.0
    %2851 = vmatpush1.msra.mxu0 %v2746
    %2852 = vmatprep.subr.mxu0 0.0
    %2853 = vmatpush1.msra.mxu0 %v2743
    %2854 = vmatprep.subr.mxu0 0.0
    %2855 = vmatpush1.msra.mxu0 %v2740
    %2856 = vmatprep.subr.mxu0 0.0
    %2857 = vmatpush1.msra.mxu0 %v2737
    %2858 = vmatprep.subr.mxu0 0.0
    %2859 = vmatpush1.msra.mxu0 %v2734
    %2860 = vmatprep.subr.mxu0 0.0
    %2861 = vmatpush1.msra.mxu0 %v2731
    %2862 = vmatprep.subr.mxu0 0.0
    %2863 = vmatpush1.msra.mxu0 %v2728
    %2864 = vmatprep.subr.mxu0 0.0
    %2865 = vmatpush1.msra.mxu0 %v2725
    %2866 = vmatprep.subr.mxu0 0.0
    %2867 = vmatpush1.msra.mxu0 %v2722
    %2868 = vmatprep.subr.mxu0 0.0
    %2869 = vmatpush1.msra.mxu0 %v2719
    %2870 = vmatprep.subr.mxu0 0.0
    %2871 = vmatpush1.msra.mxu0 %v2716
    %2872 = vmatprep.subr.mxu0 0.0
    %2873 = vmatpush1.msra.mxu0 %v2713
    %2874 = vmatprep.subr.mxu0 0.0
    %2875 = vmatpush1.msra.mxu0 %v2710
    %2876 = vmatprep.subr.mxu0 0.0
    %2877 = vmatpush2.msra.mxu0 0.0
    %2878 = vmatprep.subr.mxu0 0.0
    %2879 = vmatpush2.msra.mxu0 0.0
    %2880 = vmatprep.subr.mxu0 0.0
    %2881 = vmatpush2.msra.mxu0 0.0
    %2882 = vmatprep.subr.mxu0 0.0
    %2883 = vmatpush2.msra.mxu0 0.0
    %2884 = vmatprep.subr.mxu0 0.0
    %2885 = vmatpush2.msra.mxu0 0.0
    %2886 = vmatprep.subr.mxu0 0.0
    %2887 = vmatpush2.msra.mxu0 0.0
    %2888 = vmatprep.subr.mxu0 0.0
    %2889 = vmatpush2.msra.mxu0 0.0
    %2890 = vmatprep.subr.mxu0 0.0
    %2891 = vmatpush2.msra.mxu0 0.0
    %2892 = vmatprep.subr.mxu0 0.0
    %2893 = vmatpush2.msra.mxu0 0.0
    %2894 = vmatprep.subr.mxu0 0.0
    %2895 = vmatpush2.msra.mxu0 0.0
    %2896 = vmatprep.subr.mxu0 0.0
    %2897 = vmatpush2.msra.mxu0 0.0
    %2898 = vmatprep.subr.mxu0 0.0
    %2899 = vmatpush2.msra.mxu0 0.0
    %2900 = vmatprep.subr.mxu0 0.0
    %2901 = vmatpush2.msra.mxu0 0.0
    %2902 = vmatprep.subr.mxu0 0.0
    %2903 = vmatpush2.msra.mxu0 0.0
    %2904 = vmatprep.subr.mxu0 0.0
    %2905 = vmatpush2.msra.mxu0 0.0
    %2906 = vmatprep.subr.mxu0 0.0
    %2907 = vmatpush2.msra.mxu0 0.0
    %2908 = vmatprep.mubr.f32.mxu0 0.0
    %2909 = vmatmul.mubr.f32.gmra.mxu0 %v2706
    %v2910 = vpop.f32.mrf.mxu0
    %v2911 = vadd.f32 %v2769, %v2910
    %v2912 = vpop.f32.mrf.mxu0
    %2913 = vdwg.mxu0
    %v2914 = vadd.f32 %v2333, %v2840
    %v2915 = vxor.u32 %v2914, 2147483648
    %v2916 = vmul.f32 %v2915, 1.442695
    %v2917 = vpow.pop %v2916
    %v2918 = vadd.f32 %v2917, 1.0
    %v2919 = vrcp.pop %v2918
    %v2920 = vmul.f32 1.0, %v2919
    %v2921 = vadd.f32 %v2335, %v2842
    %v2922 = vxor.u32 %v2921, 2147483648
    %v2923 = vmul.f32 %v2922, 1.442695
    %v2924 = vpow.pop %v2923
    %v2925 = vadd.f32 %v2924, 1.0
    %v2926 = vrcp.pop %v2925
    %v2927 = vmul.f32 1.0, %v2926
    %v2928 = vmul.f32 %v2920, %v2911
    %v2929 = vadd.f32 %v2445, %v2928
    %v2930 = vtanh.pop %v2929
    %v2931 = vsub.f32 1.0, %v2927
    %v2932 = vmul.f32 %v2931, %v2930
    %v2933 = vmul.f32 %v2927, %v2706
    %v2934 = vadd.f32 %v2932, %v2933
    %2935 = vst [vmem:[#allocation2 + $0x8] sm:$0xff] %v2934
    %v2936 = vld [vmem:[#allocation7] sm:$0xff]
    %v2937 = vld [vmem:[#allocation7 + $0x8] sm:$0xff]
    %v2938 = vld [vmem:[#allocation7 + $0x10] sm:$0xff]
    %v2939 = vld [vmem:[#allocation7 + $0x18] sm:$0xff]
    %v2940 = vld [vmem:[#allocation7 + $0x20] sm:$0xff]
    %v2941 = vld [vmem:[#allocation7 + $0x28] sm:$0xff]
    %v2942 = vld [vmem:[#allocation7 + $0x30] sm:$0xff]
    %v2943 = vld [vmem:[#allocation7 + $0x38] sm:$0xff]
    %v2944 = vld [vmem:[#allocation7 + $0x40] sm:$0xff]
    %v2945 = vld [vmem:[#allocation7 + $0x48] sm:$0xff]
    %v2946 = vld [vmem:[#allocation7 + $0x50] sm:$0xff]
    %v2947 = vld [vmem:[#allocation7 + $0x58] sm:$0xff]
    %v2948 = vld [vmem:[#allocation7 + $0x60] sm:$0xff]
    %v2949 = vld [vmem:[#allocation7 + $0x68] sm:$0xff]
    %v2950 = vld [vmem:[#allocation7 + $0x70] sm:$0xff]
    %v2951 = vld [vmem:[#allocation7 + $0x78] sm:$0xff]
    %v2952 = vld [vmem:[#allocation7 + $0x80] sm:$0xff]
    %v2953 = vld [vmem:[#allocation7 + $0x88] sm:$0xff]
    %v2954 = vld [vmem:[#allocation7 + $0x90] sm:$0xff]
    %v2955 = vld [vmem:[#allocation7 + $0x98] sm:$0xff]
    %v2956 = vld [vmem:[#allocation7 + $0xa0] sm:$0xff]
    %v2957 = vld [vmem:[#allocation7 + $0xa8] sm:$0xff]
    %v2958 = vld [vmem:[#allocation7 + $0xb0] sm:$0xff]
    %v2959 = vld [vmem:[#allocation7 + $0xb8] sm:$0xff]
    %v2960 = vld [vmem:[#allocation7 + $0xc0] sm:$0xff]
    %v2961 = vld [vmem:[#allocation7 + $0xc8] sm:$0xff]
    %v2962 = vld [vmem:[#allocation7 + $0xd0] sm:$0xff]
    %v2963 = vld [vmem:[#allocation7 + $0xd8] sm:$0xff]
    %v2964 = vld [vmem:[#allocation7 + $0xe0] sm:$0xff]
    %v2965 = vld [vmem:[#allocation7 + $0xe8] sm:$0xff]
    %v2966 = vld [vmem:[#allocation7 + $0xf0] sm:$0xff]
    %v2967 = vld [vmem:[#allocation7 + $0xf8] sm:$0xff]
    %v2968 = vld [vmem:[#allocation7 + $0x100] sm:$0xff]
    %v2969 = vld [vmem:[#allocation7 + $0x108] sm:$0xff]
    %v2970 = vld [vmem:[#allocation7 + $0x110] sm:$0xff]
    %v2971 = vld [vmem:[#allocation7 + $0x118] sm:$0xff]
    %v2972 = vld [vmem:[#allocation7 + $0x120] sm:$0xff]
    %v2973 = vld [vmem:[#allocation7 + $0x128] sm:$0xff]
    %v2974 = vld [vmem:[#allocation7 + $0x130] sm:$0xff]
    %v2975 = vld [vmem:[#allocation7 + $0x138] sm:$0xff]
    %v2976 = vld [vmem:[#allocation7 + $0x140] sm:$0xff]
    %v2977 = vld [vmem:[#allocation7 + $0x148] sm:$0xff]
    %v2978 = vld [vmem:[#allocation7 + $0x150] sm:$0xff]
    %v2979 = vld [vmem:[#allocation7 + $0x158] sm:$0xff]
    %v2980 = vld [vmem:[#allocation7 + $0x160] sm:$0xff]
    %v2981 = vld [vmem:[#allocation7 + $0x168] sm:$0xff]
    %v2982 = vld [vmem:[#allocation7 + $0x170] sm:$0xff]
    %v2983 = vld [vmem:[#allocation7 + $0x178] sm:$0xff]
    %v2984 = vld [vmem:[%s9] sm:$0x7]
    %v2986 = vlaneseq
    %v2987 = vshrl.u32 %v2986, 7
    %v2988 = vsub.s32 0, %v2987
    %v2989 = vrot.slane %v2984, %v2988
    %v2990 = vlaneseq
    %v2991 = vshrl.u32 %v2990, 7
    %v2992 = vsub.s32 1, %v2991
    %v2993 = vrot.slane %v2984, %v2992
    %v2994 = vlaneseq
    %v2995 = vshrl.u32 %v2994, 7
    %v2996 = vsub.s32 2, %v2995
    %v2997 = vrot.slane %v2984, %v2996
    %3001 = vmatprep.subr.mxu0 %v2982
    %3002 = vmatpush1.msra.mxu0 %v2981
    %3003 = vmatprep.subr.mxu0 %v2979
    %3004 = vmatpush1.msra.mxu0 %v2978
    %3005 = vmatprep.subr.mxu0 %v2976
    %3006 = vmatpush1.msra.mxu0 %v2975
    %3007 = vmatprep.subr.mxu0 %v2973
    %3008 = vmatpush1.msra.mxu0 %v2972
    %3009 = vmatprep.subr.mxu0 %v2970
    %3010 = vmatpush1.msra.mxu0 %v2969
    %3011 = vmatprep.subr.mxu0 %v2967
    %3012 = vmatpush1.msra.mxu0 %v2966
    %3013 = vmatprep.subr.mxu0 %v2964
    %3014 = vmatpush1.msra.mxu0 %v2963
    %3015 = vmatprep.subr.mxu0 %v2961
    %3016 = vmatpush1.msra.mxu0 %v2960
    %3017 = vmatprep.subr.mxu0 %v2958
    %3018 = vmatpush1.msra.mxu0 %v2957
    %3019 = vmatprep.subr.mxu0 %v2955
    %3020 = vmatpush1.msra.mxu0 %v2954
    %3021 = vmatprep.subr.mxu0 %v2952
    %3022 = vmatpush1.msra.mxu0 %v2951
    %3023 = vmatprep.subr.mxu0 %v2949
    %3024 = vmatpush1.msra.mxu0 %v2948
    %3025 = vmatprep.subr.mxu0 %v2946
    %3026 = vmatpush1.msra.mxu0 %v2945
    %3027 = vmatprep.subr.mxu0 %v2943
    %3028 = vmatpush1.msra.mxu0 %v2942
    %3029 = vmatprep.subr.mxu0 %v2940
    %3030 = vmatpush1.msra.mxu0 %v2939
    %3031 = vmatprep.subr.mxu0 %v2937
    %3032 = vmatpush1.msra.mxu0 %v2936
    %3033 = vmatprep.subr.mxu0 0.0
    %3034 = vmatpush2.msra.mxu0 0.0
    %3035 = vmatprep.subr.mxu0 0.0
    %3036 = vmatpush2.msra.mxu0 0.0
    %3037 = vmatprep.subr.mxu0 0.0
    %3038 = vmatpush2.msra.mxu0 0.0
    %3039 = vmatprep.subr.mxu0 0.0
    %3040 = vmatpush2.msra.mxu0 0.0
    %3041 = vmatprep.subr.mxu0 0.0
    %3042 = vmatpush2.msra.mxu0 0.0
    %3043 = vmatprep.subr.mxu0 0.0
    %3044 = vmatpush2.msra.mxu0 0.0
    %3045 = vmatprep.subr.mxu0 0.0
    %3046 = vmatpush2.msra.mxu0 0.0
    %3047 = vmatprep.subr.mxu0 0.0
    %3048 = vmatpush2.msra.mxu0 0.0
    %3049 = vmatprep.subr.mxu0 0.0
    %3050 = vmatpush2.msra.mxu0 0.0
    %3051 = vmatprep.subr.mxu0 0.0
    %3052 = vmatpush2.msra.mxu0 0.0
    %3053 = vmatprep.subr.mxu0 0.0
    %3054 = vmatpush2.msra.mxu0 0.0
    %3055 = vmatprep.subr.mxu0 0.0
    %3056 = vmatpush2.msra.mxu0 0.0
    %3057 = vmatprep.subr.mxu0 0.0
    %3058 = vmatpush2.msra.mxu0 0.0
    %3059 = vmatprep.subr.mxu0 0.0
    %3060 = vmatpush2.msra.mxu0 0.0
    %3061 = vmatprep.subr.mxu0 0.0
    %3062 = vmatpush2.msra.mxu0 0.0
    %3063 = vmatprep.subr.mxu0 0.0
    %3064 = vmatpush2.msra.mxu0 0.0
    %3065 = vmatprep.mubr.f32.mxu0 0.0
    %3066 = vmatmul.mubr.f32.gmra.mxu0 %v2934
    %v3067 = vpop.f32.mrf.mxu0
    %v3068 = vadd.f32 %v2989, %v3067
    %v3069 = vpop.f32.mrf.mxu0
    %v3070 = vadd.f32 %v2993, %v3069
    %3071 = vdwg.mxu0
    %3072 = vmatprep.subr.mxu0 0.0
    %3073 = vmatpush1.msra.mxu0 %v2983
    %3074 = vmatprep.subr.mxu0 0.0
    %3075 = vmatpush1.msra.mxu0 %v2980
    %3076 = vmatprep.subr.mxu0 0.0
    %3077 = vmatpush1.msra.mxu0 %v2977
    %3078 = vmatprep.subr.mxu0 0.0
    %3079 = vmatpush1.msra.mxu0 %v2974
    %3080 = vmatprep.subr.mxu0 0.0
    %3081 = vmatpush1.msra.mxu0 %v2971
    %3082 = vmatprep.subr.mxu0 0.0
    %3083 = vmatpush1.msra.mxu0 %v2968
    %3084 = vmatprep.subr.mxu0 0.0
    %3085 = vmatpush1.msra.mxu0 %v2965
    %3086 = vmatprep.subr.mxu0 0.0
    %3087 = vmatpush1.msra.mxu0 %v2962
    %3088 = vmatprep.subr.mxu0 0.0
    %3089 = vmatpush1.msra.mxu0 %v2959
    %3090 = vmatprep.subr.mxu0 0.0
    %3091 = vmatpush1.msra.mxu0 %v2956
    %3092 = vmatprep.subr.mxu0 0.0
    %3093 = vmatpush1.msra.mxu0 %v2953
    %3094 = vmatprep.subr.mxu0 0.0
    %3095 = vmatpush1.msra.mxu0 %v2950
    %3096 = vmatprep.subr.mxu0 0.0
    %3097 = vmatpush1.msra.mxu0 %v2947
    %3098 = vmatprep.subr.mxu0 0.0
    %3099 = vmatpush1.msra.mxu0 %v2944
    %3100 = vmatprep.subr.mxu0 0.0
    %3101 = vmatpush1.msra.mxu0 %v2941
    %3102 = vmatprep.subr.mxu0 0.0
    %3103 = vmatpush1.msra.mxu0 %v2938
    %3104 = vmatprep.subr.mxu0 0.0
    %3105 = vmatpush2.msra.mxu0 0.0
    %3106 = vmatprep.subr.mxu0 0.0
    %3107 = vmatpush2.msra.mxu0 0.0
    %3108 = vmatprep.subr.mxu0 0.0
    %3109 = vmatpush2.msra.mxu0 0.0
    %3110 = vmatprep.subr.mxu0 0.0
    %3111 = vmatpush2.msra.mxu0 0.0
    %3112 = vmatprep.subr.mxu0 0.0
    %3113 = vmatpush2.msra.mxu0 0.0
    %3114 = vmatprep.subr.mxu0 0.0
    %3115 = vmatpush2.msra.mxu0 0.0
    %3116 = vmatprep.subr.mxu0 0.0
    %3117 = vmatpush2.msra.mxu0 0.0
    %3118 = vmatprep.subr.mxu0 0.0
    %3119 = vmatpush2.msra.mxu0 0.0
    %3120 = vmatprep.subr.mxu0 0.0
    %3121 = vmatpush2.msra.mxu0 0.0
    %3122 = vmatprep.subr.mxu0 0.0
    %3123 = vmatpush2.msra.mxu0 0.0
    %3124 = vmatprep.subr.mxu0 0.0
    %3125 = vmatpush2.msra.mxu0 0.0
    %3126 = vmatprep.subr.mxu0 0.0
    %3127 = vmatpush2.msra.mxu0 0.0
    %3128 = vmatprep.subr.mxu0 0.0
    %3129 = vmatpush2.msra.mxu0 0.0
    %3130 = vmatprep.subr.mxu0 0.0
    %3131 = vmatpush2.msra.mxu0 0.0
    %3132 = vmatprep.subr.mxu0 0.0
    %3133 = vmatpush2.msra.mxu0 0.0
    %3134 = vmatprep.subr.mxu0 0.0
    %3135 = vmatpush2.msra.mxu0 0.0
    %3136 = vmatprep.mubr.f32.mxu0 0.0
    %3137 = vmatmul.mubr.f32.gmra.mxu0 %v2934
    %v3138 = vpop.f32.mrf.mxu0
    %v3139 = vadd.f32 %v2997, %v3138
    %v3140 = vpop.f32.mrf.mxu0
    %3141 = vdwg.mxu0
    %v3142 = vadd.f32 %v2339, %v3068
    %v3143 = vxor.u32 %v3142, 2147483648
    %v3144 = vmul.f32 %v3143, 1.442695
    %v3145 = vpow.pop %v3144
    %v3146 = vadd.f32 %v3145, 1.0
    %v3147 = vrcp.pop %v3146
    %v3148 = vmul.f32 1.0, %v3147
    %v3149 = vadd.f32 %v2341, %v3070
    %v3150 = vxor.u32 %v3149, 2147483648
    %v3151 = vmul.f32 %v3150, 1.442695
    %v3152 = vpow.pop %v3151
    %v3153 = vadd.f32 %v3152, 1.0
    %v3154 = vrcp.pop %v3153
    %v3155 = vmul.f32 1.0, %v3154
    %v3156 = vmul.f32 %v3148, %v3139
    %v3157 = vadd.f32 %v2450, %v3156
    %v3158 = vtanh.pop %v3157
    %v3159 = vsub.f32 1.0, %v3155
    %v3160 = vmul.f32 %v3159, %v3158
    %v3161 = vmul.f32 %v3155, %v2934
    %v3162 = vadd.f32 %v3160, %v3161
    %3163 = vst [vmem:[#allocation2 + $0x10] sm:$0xff] %v3162
    %v3164 = vld [vmem:[#allocation7] sm:$0xff]
    %v3165 = vld [vmem:[#allocation7 + $0x8] sm:$0xff]
    %v3166 = vld [vmem:[#allocation7 + $0x10] sm:$0xff]
    %v3167 = vld [vmem:[#allocation7 + $0x18] sm:$0xff]
    %v3168 = vld [vmem:[#allocation7 + $0x20] sm:$0xff]
    %v3169 = vld [vmem:[#allocation7 + $0x28] sm:$0xff]
    %v3170 = vld [vmem:[#allocation7 + $0x30] sm:$0xff]
    %v3171 = vld [vmem:[#allocation7 + $0x38] sm:$0xff]
    %v3172 = vld [vmem:[#allocation7 + $0x40] sm:$0xff]
    %v3173 = vld [vmem:[#allocation7 + $0x48] sm:$0xff]
    %v3174 = vld [vmem:[#allocation7 + $0x50] sm:$0xff]
    %v3175 = vld [vmem:[#allocation7 + $0x58] sm:$0xff]
    %v3176 = vld [vmem:[#allocation7 + $0x60] sm:$0xff]
    %v3177 = vld [vmem:[#allocation7 + $0x68] sm:$0xff]
    %v3178 = vld [vmem:[#allocation7 + $0x70] sm:$0xff]
    %v3179 = vld [vmem:[#allocation7 + $0x78] sm:$0xff]
    %v3180 = vld [vmem:[#allocation7 + $0x80] sm:$0xff]
    %v3181 = vld [vmem:[#allocation7 + $0x88] sm:$0xff]
    %v3182 = vld [vmem:[#allocation7 + $0x90] sm:$0xff]
    %v3183 = vld [vmem:[#allocation7 + $0x98] sm:$0xff]
    %v3184 = vld [vmem:[#allocation7 + $0xa0] sm:$0xff]
    %v3185 = vld [vmem:[#allocation7 + $0xa8] sm:$0xff]
    %v3186 = vld [vmem:[#allocation7 + $0xb0] sm:$0xff]
    %v3187 = vld [vmem:[#allocation7 + $0xb8] sm:$0xff]
    %v3188 = vld [vmem:[#allocation7 + $0xc0] sm:$0xff]
    %v3189 = vld [vmem:[#allocation7 + $0xc8] sm:$0xff]
    %v3190 = vld [vmem:[#allocation7 + $0xd0] sm:$0xff]
    %v3191 = vld [vmem:[#allocation7 + $0xd8] sm:$0xff]
    %v3192 = vld [vmem:[#allocation7 + $0xe0] sm:$0xff]
    %v3193 = vld [vmem:[#allocation7 + $0xe8] sm:$0xff]
    %v3194 = vld [vmem:[#allocation7 + $0xf0] sm:$0xff]
    %v3195 = vld [vmem:[#allocation7 + $0xf8] sm:$0xff]
    %v3196 = vld [vmem:[#allocation7 + $0x100] sm:$0xff]
    %v3197 = vld [vmem:[#allocation7 + $0x108] sm:$0xff]
    %v3198 = vld [vmem:[#allocation7 + $0x110] sm:$0xff]
    %v3199 = vld [vmem:[#allocation7 + $0x118] sm:$0xff]
    %v3200 = vld [vmem:[#allocation7 + $0x120] sm:$0xff]
    %v3201 = vld [vmem:[#allocation7 + $0x128] sm:$0xff]
    %v3202 = vld [vmem:[#allocation7 + $0x130] sm:$0xff]
    %v3203 = vld [vmem:[#allocation7 + $0x138] sm:$0xff]
    %v3204 = vld [vmem:[#allocation7 + $0x140] sm:$0xff]
    %v3205 = vld [vmem:[#allocation7 + $0x148] sm:$0xff]
    %v3206 = vld [vmem:[#allocation7 + $0x150] sm:$0xff]
    %v3207 = vld [vmem:[#allocation7 + $0x158] sm:$0xff]
    %v3208 = vld [vmem:[#allocation7 + $0x160] sm:$0xff]
    %v3209 = vld [vmem:[#allocation7 + $0x168] sm:$0xff]
    %v3210 = vld [vmem:[#allocation7 + $0x170] sm:$0xff]
    %v3211 = vld [vmem:[#allocation7 + $0x178] sm:$0xff]
    %v3212 = vld [vmem:[%s9] sm:$0x7]
    %v3214 = vlaneseq
    %v3215 = vshrl.u32 %v3214, 7
    %v3216 = vsub.s32 0, %v3215
    %v3217 = vrot.slane %v3212, %v3216
    %v3218 = vlaneseq
    %v3219 = vshrl.u32 %v3218, 7
    %v3220 = vsub.s32 1, %v3219
    %v3221 = vrot.slane %v3212, %v3220
    %v3222 = vlaneseq
    %v3223 = vshrl.u32 %v3222, 7
    %v3224 = vsub.s32 2, %v3223
    %v3225 = vrot.slane %v3212, %v3224
    %3229 = vmatprep.subr.mxu0 %v3210
    %3230 = vmatpush1.msra.mxu0 %v3209
    %3231 = vmatprep.subr.mxu0 %v3207
    %3232 = vmatpush1.msra.mxu0 %v3206
    %3233 = vmatprep.subr.mxu0 %v3204
    %3234 = vmatpush1.msra.mxu0 %v3203
    %3235 = vmatprep.subr.mxu0 %v3201
    %3236 = vmatpush1.msra.mxu0 %v3200
    %3237 = vmatprep.subr.mxu0 %v3198
    %3238 = vmatpush1.msra.mxu0 %v3197
    %3239 = vmatprep.subr.mxu0 %v3195
    %3240 = vmatpush1.msra.mxu0 %v3194
    %3241 = vmatprep.subr.mxu0 %v3192
    %3242 = vmatpush1.msra.mxu0 %v3191
    %3243 = vmatprep.subr.mxu0 %v3189
    %3244 = vmatpush1.msra.mxu0 %v3188
    %3245 = vmatprep.subr.mxu0 %v3186
    %3246 = vmatpush1.msra.mxu0 %v3185
    %3247 = vmatprep.subr.mxu0 %v3183
    %3248 = vmatpush1.msra.mxu0 %v3182
    %3249 = vmatprep.subr.mxu0 %v3180
    %3250 = vmatpush1.msra.mxu0 %v3179
    %3251 = vmatprep.subr.mxu0 %v3177
    %3252 = vmatpush1.msra.mxu0 %v3176
    %3253 = vmatprep.subr.mxu0 %v3174
    %3254 = vmatpush1.msra.mxu0 %v3173
    %3255 = vmatprep.subr.mxu0 %v3171
    %3256 = vmatpush1.msra.mxu0 %v3170
    %3257 = vmatprep.subr.mxu0 %v3168
    %3258 = vmatpush1.msra.mxu0 %v3167
    %3259 = vmatprep.subr.mxu0 %v3165
    %3260 = vmatpush1.msra.mxu0 %v3164
    %3261 = vmatprep.subr.mxu0 0.0
    %3262 = vmatpush2.msra.mxu0 0.0
    %3263 = vmatprep.subr.mxu0 0.0
    %3264 = vmatpush2.msra.mxu0 0.0
    %3265 = vmatprep.subr.mxu0 0.0
    %3266 = vmatpush2.msra.mxu0 0.0
    %3267 = vmatprep.subr.mxu0 0.0
    %3268 = vmatpush2.msra.mxu0 0.0
    %3269 = vmatprep.subr.mxu0 0.0
    %3270 = vmatpush2.msra.mxu0 0.0
    %3271 = vmatprep.subr.mxu0 0.0
    %3272 = vmatpush2.msra.mxu0 0.0
    %3273 = vmatprep.subr.mxu0 0.0
    %3274 = vmatpush2.msra.mxu0 0.0
    %3275 = vmatprep.subr.mxu0 0.0
    %3276 = vmatpush2.msra.mxu0 0.0
    %3277 = vmatprep.subr.mxu0 0.0
    %3278 = vmatpush2.msra.mxu0 0.0
    %3279 = vmatprep.subr.mxu0 0.0
    %3280 = vmatpush2.msra.mxu0 0.0
    %3281 = vmatprep.subr.mxu0 0.0
    %3282 = vmatpush2.msra.mxu0 0.0
    %3283 = vmatprep.subr.mxu0 0.0
    %3284 = vmatpush2.msra.mxu0 0.0
    %3285 = vmatprep.subr.mxu0 0.0
    %3286 = vmatpush2.msra.mxu0 0.0
    %3287 = vmatprep.subr.mxu0 0.0
    %3288 = vmatpush2.msra.mxu0 0.0
    %3289 = vmatprep.subr.mxu0 0.0
    %3290 = vmatpush2.msra.mxu0 0.0
    %3291 = vmatprep.subr.mxu0 0.0
    %3292 = vmatpush2.msra.mxu0 0.0
    %3293 = vmatprep.mubr.f32.mxu0 0.0
    %3294 = vmatmul.mubr.f32.gmra.mxu0 %v3162
    %v3295 = vpop.f32.mrf.mxu0
    %v3296 = vadd.f32 %v3217, %v3295
    %v3297 = vpop.f32.mrf.mxu0
    %v3298 = vadd.f32 %v3221, %v3297
    %3299 = vdwg.mxu0
    %3300 = vmatprep.subr.mxu0 0.0
    %3301 = vmatpush1.msra.mxu0 %v3211
    %3302 = vmatprep.subr.mxu0 0.0
    %3303 = vmatpush1.msra.mxu0 %v3208
    %3304 = vmatprep.subr.mxu0 0.0
    %3305 = vmatpush1.msra.mxu0 %v3205
    %3306 = vmatprep.subr.mxu0 0.0
    %3307 = vmatpush1.msra.mxu0 %v3202
    %3308 = vmatprep.subr.mxu0 0.0
    %3309 = vmatpush1.msra.mxu0 %v3199
    %3310 = vmatprep.subr.mxu0 0.0
    %3311 = vmatpush1.msra.mxu0 %v3196
    %3312 = vmatprep.subr.mxu0 0.0
    %3313 = vmatpush1.msra.mxu0 %v3193
    %3314 = vmatprep.subr.mxu0 0.0
    %3315 = vmatpush1.msra.mxu0 %v3190
    %3316 = vmatprep.subr.mxu0 0.0
    %3317 = vmatpush1.msra.mxu0 %v3187
    %3318 = vmatprep.subr.mxu0 0.0
    %3319 = vmatpush1.msra.mxu0 %v3184
    %3320 = vmatprep.subr.mxu0 0.0
    %3321 = vmatpush1.msra.mxu0 %v3181
    %3322 = vmatprep.subr.mxu0 0.0
    %3323 = vmatpush1.msra.mxu0 %v3178
    %3324 = vmatprep.subr.mxu0 0.0
    %3325 = vmatpush1.msra.mxu0 %v3175
    %3326 = vmatprep.subr.mxu0 0.0
    %3327 = vmatpush1.msra.mxu0 %v3172
    %3328 = vmatprep.subr.mxu0 0.0
    %3329 = vmatpush1.msra.mxu0 %v3169
    %3330 = vmatprep.subr.mxu0 0.0
    %3331 = vmatpush1.msra.mxu0 %v3166
    %3332 = vmatprep.subr.mxu0 0.0
    %3333 = vmatpush2.msra.mxu0 0.0
    %3334 = vmatprep.subr.mxu0 0.0
    %3335 = vmatpush2.msra.mxu0 0.0
    %3336 = vmatprep.subr.mxu0 0.0
    %3337 = vmatpush2.msra.mxu0 0.0
    %3338 = vmatprep.subr.mxu0 0.0
    %3339 = vmatpush2.msra.mxu0 0.0
    %3340 = vmatprep.subr.mxu0 0.0
    %3341 = vmatpush2.msra.mxu0 0.0
    %3342 = vmatprep.subr.mxu0 0.0
    %3343 = vmatpush2.msra.mxu0 0.0
    %3344 = vmatprep.subr.mxu0 0.0
    %3345 = vmatpush2.msra.mxu0 0.0
    %3346 = vmatprep.subr.mxu0 0.0
    %3347 = vmatpush2.msra.mxu0 0.0
    %3348 = vmatprep.subr.mxu0 0.0
    %3349 = vmatpush2.msra.mxu0 0.0
    %3350 = vmatprep.subr.mxu0 0.0
    %3351 = vmatpush2.msra.mxu0 0.0
    %3352 = vmatprep.subr.mxu0 0.0
    %3353 = vmatpush2.msra.mxu0 0.0
    %3354 = vmatprep.subr.mxu0 0.0
    %3355 = vmatpush2.msra.mxu0 0.0
    %3356 = vmatprep.subr.mxu0 0.0
    %3357 = vmatpush2.msra.mxu0 0.0
    %3358 = vmatprep.subr.mxu0 0.0
    %3359 = vmatpush2.msra.mxu0 0.0
    %3360 = vmatprep.subr.mxu0 0.0
    %3361 = vmatpush2.msra.mxu0 0.0
    %3362 = vmatprep.subr.mxu0 0.0
    %3363 = vmatpush2.msra.mxu0 0.0
    %3364 = vmatprep.mubr.f32.mxu0 0.0
    %3365 = vmatmul.mubr.f32.gmra.mxu0 %v3162
    %v3366 = vpop.f32.mrf.mxu0
    %v3367 = vadd.f32 %v3225, %v3366
    %v3368 = vpop.f32.mrf.mxu0
    %3369 = vdwg.mxu0
    %v3370 = vadd.f32 %v2345, %v3296
    %v3371 = vxor.u32 %v3370, 2147483648
    %v3372 = vmul.f32 %v3371, 1.442695
    %v3373 = vpow.pop %v3372
    %v3374 = vadd.f32 %v3373, 1.0
    %v3375 = vrcp.pop %v3374
    %v3376 = vmul.f32 1.0, %v3375
    %v3377 = vadd.f32 %v2347, %v3298
    %v3378 = vxor.u32 %v3377, 2147483648
    %v3379 = vmul.f32 %v3378, 1.442695
    %v3380 = vpow.pop %v3379
    %v3381 = vadd.f32 %v3380, 1.0
    %v3382 = vrcp.pop %v3381
    %v3383 = vmul.f32 1.0, %v3382
    %v3384 = vmul.f32 %v3376, %v3367
    %v3385 = vadd.f32 %v2455, %v3384
    %v3386 = vtanh.pop %v3385
    %v3387 = vsub.f32 1.0, %v3383
    %v3388 = vmul.f32 %v3387, %v3386
    %v3389 = vmul.f32 %v3383, %v3162
    %v3390 = vadd.f32 %v3388, %v3389
    %3391 = vst [vmem:[#allocation2 + $0x18] sm:$0xff] %v3390
    %v3392 = vld [vmem:[#allocation7] sm:$0xff]
    %v3393 = vld [vmem:[#allocation7 + $0x8] sm:$0xff]
    %v3394 = vld [vmem:[#allocation7 + $0x10] sm:$0xff]
    %v3395 = vld [vmem:[#allocation7 + $0x18] sm:$0xff]
    %v3396 = vld [vmem:[#allocation7 + $0x20] sm:$0xff]
    %v3397 = vld [vmem:[#allocation7 + $0x28] sm:$0xff]
    %v3398 = vld [vmem:[#allocation7 + $0x30] sm:$0xff]
    %v3399 = vld [vmem:[#allocation7 + $0x38] sm:$0xff]
    %v3400 = vld [vmem:[#allocation7 + $0x40] sm:$0xff]
    %v3401 = vld [vmem:[#allocation7 + $0x48] sm:$0xff]
    %v3402 = vld [vmem:[#allocation7 + $0x50] sm:$0xff]
    %v3403 = vld [vmem:[#allocation7 + $0x58] sm:$0xff]
    %v3404 = vld [vmem:[#allocation7 + $0x60] sm:$0xff]
    %v3405 = vld [vmem:[#allocation7 + $0x68] sm:$0xff]
    %v3406 = vld [vmem:[#allocation7 + $0x70] sm:$0xff]
    %v3407 = vld [vmem:[#allocation7 + $0x78] sm:$0xff]
    %v3408 = vld [vmem:[#allocation7 + $0x80] sm:$0xff]
    %v3409 = vld [vmem:[#allocation7 + $0x88] sm:$0xff]
    %v3410 = vld [vmem:[#allocation7 + $0x90] sm:$0xff]
    %v3411 = vld [vmem:[#allocation7 + $0x98] sm:$0xff]
    %v3412 = vld [vmem:[#allocation7 + $0xa0] sm:$0xff]
    %v3413 = vld [vmem:[#allocation7 + $0xa8] sm:$0xff]
    %v3414 = vld [vmem:[#allocation7 + $0xb0] sm:$0xff]
    %v3415 = vld [vmem:[#allocation7 + $0xb8] sm:$0xff]
    %v3416 = vld [vmem:[#allocation7 + $0xc0] sm:$0xff]
    %v3417 = vld [vmem:[#allocation7 + $0xc8] sm:$0xff]
    %v3418 = vld [vmem:[#allocation7 + $0xd0] sm:$0xff]
    %v3419 = vld [vmem:[#allocation7 + $0xd8] sm:$0xff]
    %v3420 = vld [vmem:[#allocation7 + $0xe0] sm:$0xff]
    %v3421 = vld [vmem:[#allocation7 + $0xe8] sm:$0xff]
    %v3422 = vld [vmem:[#allocation7 + $0xf0] sm:$0xff]
    %v3423 = vld [vmem:[#allocation7 + $0xf8] sm:$0xff]
    %v3424 = vld [vmem:[#allocation7 + $0x100] sm:$0xff]
    %v3425 = vld [vmem:[#allocation7 + $0x108] sm:$0xff]
    %v3426 = vld [vmem:[#allocation7 + $0x110] sm:$0xff]
    %v3427 = vld [vmem:[#allocation7 + $0x118] sm:$0xff]
    %v3428 = vld [vmem:[#allocation7 + $0x120] sm:$0xff]
    %v3429 = vld [vmem:[#allocation7 + $0x128] sm:$0xff]
    %v3430 = vld [vmem:[#allocation7 + $0x130] sm:$0xff]
    %v3431 = vld [vmem:[#allocation7 + $0x138] sm:$0xff]
    %v3432 = vld [vmem:[#allocation7 + $0x140] sm:$0xff]
    %v3433 = vld [vmem:[#allocation7 + $0x148] sm:$0xff]
    %v3434 = vld [vmem:[#allocation7 + $0x150] sm:$0xff]
    %v3435 = vld [vmem:[#allocation7 + $0x158] sm:$0xff]
    %v3436 = vld [vmem:[#allocation7 + $0x160] sm:$0xff]
    %v3437 = vld [vmem:[#allocation7 + $0x168] sm:$0xff]
    %v3438 = vld [vmem:[#allocation7 + $0x170] sm:$0xff]
    %v3439 = vld [vmem:[#allocation7 + $0x178] sm:$0xff]
    %v3440 = vld [vmem:[%s9] sm:$0x7]
    %v3442 = vlaneseq
    %v3443 = vshrl.u32 %v3442, 7
    %v3444 = vsub.s32 0, %v3443
    %v3445 = vrot.slane %v3440, %v3444
    %v3446 = vlaneseq
    %v3447 = vshrl.u32 %v3446, 7
    %v3448 = vsub.s32 1, %v3447
    %v3449 = vrot.slane %v3440, %v3448
    %v3450 = vlaneseq
    %v3451 = vshrl.u32 %v3450, 7
    %v3452 = vsub.s32 2, %v3451
    %v3453 = vrot.slane %v3440, %v3452
    %3457 = vmatprep.subr.mxu0 %v3438
    %3458 = vmatpush1.msra.mxu0 %v3437
    %3459 = vmatprep.subr.mxu0 %v3435
    %3460 = vmatpush1.msra.mxu0 %v3434
    %3461 = vmatprep.subr.mxu0 %v3432
    %3462 = vmatpush1.msra.mxu0 %v3431
    %3463 = vmatprep.subr.mxu0 %v3429
    %3464 = vmatpush1.msra.mxu0 %v3428
    %3465 = vmatprep.subr.mxu0 %v3426
    %3466 = vmatpush1.msra.mxu0 %v3425
    %3467 = vmatprep.subr.mxu0 %v3423
    %3468 = vmatpush1.msra.mxu0 %v3422
    %3469 = vmatprep.subr.mxu0 %v3420
    %3470 = vmatpush1.msra.mxu0 %v3419
    %3471 = vmatprep.subr.mxu0 %v3417
    %3472 = vmatpush1.msra.mxu0 %v3416
    %3473 = vmatprep.subr.mxu0 %v3414
    %3474 = vmatpush1.msra.mxu0 %v3413
    %3475 = vmatprep.subr.mxu0 %v3411
    %3476 = vmatpush1.msra.mxu0 %v3410
    %3477 = vmatprep.subr.mxu0 %v3408
    %3478 = vmatpush1.msra.mxu0 %v3407
    %3479 = vmatprep.subr.mxu0 %v3405
    %3480 = vmatpush1.msra.mxu0 %v3404
    %3481 = vmatprep.subr.mxu0 %v3402
    %3482 = vmatpush1.msra.mxu0 %v3401
    %3483 = vmatprep.subr.mxu0 %v3399
    %3484 = vmatpush1.msra.mxu0 %v3398
    %3485 = vmatprep.subr.mxu0 %v3396
    %3486 = vmatpush1.msra.mxu0 %v3395
    %3487 = vmatprep.subr.mxu0 %v3393
    %3488 = vmatpush1.msra.mxu0 %v3392
    %3489 = vmatprep.subr.mxu0 0.0
    %3490 = vmatpush2.msra.mxu0 0.0
    %3491 = vmatprep.subr.mxu0 0.0
    %3492 = vmatpush2.msra.mxu0 0.0
    %3493 = vmatprep.subr.mxu0 0.0
    %3494 = vmatpush2.msra.mxu0 0.0
    %3495 = vmatprep.subr.mxu0 0.0
    %3496 = vmatpush2.msra.mxu0 0.0
    %3497 = vmatprep.subr.mxu0 0.0
    %3498 = vmatpush2.msra.mxu0 0.0
    %3499 = vmatprep.subr.mxu0 0.0
    %3500 = vmatpush2.msra.mxu0 0.0
    %3501 = vmatprep.subr.mxu0 0.0
    %3502 = vmatpush2.msra.mxu0 0.0
    %3503 = vmatprep.subr.mxu0 0.0
    %3504 = vmatpush2.msra.mxu0 0.0
    %3505 = vmatprep.subr.mxu0 0.0
    %3506 = vmatpush2.msra.mxu0 0.0
    %3507 = vmatprep.subr.mxu0 0.0
    %3508 = vmatpush2.msra.mxu0 0.0
    %3509 = vmatprep.subr.mxu0 0.0
    %3510 = vmatpush2.msra.mxu0 0.0
    %3511 = vmatprep.subr.mxu0 0.0
    %3512 = vmatpush2.msra.mxu0 0.0
    %3513 = vmatprep.subr.mxu0 0.0
    %3514 = vmatpush2.msra.mxu0 0.0
    %3515 = vmatprep.subr.mxu0 0.0
    %3516 = vmatpush2.msra.mxu0 0.0
    %3517 = vmatprep.subr.mxu0 0.0
    %3518 = vmatpush2.msra.mxu0 0.0
    %3519 = vmatprep.subr.mxu0 0.0
    %3520 = vmatpush2.msra.mxu0 0.0
    %3521 = vmatprep.mubr.f32.mxu0 0.0
    %3522 = vmatmul.mubr.f32.gmra.mxu0 %v3390
    %v3523 = vpop.f32.mrf.mxu0
    %v3524 = vadd.f32 %v3445, %v3523
    %v3525 = vpop.f32.mrf.mxu0
    %v3526 = vadd.f32 %v3449, %v3525
    %3527 = vdwg.mxu0
    %3528 = vmatprep.subr.mxu0 0.0
    %3529 = vmatpush1.msra.mxu0 %v3439
    %3530 = vmatprep.subr.mxu0 0.0
    %3531 = vmatpush1.msra.mxu0 %v3436
    %3532 = vmatprep.subr.mxu0 0.0
    %3533 = vmatpush1.msra.mxu0 %v3433
    %3534 = vmatprep.subr.mxu0 0.0
    %3535 = vmatpush1.msra.mxu0 %v3430
    %3536 = vmatprep.subr.mxu0 0.0
    %3537 = vmatpush1.msra.mxu0 %v3427
    %3538 = vmatprep.subr.mxu0 0.0
    %3539 = vmatpush1.msra.mxu0 %v3424
    %3540 = vmatprep.subr.mxu0 0.0
    %3541 = vmatpush1.msra.mxu0 %v3421
    %3542 = vmatprep.subr.mxu0 0.0
    %3543 = vmatpush1.msra.mxu0 %v3418
    %3544 = vmatprep.subr.mxu0 0.0
    %3545 = vmatpush1.msra.mxu0 %v3415
    %3546 = vmatprep.subr.mxu0 0.0
    %3547 = vmatpush1.msra.mxu0 %v3412
    %3548 = vmatprep.subr.mxu0 0.0
    %3549 = vmatpush1.msra.mxu0 %v3409
    %3550 = vmatprep.subr.mxu0 0.0
    %3551 = vmatpush1.msra.mxu0 %v3406
    %3552 = vmatprep.subr.mxu0 0.0
    %3553 = vmatpush1.msra.mxu0 %v3403
    %3554 = vmatprep.subr.mxu0 0.0
    %3555 = vmatpush1.msra.mxu0 %v3400
    %3556 = vmatprep.subr.mxu0 0.0
    %3557 = vmatpush1.msra.mxu0 %v3397
    %3558 = vmatprep.subr.mxu0 0.0
    %3559 = vmatpush1.msra.mxu0 %v3394
    %3560 = vmatprep.subr.mxu0 0.0
    %3561 = vmatpush2.msra.mxu0 0.0
    %3562 = vmatprep.subr.mxu0 0.0
    %3563 = vmatpush2.msra.mxu0 0.0
    %3564 = vmatprep.subr.mxu0 0.0
    %3565 = vmatpush2.msra.mxu0 0.0
    %3566 = vmatprep.subr.mxu0 0.0
    %3567 = vmatpush2.msra.mxu0 0.0
    %3568 = vmatprep.subr.mxu0 0.0
    %3569 = vmatpush2.msra.mxu0 0.0
    %3570 = vmatprep.subr.mxu0 0.0
    %3571 = vmatpush2.msra.mxu0 0.0
    %3572 = vmatprep.subr.mxu0 0.0
    %3573 = vmatpush2.msra.mxu0 0.0
    %3574 = vmatprep.subr.mxu0 0.0
    %3575 = vmatpush2.msra.mxu0 0.0
    %3576 = vmatprep.subr.mxu0 0.0
    %3577 = vmatpush2.msra.mxu0 0.0
    %3578 = vmatprep.subr.mxu0 0.0
    %3579 = vmatpush2.msra.mxu0 0.0
    %3580 = vmatprep.subr.mxu0 0.0
    %3581 = vmatpush2.msra.mxu0 0.0
    %3582 = vmatprep.subr.mxu0 0.0
    %3583 = vmatpush2.msra.mxu0 0.0
    %3584 = vmatprep.subr.mxu0 0.0
    %3585 = vmatpush2.msra.mxu0 0.0
    %3586 = vmatprep.subr.mxu0 0.0
    %3587 = vmatpush2.msra.mxu0 0.0
    %3588 = vmatprep.subr.mxu0 0.0
    %3589 = vmatpush2.msra.mxu0 0.0
    %3590 = vmatprep.subr.mxu0 0.0
    %3591 = vmatpush2.msra.mxu0 0.0
    %3592 = vmatprep.mubr.f32.mxu0 0.0
    %3593 = vmatmul.mubr.f32.gmra.mxu0 %v3390
    %v3594 = vpop.f32.mrf.mxu0
    %v3595 = vadd.f32 %v3453, %v3594
    %v3596 = vpop.f32.mrf.mxu0
    %3597 = vdwg.mxu0
    %v3598 = vadd.f32 %v2351, %v3524
    %v3599 = vxor.u32 %v3598, 2147483648
    %v3600 = vmul.f32 %v3599, 1.442695
    %v3601 = vpow.pop %v3600
    %v3602 = vadd.f32 %v3601, 1.0
    %v3603 = vrcp.pop %v3602
    %v3604 = vmul.f32 1.0, %v3603
    %v3605 = vadd.f32 %v2353, %v3526
    %v3606 = vxor.u32 %v3605, 2147483648
    %v3607 = vmul.f32 %v3606, 1.442695
    %v3608 = vpow.pop %v3607
    %v3609 = vadd.f32 %v3608, 1.0
    %v3610 = vrcp.pop %v3609
    %v3611 = vmul.f32 1.0, %v3610
    %v3612 = vmul.f32 %v3604, %v3595
    %v3613 = vadd.f32 %v2460, %v3612
    %v3614 = vtanh.pop %v3613
    %v3615 = vsub.f32 1.0, %v3611
    %v3616 = vmul.f32 %v3615, %v3614
    %v3617 = vmul.f32 %v3611, %v3390
    %v3618 = vadd.f32 %v3616, %v3617
    %3619 = vst [vmem:[#allocation2 + $0x20] sm:$0xff] %v3618
    %v3620 = vld [vmem:[#allocation7] sm:$0xff]
    %v3621 = vld [vmem:[#allocation7 + $0x8] sm:$0xff]
    %v3622 = vld [vmem:[#allocation7 + $0x10] sm:$0xff]
    %v3623 = vld [vmem:[#allocation7 + $0x18] sm:$0xff]
    %v3624 = vld [vmem:[#allocation7 + $0x20] sm:$0xff]
    %v3625 = vld [vmem:[#allocation7 + $0x28] sm:$0xff]
    %v3626 = vld [vmem:[#allocation7 + $0x30] sm:$0xff]
    %v3627 = vld [vmem:[#allocation7 + $0x38] sm:$0xff]
    %v3628 = vld [vmem:[#allocation7 + $0x40] sm:$0xff]
    %v3629 = vld [vmem:[#allocation7 + $0x48] sm:$0xff]
    %v3630 = vld [vmem:[#allocation7 + $0x50] sm:$0xff]
    %v3631 = vld [vmem:[#allocation7 + $0x58] sm:$0xff]
    %v3632 = vld [vmem:[#allocation7 + $0x60] sm:$0xff]
    %v3633 = vld [vmem:[#allocation7 + $0x68] sm:$0xff]
    %v3634 = vld [vmem:[#allocation7 + $0x70] sm:$0xff]
    %v3635 = vld [vmem:[#allocation7 + $0x78] sm:$0xff]
    %v3636 = vld [vmem:[#allocation7 + $0x80] sm:$0xff]
    %v3637 = vld [vmem:[#allocation7 + $0x88] sm:$0xff]
    %v3638 = vld [vmem:[#allocation7 + $0x90] sm:$0xff]
    %v3639 = vld [vmem:[#allocation7 + $0x98] sm:$0xff]
    %v3640 = vld [vmem:[#allocation7 + $0xa0] sm:$0xff]
    %v3641 = vld [vmem:[#allocation7 + $0xa8] sm:$0xff]
    %v3642 = vld [vmem:[#allocation7 + $0xb0] sm:$0xff]
    %v3643 = vld [vmem:[#allocation7 + $0xb8] sm:$0xff]
    %v3644 = vld [vmem:[#allocation7 + $0xc0] sm:$0xff]
    %v3645 = vld [vmem:[#allocation7 + $0xc8] sm:$0xff]
    %v3646 = vld [vmem:[#allocation7 + $0xd0] sm:$0xff]
    %v3647 = vld [vmem:[#allocation7 + $0xd8] sm:$0xff]
    %v3648 = vld [vmem:[#allocation7 + $0xe0] sm:$0xff]
    %v3649 = vld [vmem:[#allocation7 + $0xe8] sm:$0xff]
    %v3650 = vld [vmem:[#allocation7 + $0xf0] sm:$0xff]
    %v3651 = vld [vmem:[#allocation7 + $0xf8] sm:$0xff]
    %v3652 = vld [vmem:[#allocation7 + $0x100] sm:$0xff]
    %v3653 = vld [vmem:[#allocation7 + $0x108] sm:$0xff]
    %v3654 = vld [vmem:[#allocation7 + $0x110] sm:$0xff]
    %v3655 = vld [vmem:[#allocation7 + $0x118] sm:$0xff]
    %v3656 = vld [vmem:[#allocation7 + $0x120] sm:$0xff]
    %v3657 = vld [vmem:[#allocation7 + $0x128] sm:$0xff]
    %v3658 = vld [vmem:[#allocation7 + $0x130] sm:$0xff]
    %v3659 = vld [vmem:[#allocation7 + $0x138] sm:$0xff]
    %v3660 = vld [vmem:[#allocation7 + $0x140] sm:$0xff]
    %v3661 = vld [vmem:[#allocation7 + $0x148] sm:$0xff]
    %v3662 = vld [vmem:[#allocation7 + $0x150] sm:$0xff]
    %v3663 = vld [vmem:[#allocation7 + $0x158] sm:$0xff]
    %v3664 = vld [vmem:[#allocation7 + $0x160] sm:$0xff]
    %v3665 = vld [vmem:[#allocation7 + $0x168] sm:$0xff]
    %v3666 = vld [vmem:[#allocation7 + $0x170] sm:$0xff]
    %v3667 = vld [vmem:[#allocation7 + $0x178] sm:$0xff]
    %v3668 = vld [vmem:[%s9] sm:$0x7]
    %v3670 = vlaneseq
    %v3671 = vshrl.u32 %v3670, 7
    %v3672 = vsub.s32 0, %v3671
    %v3673 = vrot.slane %v3668, %v3672
    %v3674 = vlaneseq
    %v3675 = vshrl.u32 %v3674, 7
    %v3676 = vsub.s32 1, %v3675
    %v3677 = vrot.slane %v3668, %v3676
    %v3678 = vlaneseq
    %v3679 = vshrl.u32 %v3678, 7
    %v3680 = vsub.s32 2, %v3679
    %v3681 = vrot.slane %v3668, %v3680
    %3685 = vmatprep.subr.mxu0 %v3666
    %3686 = vmatpush1.msra.mxu0 %v3665
    %3687 = vmatprep.subr.mxu0 %v3663
    %3688 = vmatpush1.msra.mxu0 %v3662
    %3689 = vmatprep.subr.mxu0 %v3660
    %3690 = vmatpush1.msra.mxu0 %v3659
    %3691 = vmatprep.subr.mxu0 %v3657
    %3692 = vmatpush1.msra.mxu0 %v3656
    %3693 = vmatprep.subr.mxu0 %v3654
    %3694 = vmatpush1.msra.mxu0 %v3653
    %3695 = vmatprep.subr.mxu0 %v3651
    %3696 = vmatpush1.msra.mxu0 %v3650
    %3697 = vmatprep.subr.mxu0 %v3648
    %3698 = vmatpush1.msra.mxu0 %v3647
    %3699 = vmatprep.subr.mxu0 %v3645
    %3700 = vmatpush1.msra.mxu0 %v3644
    %3701 = vmatprep.subr.mxu0 %v3642
    %3702 = vmatpush1.msra.mxu0 %v3641
    %3703 = vmatprep.subr.mxu0 %v3639
    %3704 = vmatpush1.msra.mxu0 %v3638
    %3705 = vmatprep.subr.mxu0 %v3636
    %3706 = vmatpush1.msra.mxu0 %v3635
    %3707 = vmatprep.subr.mxu0 %v3633
    %3708 = vmatpush1.msra.mxu0 %v3632
    %3709 = vmatprep.subr.mxu0 %v3630
    %3710 = vmatpush1.msra.mxu0 %v3629
    %3711 = vmatprep.subr.mxu0 %v3627
    %3712 = vmatpush1.msra.mxu0 %v3626
    %3713 = vmatprep.subr.mxu0 %v3624
    %3714 = vmatpush1.msra.mxu0 %v3623
    %3715 = vmatprep.subr.mxu0 %v3621
    %3716 = vmatpush1.msra.mxu0 %v3620
    %3717 = vmatprep.subr.mxu0 0.0
    %3718 = vmatpush2.msra.mxu0 0.0
    %3719 = vmatprep.subr.mxu0 0.0
    %3720 = vmatpush2.msra.mxu0 0.0
    %3721 = vmatprep.subr.mxu0 0.0
    %3722 = vmatpush2.msra.mxu0 0.0
    %3723 = vmatprep.subr.mxu0 0.0
    %3724 = vmatpush2.msra.mxu0 0.0
    %3725 = vmatprep.subr.mxu0 0.0
    %3726 = vmatpush2.msra.mxu0 0.0
    %3727 = vmatprep.subr.mxu0 0.0
    %3728 = vmatpush2.msra.mxu0 0.0
    %3729 = vmatprep.subr.mxu0 0.0
    %3730 = vmatpush2.msra.mxu0 0.0
    %3731 = vmatprep.subr.mxu0 0.0
    %3732 = vmatpush2.msra.mxu0 0.0
    %3733 = vmatprep.subr.mxu0 0.0
    %3734 = vmatpush2.msra.mxu0 0.0
    %3735 = vmatprep.subr.mxu0 0.0
    %3736 = vmatpush2.msra.mxu0 0.0
    %3737 = vmatprep.subr.mxu0 0.0
    %3738 = vmatpush2.msra.mxu0 0.0
    %3739 = vmatprep.subr.mxu0 0.0
    %3740 = vmatpush2.msra.mxu0 0.0
    %3741 = vmatprep.subr.mxu0 0.0
    %3742 = vmatpush2.msra.mxu0 0.0
    %3743 = vmatprep.subr.mxu0 0.0
    %3744 = vmatpush2.msra.mxu0 0.0
    %3745 = vmatprep.subr.mxu0 0.0
    %3746 = vmatpush2.msra.mxu0 0.0
    %3747 = vmatprep.subr.mxu0 0.0
    %3748 = vmatpush2.msra.mxu0 0.0
    %3749 = vmatprep.mubr.f32.mxu0 0.0
    %3750 = vmatmul.mubr.f32.gmra.mxu0 %v3618
    %v3751 = vpop.f32.mrf.mxu0
    %v3752 = vadd.f32 %v3673, %v3751
    %v3753 = vpop.f32.mrf.mxu0
    %v3754 = vadd.f32 %v3677, %v3753
    %3755 = vdwg.mxu0
    %3756 = vmatprep.subr.mxu0 0.0
    %3757 = vmatpush1.msra.mxu0 %v3667
    %3758 = vmatprep.subr.mxu0 0.0
    %3759 = vmatpush1.msra.mxu0 %v3664
    %3760 = vmatprep.subr.mxu0 0.0
    %3761 = vmatpush1.msra.mxu0 %v3661
    %3762 = vmatprep.subr.mxu0 0.0
    %3763 = vmatpush1.msra.mxu0 %v3658
    %3764 = vmatprep.subr.mxu0 0.0
    %3765 = vmatpush1.msra.mxu0 %v3655
    %3766 = vmatprep.subr.mxu0 0.0
    %3767 = vmatpush1.msra.mxu0 %v3652
    %3768 = vmatprep.subr.mxu0 0.0
    %3769 = vmatpush1.msra.mxu0 %v3649
    %3770 = vmatprep.subr.mxu0 0.0
    %3771 = vmatpush1.msra.mxu0 %v3646
    %3772 = vmatprep.subr.mxu0 0.0
    %3773 = vmatpush1.msra.mxu0 %v3643
    %3774 = vmatprep.subr.mxu0 0.0
    %3775 = vmatpush1.msra.mxu0 %v3640
    %3776 = vmatprep.subr.mxu0 0.0
    %3777 = vmatpush1.msra.mxu0 %v3637
    %3778 = vmatprep.subr.mxu0 0.0
    %3779 = vmatpush1.msra.mxu0 %v3634
    %3780 = vmatprep.subr.mxu0 0.0
    %3781 = vmatpush1.msra.mxu0 %v3631
    %3782 = vmatprep.subr.mxu0 0.0
    %3783 = vmatpush1.msra.mxu0 %v3628
    %3784 = vmatprep.subr.mxu0 0.0
    %3785 = vmatpush1.msra.mxu0 %v3625
    %3786 = vmatprep.subr.mxu0 0.0
    %3787 = vmatpush1.msra.mxu0 %v3622
    %3788 = vmatprep.subr.mxu0 0.0
    %3789 = vmatpush2.msra.mxu0 0.0
    %3790 = vmatprep.subr.mxu0 0.0
    %3791 = vmatpush2.msra.mxu0 0.0
    %3792 = vmatprep.subr.mxu0 0.0
    %3793 = vmatpush2.msra.mxu0 0.0
    %3794 = vmatprep.subr.mxu0 0.0
    %3795 = vmatpush2.msra.mxu0 0.0
    %3796 = vmatprep.subr.mxu0 0.0
    %3797 = vmatpush2.msra.mxu0 0.0
    %3798 = vmatprep.subr.mxu0 0.0
    %3799 = vmatpush2.msra.mxu0 0.0
    %3800 = vmatprep.subr.mxu0 0.0
    %3801 = vmatpush2.msra.mxu0 0.0
    %3802 = vmatprep.subr.mxu0 0.0
    %3803 = vmatpush2.msra.mxu0 0.0
    %3804 = vmatprep.subr.mxu0 0.0
    %3805 = vmatpush2.msra.mxu0 0.0
    %3806 = vmatprep.subr.mxu0 0.0
    %3807 = vmatpush2.msra.mxu0 0.0
    %3808 = vmatprep.subr.mxu0 0.0
    %3809 = vmatpush2.msra.mxu0 0.0
    %3810 = vmatprep.subr.mxu0 0.0
    %3811 = vmatpush2.msra.mxu0 0.0
    %3812 = vmatprep.subr.mxu0 0.0
    %3813 = vmatpush2.msra.mxu0 0.0
    %3814 = vmatprep.subr.mxu0 0.0
    %3815 = vmatpush2.msra.mxu0 0.0
    %3816 = vmatprep.subr.mxu0 0.0
    %3817 = vmatpush2.msra.mxu0 0.0
    %3818 = vmatprep.subr.mxu0 0.0
    %3819 = vmatpush2.msra.mxu0 0.0
    %3820 = vmatprep.mubr.f32.mxu0 0.0
    %3821 = vmatmul.mubr.f32.gmra.mxu0 %v3618
    %v3822 = vpop.f32.mrf.mxu0
    %v3823 = vadd.f32 %v3681, %v3822
    %v3824 = vpop.f32.mrf.mxu0
    %3825 = vdwg.mxu0
    %v3826 = vadd.f32 %v2357, %v3752
    %v3827 = vxor.u32 %v3826, 2147483648
    %v3828 = vmul.f32 %v3827, 1.442695
    %v3829 = vpow.pop %v3828
    %v3830 = vadd.f32 %v3829, 1.0
    %v3831 = vrcp.pop %v3830
    %v3832 = vmul.f32 1.0, %v3831
    %v3833 = vadd.f32 %v2359, %v3754
    %v3834 = vxor.u32 %v3833, 2147483648
    %v3835 = vmul.f32 %v3834, 1.442695
    %v3836 = vpow.pop %v3835
    %v3837 = vadd.f32 %v3836, 1.0
    %v3838 = vrcp.pop %v3837
    %v3839 = vmul.f32 1.0, %v3838
    %v3840 = vmul.f32 %v3832, %v3823
    %v3841 = vadd.f32 %v2465, %v3840
    %v3842 = vtanh.pop %v3841
    %v3843 = vsub.f32 1.0, %v3839
    %v3844 = vmul.f32 %v3843, %v3842
    %v3845 = vmul.f32 %v3839, %v3618
    %v3846 = vadd.f32 %v3844, %v3845
    %3847 = vst [vmem:[#allocation2 + $0x28] sm:$0xff] %v3846
    %v3848 = vld [vmem:[#allocation7] sm:$0xff]
    %v3849 = vld [vmem:[#allocation7 + $0x8] sm:$0xff]
    %v3850 = vld [vmem:[#allocation7 + $0x10] sm:$0xff]
    %v3851 = vld [vmem:[#allocation7 + $0x18] sm:$0xff]
    %v3852 = vld [vmem:[#allocation7 + $0x20] sm:$0xff]
    %v3853 = vld [vmem:[#allocation7 + $0x28] sm:$0xff]
    %v3854 = vld [vmem:[#allocation7 + $0x30] sm:$0xff]
    %v3855 = vld [vmem:[#allocation7 + $0x38] sm:$0xff]
    %v3856 = vld [vmem:[#allocation7 + $0x40] sm:$0xff]
    %v3857 = vld [vmem:[#allocation7 + $0x48] sm:$0xff]
    %v3858 = vld [vmem:[#allocation7 + $0x50] sm:$0xff]
    %v3859 = vld [vmem:[#allocation7 + $0x58] sm:$0xff]
    %v3860 = vld [vmem:[#allocation7 + $0x60] sm:$0xff]
    %v3861 = vld [vmem:[#allocation7 + $0x68] sm:$0xff]
    %v3862 = vld [vmem:[#allocation7 + $0x70] sm:$0xff]
    %v3863 = vld [vmem:[#allocation7 + $0x78] sm:$0xff]
    %v3864 = vld [vmem:[#allocation7 + $0x80] sm:$0xff]
    %v3865 = vld [vmem:[#allocation7 + $0x88] sm:$0xff]
    %v3866 = vld [vmem:[#allocation7 + $0x90] sm:$0xff]
    %v3867 = vld [vmem:[#allocation7 + $0x98] sm:$0xff]
    %v3868 = vld [vmem:[#allocation7 + $0xa0] sm:$0xff]
    %v3869 = vld [vmem:[#allocation7 + $0xa8] sm:$0xff]
    %v3870 = vld [vmem:[#allocation7 + $0xb0] sm:$0xff]
    %v3871 = vld [vmem:[#allocation7 + $0xb8] sm:$0xff]
    %v3872 = vld [vmem:[#allocation7 + $0xc0] sm:$0xff]
    %v3873 = vld [vmem:[#allocation7 + $0xc8] sm:$0xff]
    %v3874 = vld [vmem:[#allocation7 + $0xd0] sm:$0xff]
    %v3875 = vld [vmem:[#allocation7 + $0xd8] sm:$0xff]
    %v3876 = vld [vmem:[#allocation7 + $0xe0] sm:$0xff]
    %v3877 = vld [vmem:[#allocation7 + $0xe8] sm:$0xff]
    %v3878 = vld [vmem:[#allocation7 + $0xf0] sm:$0xff]
    %v3879 = vld [vmem:[#allocation7 + $0xf8] sm:$0xff]
    %v3880 = vld [vmem:[#allocation7 + $0x100] sm:$0xff]
    %v3881 = vld [vmem:[#allocation7 + $0x108] sm:$0xff]
    %v3882 = vld [vmem:[#allocation7 + $0x110] sm:$0xff]
    %v3883 = vld [vmem:[#allocation7 + $0x118] sm:$0xff]
    %v3884 = vld [vmem:[#allocation7 + $0x120] sm:$0xff]
    %v3885 = vld [vmem:[#allocation7 + $0x128] sm:$0xff]
    %v3886 = vld [vmem:[#allocation7 + $0x130] sm:$0xff]
    %v3887 = vld [vmem:[#allocation7 + $0x138] sm:$0xff]
    %v3888 = vld [vmem:[#allocation7 + $0x140] sm:$0xff]
    %v3889 = vld [vmem:[#allocation7 + $0x148] sm:$0xff]
    %v3890 = vld [vmem:[#allocation7 + $0x150] sm:$0xff]
    %v3891 = vld [vmem:[#allocation7 + $0x158] sm:$0xff]
    %v3892 = vld [vmem:[#allocation7 + $0x160] sm:$0xff]
    %v3893 = vld [vmem:[#allocation7 + $0x168] sm:$0xff]
    %v3894 = vld [vmem:[#allocation7 + $0x170] sm:$0xff]
    %v3895 = vld [vmem:[#allocation7 + $0x178] sm:$0xff]
    %v3896 = vld [vmem:[%s9] sm:$0x7]
    %v3898 = vlaneseq
    %v3899 = vshrl.u32 %v3898, 7
    %v3900 = vsub.s32 0, %v3899
    %v3901 = vrot.slane %v3896, %v3900
    %v3902 = vlaneseq
    %v3903 = vshrl.u32 %v3902, 7
    %v3904 = vsub.s32 1, %v3903
    %v3905 = vrot.slane %v3896, %v3904
    %v3906 = vlaneseq
    %v3907 = vshrl.u32 %v3906, 7
    %v3908 = vsub.s32 2, %v3907
    %v3909 = vrot.slane %v3896, %v3908
    %3913 = vmatprep.subr.mxu0 %v3894
    %3914 = vmatpush1.msra.mxu0 %v3893
    %3915 = vmatprep.subr.mxu0 %v3891
    %3916 = vmatpush1.msra.mxu0 %v3890
    %3917 = vmatprep.subr.mxu0 %v3888
    %3918 = vmatpush1.msra.mxu0 %v3887
    %3919 = vmatprep.subr.mxu0 %v3885
    %3920 = vmatpush1.msra.mxu0 %v3884
    %3921 = vmatprep.subr.mxu0 %v3882
    %3922 = vmatpush1.msra.mxu0 %v3881
    %3923 = vmatprep.subr.mxu0 %v3879
    %3924 = vmatpush1.msra.mxu0 %v3878
    %3925 = vmatprep.subr.mxu0 %v3876
    %3926 = vmatpush1.msra.mxu0 %v3875
    %3927 = vmatprep.subr.mxu0 %v3873
    %3928 = vmatpush1.msra.mxu0 %v3872
    %3929 = vmatprep.subr.mxu0 %v3870
    %3930 = vmatpush1.msra.mxu0 %v3869
    %3931 = vmatprep.subr.mxu0 %v3867
    %3932 = vmatpush1.msra.mxu0 %v3866
    %3933 = vmatprep.subr.mxu0 %v3864
    %3934 = vmatpush1.msra.mxu0 %v3863
    %3935 = vmatprep.subr.mxu0 %v3861
    %3936 = vmatpush1.msra.mxu0 %v3860
    %3937 = vmatprep.subr.mxu0 %v3858
    %3938 = vmatpush1.msra.mxu0 %v3857
    %3939 = vmatprep.subr.mxu0 %v3855
    %3940 = vmatpush1.msra.mxu0 %v3854
    %3941 = vmatprep.subr.mxu0 %v3852
    %3942 = vmatpush1.msra.mxu0 %v3851
    %3943 = vmatprep.subr.mxu0 %v3849
    %3944 = vmatpush1.msra.mxu0 %v3848
    %3945 = vmatprep.subr.mxu0 0.0
    %3946 = vmatpush2.msra.mxu0 0.0
    %3947 = vmatprep.subr.mxu0 0.0
    %3948 = vmatpush2.msra.mxu0 0.0
    %3949 = vmatprep.subr.mxu0 0.0
    %3950 = vmatpush2.msra.mxu0 0.0
    %3951 = vmatprep.subr.mxu0 0.0
    %3952 = vmatpush2.msra.mxu0 0.0
    %3953 = vmatprep.subr.mxu0 0.0
    %3954 = vmatpush2.msra.mxu0 0.0
    %3955 = vmatprep.subr.mxu0 0.0
    %3956 = vmatpush2.msra.mxu0 0.0
    %3957 = vmatprep.subr.mxu0 0.0
    %3958 = vmatpush2.msra.mxu0 0.0
    %3959 = vmatprep.subr.mxu0 0.0
    %3960 = vmatpush2.msra.mxu0 0.0
    %3961 = vmatprep.subr.mxu0 0.0
    %3962 = vmatpush2.msra.mxu0 0.0
    %3963 = vmatprep.subr.mxu0 0.0
    %3964 = vmatpush2.msra.mxu0 0.0
    %3965 = vmatprep.subr.mxu0 0.0
    %3966 = vmatpush2.msra.mxu0 0.0
    %3967 = vmatprep.subr.mxu0 0.0
    %3968 = vmatpush2.msra.mxu0 0.0
    %3969 = vmatprep.subr.mxu0 0.0
    %3970 = vmatpush2.msra.mxu0 0.0
    %3971 = vmatprep.subr.mxu0 0.0
    %3972 = vmatpush2.msra.mxu0 0.0
    %3973 = vmatprep.subr.mxu0 0.0
    %3974 = vmatpush2.msra.mxu0 0.0
    %3975 = vmatprep.subr.mxu0 0.0
    %3976 = vmatpush2.msra.mxu0 0.0
    %3977 = vmatprep.mubr.f32.mxu0 0.0
    %3978 = vmatmul.mubr.f32.gmra.mxu0 %v3846
    %v3979 = vpop.f32.mrf.mxu0
    %v3980 = vadd.f32 %v3901, %v3979
    %v3981 = vpop.f32.mrf.mxu0
    %v3982 = vadd.f32 %v3905, %v3981
    %3983 = vdwg.mxu0
    %3984 = vmatprep.subr.mxu0 0.0
    %3985 = vmatpush1.msra.mxu0 %v3895
    %3986 = vmatprep.subr.mxu0 0.0
    %3987 = vmatpush1.msra.mxu0 %v3892
    %3988 = vmatprep.subr.mxu0 0.0
    %3989 = vmatpush1.msra.mxu0 %v3889
    %3990 = vmatprep.subr.mxu0 0.0
    %3991 = vmatpush1.msra.mxu0 %v3886
    %3992 = vmatprep.subr.mxu0 0.0
    %3993 = vmatpush1.msra.mxu0 %v3883
    %3994 = vmatprep.subr.mxu0 0.0
    %3995 = vmatpush1.msra.mxu0 %v3880
    %3996 = vmatprep.subr.mxu0 0.0
    %3997 = vmatpush1.msra.mxu0 %v3877
    %3998 = vmatprep.subr.mxu0 0.0
    %3999 = vmatpush1.msra.mxu0 %v3874
    %4000 = vmatprep.subr.mxu0 0.0
    %4001 = vmatpush1.msra.mxu0 %v3871
    %4002 = vmatprep.subr.mxu0 0.0
    %4003 = vmatpush1.msra.mxu0 %v3868
    %4004 = vmatprep.subr.mxu0 0.0
    %4005 = vmatpush1.msra.mxu0 %v3865
    %4006 = vmatprep.subr.mxu0 0.0
    %4007 = vmatpush1.msra.mxu0 %v3862
    %4008 = vmatprep.subr.mxu0 0.0
    %4009 = vmatpush1.msra.mxu0 %v3859
    %4010 = vmatprep.subr.mxu0 0.0
    %4011 = vmatpush1.msra.mxu0 %v3856
    %4012 = vmatprep.subr.mxu0 0.0
    %4013 = vmatpush1.msra.mxu0 %v3853
    %4014 = vmatprep.subr.mxu0 0.0
    %4015 = vmatpush1.msra.mxu0 %v3850
    %4016 = vmatprep.subr.mxu0 0.0
    %4017 = vmatpush2.msra.mxu0 0.0
    %4018 = vmatprep.subr.mxu0 0.0
    %4019 = vmatpush2.msra.mxu0 0.0
    %4020 = vmatprep.subr.mxu0 0.0
    %4021 = vmatpush2.msra.mxu0 0.0
    %4022 = vmatprep.subr.mxu0 0.0
    %4023 = vmatpush2.msra.mxu0 0.0
    %4024 = vmatprep.subr.mxu0 0.0
    %4025 = vmatpush2.msra.mxu0 0.0
    %4026 = vmatprep.subr.mxu0 0.0
    %4027 = vmatpush2.msra.mxu0 0.0
    %4028 = vmatprep.subr.mxu0 0.0
    %4029 = vmatpush2.msra.mxu0 0.0
    %4030 = vmatprep.subr.mxu0 0.0
    %4031 = vmatpush2.msra.mxu0 0.0
    %4032 = vmatprep.subr.mxu0 0.0
    %4033 = vmatpush2.msra.mxu0 0.0
    %4034 = vmatprep.subr.mxu0 0.0
    %4035 = vmatpush2.msra.mxu0 0.0
    %4036 = vmatprep.subr.mxu0 0.0
    %4037 = vmatpush2.msra.mxu0 0.0
    %4038 = vmatprep.subr.mxu0 0.0
    %4039 = vmatpush2.msra.mxu0 0.0
    %4040 = vmatprep.subr.mxu0 0.0
    %4041 = vmatpush2.msra.mxu0 0.0
    %4042 = vmatprep.subr.mxu0 0.0
    %4043 = vmatpush2.msra.mxu0 0.0
    %4044 = vmatprep.subr.mxu0 0.0
    %4045 = vmatpush2.msra.mxu0 0.0
    %4046 = vmatprep.subr.mxu0 0.0
    %4047 = vmatpush2.msra.mxu0 0.0
    %4048 = vmatprep.mubr.f32.mxu0 0.0
    %4049 = vmatmul.mubr.f32.gmra.mxu0 %v3846
    %v4050 = vpop.f32.mrf.mxu0
    %v4051 = vadd.f32 %v3909, %v4050
    %v4052 = vpop.f32.mrf.mxu0
    %4053 = vdwg.mxu0
    %v4054 = vadd.f32 %v2363, %v3980
    %v4055 = vxor.u32 %v4054, 2147483648
    %v4056 = vmul.f32 %v4055, 1.442695
    %v4057 = vpow.pop %v4056
    %v4058 = vadd.f32 %v4057, 1.0
    %v4059 = vrcp.pop %v4058
    %v4060 = vmul.f32 1.0, %v4059
    %v4061 = vadd.f32 %v2365, %v3982
    %v4062 = vxor.u32 %v4061, 2147483648
    %v4063 = vmul.f32 %v4062, 1.442695
    %v4064 = vpow.pop %v4063
    %v4065 = vadd.f32 %v4064, 1.0
    %v4066 = vrcp.pop %v4065
    %v4067 = vmul.f32 1.0, %v4066
    %v4068 = vmul.f32 %v4060, %v4051
    %v4069 = vadd.f32 %v2470, %v4068
    %v4070 = vtanh.pop %v4069
    %v4071 = vsub.f32 1.0, %v4067
    %v4072 = vmul.f32 %v4071, %v4070
    %v4073 = vmul.f32 %v4067, %v3846
    %v4074 = vadd.f32 %v4072, %v4073
    %4075 = vst [vmem:[#allocation2 + $0x30] sm:$0xff] %v4074
    %v4076 = vld [vmem:[#allocation7] sm:$0xff]
    %v4077 = vld [vmem:[#allocation7 + $0x8] sm:$0xff]
    %v4078 = vld [vmem:[#allocation7 + $0x10] sm:$0xff]
    %v4079 = vld [vmem:[#allocation7 + $0x18] sm:$0xff]
    %v4080 = vld [vmem:[#allocation7 + $0x20] sm:$0xff]
    %v4081 = vld [vmem:[#allocation7 + $0x28] sm:$0xff]
    %v4082 = vld [vmem:[#allocation7 + $0x30] sm:$0xff]
    %v4083 = vld [vmem:[#allocation7 + $0x38] sm:$0xff]
    %v4084 = vld [vmem:[#allocation7 + $0x40] sm:$0xff]
    %v4085 = vld [vmem:[#allocation7 + $0x48] sm:$0xff]
    %v4086 = vld [vmem:[#allocation7 + $0x50] sm:$0xff]
    %v4087 = vld [vmem:[#allocation7 + $0x58] sm:$0xff]
    %v4088 = vld [vmem:[#allocation7 + $0x60] sm:$0xff]
    %v4089 = vld [vmem:[#allocation7 + $0x68] sm:$0xff]
    %v4090 = vld [vmem:[#allocation7 + $0x70] sm:$0xff]
    %v4091 = vld [vmem:[#allocation7 + $0x78] sm:$0xff]
    %v4092 = vld [vmem:[#allocation7 + $0x80] sm:$0xff]
    %v4093 = vld [vmem:[#allocation7 + $0x88] sm:$0xff]
    %v4094 = vld [vmem:[#allocation7 + $0x90] sm:$0xff]
    %v4095 = vld [vmem:[#allocation7 + $0x98] sm:$0xff]
    %v4096 = vld [vmem:[#allocation7 + $0xa0] sm:$0xff]
    %v4097 = vld [vmem:[#allocation7 + $0xa8] sm:$0xff]
    %v4098 = vld [vmem:[#allocation7 + $0xb0] sm:$0xff]
    %v4099 = vld [vmem:[#allocation7 + $0xb8] sm:$0xff]
    %v4100 = vld [vmem:[#allocation7 + $0xc0] sm:$0xff]
    %v4101 = vld [vmem:[#allocation7 + $0xc8] sm:$0xff]
    %v4102 = vld [vmem:[#allocation7 + $0xd0] sm:$0xff]
    %v4103 = vld [vmem:[#allocation7 + $0xd8] sm:$0xff]
    %v4104 = vld [vmem:[#allocation7 + $0xe0] sm:$0xff]
    %v4105 = vld [vmem:[#allocation7 + $0xe8] sm:$0xff]
    %v4106 = vld [vmem:[#allocation7 + $0xf0] sm:$0xff]
    %v4107 = vld [vmem:[#allocation7 + $0xf8] sm:$0xff]
    %v4108 = vld [vmem:[#allocation7 + $0x100] sm:$0xff]
    %v4109 = vld [vmem:[#allocation7 + $0x108] sm:$0xff]
    %v4110 = vld [vmem:[#allocation7 + $0x110] sm:$0xff]
    %v4111 = vld [vmem:[#allocation7 + $0x118] sm:$0xff]
    %v4112 = vld [vmem:[#allocation7 + $0x120] sm:$0xff]
    %v4113 = vld [vmem:[#allocation7 + $0x128] sm:$0xff]
    %v4114 = vld [vmem:[#allocation7 + $0x130] sm:$0xff]
    %v4115 = vld [vmem:[#allocation7 + $0x138] sm:$0xff]
    %v4116 = vld [vmem:[#allocation7 + $0x140] sm:$0xff]
    %v4117 = vld [vmem:[#allocation7 + $0x148] sm:$0xff]
    %v4118 = vld [vmem:[#allocation7 + $0x150] sm:$0xff]
    %v4119 = vld [vmem:[#allocation7 + $0x158] sm:$0xff]
    %v4120 = vld [vmem:[#allocation7 + $0x160] sm:$0xff]
    %v4121 = vld [vmem:[#allocation7 + $0x168] sm:$0xff]
    %v4122 = vld [vmem:[#allocation7 + $0x170] sm:$0xff]
    %v4123 = vld [vmem:[#allocation7 + $0x178] sm:$0xff]
    %v4124 = vld [vmem:[%s9] sm:$0x7]
    %v4126 = vlaneseq
    %v4127 = vshrl.u32 %v4126, 7
    %v4128 = vsub.s32 0, %v4127
    %v4129 = vrot.slane %v4124, %v4128
    %v4130 = vlaneseq
    %v4131 = vshrl.u32 %v4130, 7
    %v4132 = vsub.s32 1, %v4131
    %v4133 = vrot.slane %v4124, %v4132
    %v4134 = vlaneseq
    %v4135 = vshrl.u32 %v4134, 7
    %v4136 = vsub.s32 2, %v4135
    %v4137 = vrot.slane %v4124, %v4136
    %4141 = vmatprep.subr.mxu0 %v4122
    %4142 = vmatpush1.msra.mxu0 %v4121
    %4143 = vmatprep.subr.mxu0 %v4119
    %4144 = vmatpush1.msra.mxu0 %v4118
    %4145 = vmatprep.subr.mxu0 %v4116
    %4146 = vmatpush1.msra.mxu0 %v4115
    %4147 = vmatprep.subr.mxu0 %v4113
    %4148 = vmatpush1.msra.mxu0 %v4112
    %4149 = vmatprep.subr.mxu0 %v4110
    %4150 = vmatpush1.msra.mxu0 %v4109
    %4151 = vmatprep.subr.mxu0 %v4107
    %4152 = vmatpush1.msra.mxu0 %v4106
    %4153 = vmatprep.subr.mxu0 %v4104
    %4154 = vmatpush1.msra.mxu0 %v4103
    %4155 = vmatprep.subr.mxu0 %v4101
    %4156 = vmatpush1.msra.mxu0 %v4100
    %4157 = vmatprep.subr.mxu0 %v4098
    %4158 = vmatpush1.msra.mxu0 %v4097
    %4159 = vmatprep.subr.mxu0 %v4095
    %4160 = vmatpush1.msra.mxu0 %v4094
    %4161 = vmatprep.subr.mxu0 %v4092
    %4162 = vmatpush1.msra.mxu0 %v4091
    %4163 = vmatprep.subr.mxu0 %v4089
    %4164 = vmatpush1.msra.mxu0 %v4088
    %4165 = vmatprep.subr.mxu0 %v4086
    %4166 = vmatpush1.msra.mxu0 %v4085
    %4167 = vmatprep.subr.mxu0 %v4083
    %4168 = vmatpush1.msra.mxu0 %v4082
    %4169 = vmatprep.subr.mxu0 %v4080
    %4170 = vmatpush1.msra.mxu0 %v4079
    %4171 = vmatprep.subr.mxu0 %v4077
    %4172 = vmatpush1.msra.mxu0 %v4076
    %4173 = vmatprep.subr.mxu0 0.0
    %4174 = vmatpush2.msra.mxu0 0.0
    %4175 = vmatprep.subr.mxu0 0.0
    %4176 = vmatpush2.msra.mxu0 0.0
    %4177 = vmatprep.subr.mxu0 0.0
    %4178 = vmatpush2.msra.mxu0 0.0
    %4179 = vmatprep.subr.mxu0 0.0
    %4180 = vmatpush2.msra.mxu0 0.0
    %4181 = vmatprep.subr.mxu0 0.0
    %4182 = vmatpush2.msra.mxu0 0.0
    %4183 = vmatprep.subr.mxu0 0.0
    %4184 = vmatpush2.msra.mxu0 0.0
    %4185 = vmatprep.subr.mxu0 0.0
    %4186 = vmatpush2.msra.mxu0 0.0
    %4187 = vmatprep.subr.mxu0 0.0
    %4188 = vmatpush2.msra.mxu0 0.0
    %4189 = vmatprep.subr.mxu0 0.0
    %4190 = vmatpush2.msra.mxu0 0.0
    %4191 = vmatprep.subr.mxu0 0.0
    %4192 = vmatpush2.msra.mxu0 0.0
    %4193 = vmatprep.subr.mxu0 0.0
    %4194 = vmatpush2.msra.mxu0 0.0
    %4195 = vmatprep.subr.mxu0 0.0
    %4196 = vmatpush2.msra.mxu0 0.0
    %4197 = vmatprep.subr.mxu0 0.0
    %4198 = vmatpush2.msra.mxu0 0.0
    %4199 = vmatprep.subr.mxu0 0.0
    %4200 = vmatpush2.msra.mxu0 0.0
    %4201 = vmatprep.subr.mxu0 0.0
    %4202 = vmatpush2.msra.mxu0 0.0
    %4203 = vmatprep.subr.mxu0 0.0
    %4204 = vmatpush2.msra.mxu0 0.0
    %4205 = vmatprep.mubr.f32.mxu0 0.0
    %4206 = vmatmul.mubr.f32.gmra.mxu0 %v4074
    %v4207 = vpop.f32.mrf.mxu0
    %v4208 = vadd.f32 %v4129, %v4207
    %v4209 = vpop.f32.mrf.mxu0
    %v4210 = vadd.f32 %v4133, %v4209
    %4211 = vdwg.mxu0
    %4212 = vmatprep.subr.mxu0 0.0
    %4213 = vmatpush1.msra.mxu0 %v4123
    %4214 = vmatprep.subr.mxu0 0.0
    %4215 = vmatpush1.msra.mxu0 %v4120
    %4216 = vmatprep.subr.mxu0 0.0
    %4217 = vmatpush1.msra.mxu0 %v4117
    %4218 = vmatprep.subr.mxu0 0.0
    %4219 = vmatpush1.msra.mxu0 %v4114
    %4220 = vmatprep.subr.mxu0 0.0
    %4221 = vmatpush1.msra.mxu0 %v4111
    %4222 = vmatprep.subr.mxu0 0.0
    %4223 = vmatpush1.msra.mxu0 %v4108
    %4224 = vmatprep.subr.mxu0 0.0
    %4225 = vmatpush1.msra.mxu0 %v4105
    %4226 = vmatprep.subr.mxu0 0.0
    %4227 = vmatpush1.msra.mxu0 %v4102
    %4228 = vmatprep.subr.mxu0 0.0
    %4229 = vmatpush1.msra.mxu0 %v4099
    %4230 = vmatprep.subr.mxu0 0.0
    %4231 = vmatpush1.msra.mxu0 %v4096
    %4232 = vmatprep.subr.mxu0 0.0
    %4233 = vmatpush1.msra.mxu0 %v4093
    %4234 = vmatprep.subr.mxu0 0.0
    %4235 = vmatpush1.msra.mxu0 %v4090
    %4236 = vmatprep.subr.mxu0 0.0
    %4237 = vmatpush1.msra.mxu0 %v4087
    %4238 = vmatprep.subr.mxu0 0.0
    %4239 = vmatpush1.msra.mxu0 %v4084
    %4240 = vmatprep.subr.mxu0 0.0
    %4241 = vmatpush1.msra.mxu0 %v4081
    %4242 = vmatprep.subr.mxu0 0.0
    %4243 = vmatpush1.msra.mxu0 %v4078
    %4244 = vmatprep.subr.mxu0 0.0
    %4245 = vmatpush2.msra.mxu0 0.0
    %4246 = vmatprep.subr.mxu0 0.0
    %4247 = vmatpush2.msra.mxu0 0.0
    %4248 = vmatprep.subr.mxu0 0.0
    %4249 = vmatpush2.msra.mxu0 0.0
    %4250 = vmatprep.subr.mxu0 0.0
    %4251 = vmatpush2.msra.mxu0 0.0
    %4252 = vmatprep.subr.mxu0 0.0
    %4253 = vmatpush2.msra.mxu0 0.0
    %4254 = vmatprep.subr.mxu0 0.0
    %4255 = vmatpush2.msra.mxu0 0.0
    %4256 = vmatprep.subr.mxu0 0.0
    %4257 = vmatpush2.msra.mxu0 0.0
    %4258 = vmatprep.subr.mxu0 0.0
    %4259 = vmatpush2.msra.mxu0 0.0
    %4260 = vmatprep.subr.mxu0 0.0
    %4261 = vmatpush2.msra.mxu0 0.0
    %4262 = vmatprep.subr.mxu0 0.0
    %4263 = vmatpush2.msra.mxu0 0.0
    %4264 = vmatprep.subr.mxu0 0.0
    %4265 = vmatpush2.msra.mxu0 0.0
    %4266 = vmatprep.subr.mxu0 0.0
    %4267 = vmatpush2.msra.mxu0 0.0
    %4268 = vmatprep.subr.mxu0 0.0
    %4269 = vmatpush2.msra.mxu0 0.0
    %4270 = vmatprep.subr.mxu0 0.0
    %4271 = vmatpush2.msra.mxu0 0.0
    %4272 = vmatprep.subr.mxu0 0.0
    %4273 = vmatpush2.msra.mxu0 0.0
    %4274 = vmatprep.subr.mxu0 0.0
    %4275 = vmatpush2.msra.mxu0 0.0
    %4276 = vmatprep.mubr.f32.mxu0 0.0
    %4277 = vmatmul.mubr.f32.gmra.mxu0 %v4074
    %v4278 = vpop.f32.mrf.mxu0
    %v4279 = vadd.f32 %v4137, %v4278
    %v4280 = vpop.f32.mrf.mxu0
    %4281 = vdwg.mxu0
    %v4282 = vadd.f32 %v2369, %v4208
    %v4283 = vxor.u32 %v4282, 2147483648
    %v4284 = vmul.f32 %v4283, 1.442695
    %v4285 = vpow.pop %v4284
    %v4286 = vadd.f32 %v4285, 1.0
    %v4287 = vrcp.pop %v4286
    %v4288 = vmul.f32 1.0, %v4287
    %v4289 = vadd.f32 %v2371, %v4210
    %v4290 = vxor.u32 %v4289, 2147483648
    %v4291 = vmul.f32 %v4290, 1.442695
    %v4292 = vpow.pop %v4291
    %v4293 = vadd.f32 %v4292, 1.0
    %v4294 = vrcp.pop %v4293
    %v4295 = vmul.f32 1.0, %v4294
    %v4296 = vmul.f32 %v4288, %v4279
    %v4297 = vadd.f32 %v2475, %v4296
    %v4298 = vtanh.pop %v4297
    %v4299 = vsub.f32 1.0, %v4295
    %v4300 = vmul.f32 %v4299, %v4298
    %v4301 = vmul.f32 %v4295, %v4074
    %v4302 = vadd.f32 %v4300, %v4301
    %4303 = vst [vmem:[#allocation2 + $0x38] sm:$0xff] %v4302
    %v4304 = vld [vmem:[#allocation2] sm:$0xff]
    %v4305 = vld [vmem:[#allocation2 + $0x8] sm:$0xff]
    %v4306 = vld [vmem:[#allocation2 + $0x10] sm:$0xff]
    %v4307 = vld [vmem:[#allocation2 + $0x18] sm:$0xff]
    %v4308 = vld [vmem:[#allocation2 + $0x20] sm:$0xff]
    %v4309 = vld [vmem:[#allocation2 + $0x28] sm:$0xff]
    %v4310 = vld [vmem:[#allocation2 + $0x30] sm:$0xff]
    %v4311 = vld [vmem:[#allocation2 + $0x38] sm:$0xff]
    %v4312 = vld [vmem:[%s10] sm:$0xff]
    %v4313 = vld [vmem:[%s10 + $0x8] sm:$0xff]
    %v4314 = vld [vmem:[%s10 + $0x10] sm:$0xff]
    %v4315 = vld [vmem:[%s10 + $0x18] sm:$0xff]
    %v4316 = vld [vmem:[%s10 + $0x20] sm:$0xff]
    %v4317 = vld [vmem:[%s10 + $0x28] sm:$0xff]
    %v4318 = vld [vmem:[%s10 + $0x30] sm:$0xff]
    %v4319 = vld [vmem:[%s10 + $0x38] sm:$0xff]
    %v4320 = vld [vmem:[%s10 + $0x40] sm:$0xff]
    %v4321 = vld [vmem:[%s10 + $0x48] sm:$0xff]
    %v4322 = vld [vmem:[%s10 + $0x50] sm:$0xff]
    %v4323 = vld [vmem:[%s10 + $0x58] sm:$0xff]
    %v4324 = vld [vmem:[%s10 + $0x60] sm:$0xff]
    %v4325 = vld [vmem:[%s10 + $0x68] sm:$0xff]
    %v4326 = vld [vmem:[%s10 + $0x70] sm:$0xff]
    %v4327 = vld [vmem:[%s10 + $0x78] sm:$0xff]
    %v4328 = vld [vmem:[%s11] sm:$0x1]
    %v4330 = vlaneseq
    %v4331 = vshrl.u32 %v4330, 7
    %v4332 = vsub.s32 0, %v4331
    %v4333 = vrot.slane %v4328, %v4332
    %4335 = vmatprep.subr.mxu0 0.0
    %4336 = vmatpush1.msra.mxu0 %v4327
    %4337 = vmatprep.subr.mxu0 0.0
    %4338 = vmatpush1.msra.mxu0 %v4326
    %4339 = vmatprep.subr.mxu0 0.0
    %4340 = vmatpush1.msra.mxu0 %v4325
    %4341 = vmatprep.subr.mxu0 0.0
    %4342 = vmatpush1.msra.mxu0 %v4324
    %4343 = vmatprep.subr.mxu0 0.0
    %4344 = vmatpush1.msra.mxu0 %v4323
    %4345 = vmatprep.subr.mxu0 0.0
    %4346 = vmatpush1.msra.mxu0 %v4322
    %4347 = vmatprep.subr.mxu0 0.0
    %4348 = vmatpush1.msra.mxu0 %v4321
    %4349 = vmatprep.subr.mxu0 0.0
    %4350 = vmatpush1.msra.mxu0 %v4320
    %4351 = vmatprep.subr.mxu0 0.0
    %4352 = vmatpush1.msra.mxu0 %v4319
    %4353 = vmatprep.subr.mxu0 0.0
    %4354 = vmatpush1.msra.mxu0 %v4318
    %4355 = vmatprep.subr.mxu0 0.0
    %4356 = vmatpush1.msra.mxu0 %v4317
    %4357 = vmatprep.subr.mxu0 0.0
    %4358 = vmatpush1.msra.mxu0 %v4316
    %4359 = vmatprep.subr.mxu0 0.0
    %4360 = vmatpush1.msra.mxu0 %v4315
    %4361 = vmatprep.subr.mxu0 0.0
    %4362 = vmatpush1.msra.mxu0 %v4314
    %4363 = vmatprep.subr.mxu0 0.0
    %4364 = vmatpush1.msra.mxu0 %v4313
    %4365 = vmatprep.subr.mxu0 0.0
    %4366 = vmatpush1.msra.mxu0 %v4312
    %4367 = vmatprep.subr.mxu0 0.0
    %4368 = vmatpush2.msra.mxu0 0.0
    %4369 = vmatprep.subr.mxu0 0.0
    %4370 = vmatpush2.msra.mxu0 0.0
    %4371 = vmatprep.subr.mxu0 0.0
    %4372 = vmatpush2.msra.mxu0 0.0
    %4373 = vmatprep.subr.mxu0 0.0
    %4374 = vmatpush2.msra.mxu0 0.0
    %4375 = vmatprep.subr.mxu0 0.0
    %4376 = vmatpush2.msra.mxu0 0.0
    %4377 = vmatprep.subr.mxu0 0.0
    %4378 = vmatpush2.msra.mxu0 0.0
    %4379 = vmatprep.subr.mxu0 0.0
    %4380 = vmatpush2.msra.mxu0 0.0
    %4381 = vmatprep.subr.mxu0 0.0
    %4382 = vmatpush2.msra.mxu0 0.0
    %4383 = vmatprep.subr.mxu0 0.0
    %4384 = vmatpush2.msra.mxu0 0.0
    %4385 = vmatprep.subr.mxu0 0.0
    %4386 = vmatpush2.msra.mxu0 0.0
    %4387 = vmatprep.subr.mxu0 0.0
    %4388 = vmatpush2.msra.mxu0 0.0
    %4389 = vmatprep.subr.mxu0 0.0
    %4390 = vmatpush2.msra.mxu0 0.0
    %4391 = vmatprep.subr.mxu0 0.0
    %4392 = vmatpush2.msra.mxu0 0.0
    %4393 = vmatprep.subr.mxu0 0.0
    %4394 = vmatpush2.msra.mxu0 0.0
    %4395 = vmatprep.subr.mxu0 0.0
    %4396 = vmatpush2.msra.mxu0 0.0
    %4397 = vmatprep.subr.mxu0 0.0
    %4398 = vmatpush2.msra.mxu0 0.0
    %4399 = vmatprep.mubr.f32.mxu0 0.0
    %4400 = vmatmul.mubr.f32.gmra.mxu0 %v4304
    %v4401 = vpop.f32.mrf.mxu0
    %v4402 = vadd.f32 %v4333, %v4401
    %v4403 = vpop.f32.mrf.mxu0
    %4404 = vmatprep.mubr.f32.mxu0 0.0
    %4405 = vmatmul.mubr.f32.gmra.mxu0 %v4305
    %v4406 = vpop.f32.mrf.mxu0
    %v4407 = vadd.f32 %v4333, %v4406
    %v4408 = vpop.f32.mrf.mxu0
    %4409 = vmatprep.mubr.f32.mxu0 0.0
    %4410 = vmatmul.mubr.f32.gmra.mxu0 %v4306
    %v4411 = vpop.f32.mrf.mxu0
    %v4412 = vadd.f32 %v4333, %v4411
    %v4413 = vpop.f32.mrf.mxu0
    %4414 = vmatprep.mubr.f32.mxu0 0.0
    %4415 = vmatmul.mubr.f32.gmra.mxu0 %v4307
    %v4416 = vpop.f32.mrf.mxu0
    %v4417 = vadd.f32 %v4333, %v4416
    %v4418 = vpop.f32.mrf.mxu0
    %4419 = vmatprep.mubr.f32.mxu0 0.0
    %4420 = vmatmul.mubr.f32.gmra.mxu0 %v4308
    %v4421 = vpop.f32.mrf.mxu0
    %v4422 = vadd.f32 %v4333, %v4421
    %v4423 = vpop.f32.mrf.mxu0
    %4424 = vmatprep.mubr.f32.mxu0 0.0
    %4425 = vmatmul.mubr.f32.gmra.mxu0 %v4309
    %v4426 = vpop.f32.mrf.mxu0
    %v4427 = vadd.f32 %v4333, %v4426
    %v4428 = vpop.f32.mrf.mxu0
    %4429 = vmatprep.mubr.f32.mxu0 0.0
    %4430 = vmatmul.mubr.f32.gmra.mxu0 %v4310
    %v4431 = vpop.f32.mrf.mxu0
    %v4432 = vadd.f32 %v4333, %v4431
    %v4433 = vpop.f32.mrf.mxu0
    %4434 = vmatprep.mubr.f32.mxu0 0.0
    %4435 = vmatmul.mubr.f32.gmra.mxu0 %v4311
    %v4436 = vpop.f32.mrf.mxu0
    %v4437 = vadd.f32 %v4333, %v4436
    %v4438 = vpop.f32.mrf.mxu0
    %4439 = vdwg.mxu0
    %v4440 = vlaneseq
    %v4441 = vand.u32 %v4440, 127
    %vm4442 = vcmp.lt.s32.totalorder %v4441, 20
    %v4443 = vsel %vm4442, %v4402, -1e+30
    %v4444 = vsel %vm4442, %v4407, -1e+30
    %v4445 = vsel %vm4442, %v4412, -1e+30
    %v4446 = vsel %vm4442, %v4417, -1e+30
    %v4447 = vsel %vm4442, %v4422, -1e+30
    %v4448 = vsel %vm4442, %v4427, -1e+30
    %v4449 = vsel %vm4442, %v4432, -1e+30
    %v4450 = vsel %vm4442, %v4437, -1e+30
    %v4451 = vsel %vm119, %v4443, -inf
    %4452 = vmax.xlane.f32.xlu0 %v4451
    %v4453 = vpop.xlane.xlu0 %4452
    %v4454 = vsel %vm119, %v4444, -inf
    %4455 = vmax.xlane.f32.xlu0 %v4454
    %v4456 = vpop.xlane.xlu0 %4455
    %v4457 = vsel %vm119, %v4445, -inf
    %4458 = vmax.xlane.f32.xlu0 %v4457
    %v4459 = vpop.xlane.xlu0 %4458
    %v4460 = vsel %vm119, %v4446, -inf
    %4461 = vmax.xlane.f32.xlu0 %v4460
    %v4462 = vpop.xlane.xlu0 %4461
    %v4463 = vsel %vm119, %v4447, -inf
    %4464 = vmax.xlane.f32.xlu0 %v4463
    %v4465 = vpop.xlane.xlu0 %4464
    %v4466 = vsel %vm119, %v4448, -inf
    %4467 = vmax.xlane.f32.xlu0 %v4466
    %v4468 = vpop.xlane.xlu0 %4467
    %v4469 = vsel %vm119, %v4449, -inf
    %4470 = vmax.xlane.f32.xlu0 %v4469
    %v4471 = vpop.xlane.xlu0 %4470
    %v4472 = vsel %vm119, %v4450, -inf
    %4473 = vmax.xlane.f32.xlu0 %v4472
    %v4474 = vpop.xlane.xlu0 %4473
    %v4475 = vsel %vm4442, -1e+30, %v4402
    %v4476 = vsel %vm4442, -1e+30, %v4407
    %v4477 = vsel %vm4442, -1e+30, %v4412
    %v4478 = vsel %vm4442, -1e+30, %v4417
    %v4479 = vsel %vm4442, -1e+30, %v4422
    %v4480 = vsel %vm4442, -1e+30, %v4427
    %v4481 = vsel %vm4442, -1e+30, %v4432
    %v4482 = vsel %vm4442, -1e+30, %v4437
    %v4483 = vsel %vm119, %v4475, -inf
    %4484 = vmax.xlane.f32.xlu0 %v4483
    %v4485 = vpop.xlane.xlu0 %4484
    %v4486 = vsel %vm119, %v4476, -inf
    %4487 = vmax.xlane.f32.xlu0 %v4486
    %v4488 = vpop.xlane.xlu0 %4487
    %v4489 = vsel %vm119, %v4477, -inf
    %4490 = vmax.xlane.f32.xlu0 %v4489
    %v4491 = vpop.xlane.xlu0 %4490
    %v4492 = vsel %vm119, %v4478, -inf
    %4493 = vmax.xlane.f32.xlu0 %v4492
    %v4494 = vpop.xlane.xlu0 %4493
    %v4495 = vsel %vm119, %v4479, -inf
    %4496 = vmax.xlane.f32.xlu0 %v4495
    %v4497 = vpop.xlane.xlu0 %4496
    %v4498 = vsel %vm119, %v4480, -inf
    %4499 = vmax.xlane.f32.xlu0 %v4498
    %v4500 = vpop.xlane.xlu0 %4499
    %v4501 = vsel %vm119, %v4481, -inf
    %4502 = vmax.xlane.f32.xlu0 %v4501
    %v4503 = vpop.xlane.xlu0 %4502
    %v4504 = vsel %vm119, %v4482, -inf
    %4505 = vmax.xlane.f32.xlu0 %v4504
    %v4506 = vpop.xlane.xlu0 %4505
    %v4507 = vsel %vm4442, %v4453, %v4485
    %v4508 = vsel %vm4442, %v4456, %v4488
    %v4509 = vsel %vm4442, %v4459, %v4491
    %v4510 = vsel %vm4442, %v4462, %v4494
    %v4511 = vsel %vm4442, %v4465, %v4497
    %v4512 = vsel %vm4442, %v4468, %v4500
    %v4513 = vsel %vm4442, %v4471, %v4503
    %v4514 = vsel %vm4442, %v4474, %v4506
    %v4515 = vsub.f32 %v4402, %v4507
    %v4516 = vsub.f32 %v4407, %v4508
    %v4517 = vsub.f32 %v4412, %v4509
    %v4518 = vsub.f32 %v4417, %v4510
    %v4519 = vsub.f32 %v4422, %v4511
    %v4520 = vsub.f32 %v4427, %v4512
    %v4521 = vsub.f32 %v4432, %v4513
    %v4522 = vsub.f32 %v4437, %v4514
    %v4523 = vmul.f32 %v4515, 1.442695
    %v4524 = vpow.pop %v4523
    %v4525 = vmul.f32 %v4516, 1.442695
    %v4526 = vpow.pop %v4525
    %v4527 = vmul.f32 %v4517, 1.442695
    %v4528 = vpow.pop %v4527
    %v4529 = vmul.f32 %v4518, 1.442695
    %v4530 = vpow.pop %v4529
    %v4531 = vmul.f32 %v4519, 1.442695
    %v4532 = vpow.pop %v4531
    %v4533 = vmul.f32 %v4520, 1.442695
    %v4534 = vpow.pop %v4533
    %v4535 = vmul.f32 %v4521, 1.442695
    %v4536 = vpow.pop %v4535
    %v4537 = vmul.f32 %v4522, 1.442695
    %v4538 = vpow.pop %v4537
    %v4539 = vsel %vm4442, %v4524, 0.0
    %v4540 = vsel %vm4442, %v4526, 0.0
    %v4541 = vsel %vm4442, %v4528, 0.0
    %v4542 = vsel %vm4442, %v4530, 0.0
    %v4543 = vsel %vm4442, %v4532, 0.0
    %v4544 = vsel %vm4442, %v4534, 0.0
    %v4545 = vsel %vm4442, %v4536, 0.0
    %v4546 = vsel %vm4442, %v4538, 0.0
    %v4547 = vsel %vm119, %v4539, 0.0
    %4548 = vadd.xlane.f32.xlu0 %v4547
    %v4549 = vpop.xlane.xlu0 %4548
    %v4550 = vsel %vm119, %v4540, 0.0
    %4551 = vadd.xlane.f32.xlu0 %v4550
    %v4552 = vpop.xlane.xlu0 %4551
    %v4553 = vsel %vm119, %v4541, 0.0
    %4554 = vadd.xlane.f32.xlu0 %v4553
    %v4555 = vpop.xlane.xlu0 %4554
    %v4556 = vsel %vm119, %v4542, 0.0
    %4557 = vadd.xlane.f32.xlu0 %v4556
    %v4558 = vpop.xlane.xlu0 %4557
    %v4559 = vsel %vm119, %v4543, 0.0
    %4560 = vadd.xlane.f32.xlu0 %v4559
    %v4561 = vpop.xlane.xlu0 %4560
    %v4562 = vsel %vm119, %v4544, 0.0
    %4563 = vadd.xlane.f32.xlu0 %v4562
    %v4564 = vpop.xlane.xlu0 %4563
    %v4565 = vsel %vm119, %v4545, 0.0
    %4566 = vadd.xlane.f32.xlu0 %v4565
    %v4567 = vpop.xlane.xlu0 %4566
    %v4568 = vsel %vm119, %v4546, 0.0
    %4569 = vadd.xlane.f32.xlu0 %v4568
    %v4570 = vpop.xlane.xlu0 %4569
    %v4571 = vsel %vm4442, 0.0, %v4524
    %v4572 = vsel %vm4442, 0.0, %v4526
    %v4573 = vsel %vm4442, 0.0, %v4528
    %v4574 = vsel %vm4442, 0.0, %v4530
    %v4575 = vsel %vm4442, 0.0, %v4532
    %v4576 = vsel %vm4442, 0.0, %v4534
    %v4577 = vsel %vm4442, 0.0, %v4536
    %v4578 = vsel %vm4442, 0.0, %v4538
    %v4579 = vsel %vm119, %v4571, 0.0
    %4580 = vadd.xlane.f32.xlu0 %v4579
    %v4581 = vpop.xlane.xlu0 %4580
    %v4582 = vsel %vm119, %v4572, 0.0
    %4583 = vadd.xlane.f32.xlu0 %v4582
    %v4584 = vpop.xlane.xlu0 %4583
    %v4585 = vsel %vm119, %v4573, 0.0
    %4586 = vadd.xlane.f32.xlu0 %v4585
    %v4587 = vpop.xlane.xlu0 %4586
    %v4588 = vsel %vm119, %v4574, 0.0
    %4589 = vadd.xlane.f32.xlu0 %v4588
    %v4590 = vpop.xlane.xlu0 %4589
    %v4591 = vsel %vm119, %v4575, 0.0
    %4592 = vadd.xlane.f32.xlu0 %v4591
    %v4593 = vpop.xlane.xlu0 %4592
    %v4594 = vsel %vm119, %v4576, 0.0
    %4595 = vadd.xlane.f32.xlu0 %v4594
    %v4596 = vpop.xlane.xlu0 %4595
    %v4597 = vsel %vm119, %v4577, 0.0
    %4598 = vadd.xlane.f32.xlu0 %v4597
    %v4599 = vpop.xlane.xlu0 %4598
    %v4600 = vsel %vm119, %v4578, 0.0
    %4601 = vadd.xlane.f32.xlu0 %v4600
    %v4602 = vpop.xlane.xlu0 %4601
    %v4603 = vsel %vm4442, %v4549, %v4581
    %v4604 = vsel %vm4442, %v4552, %v4584
    %v4605 = vsel %vm4442, %v4555, %v4587
    %v4606 = vsel %vm4442, %v4558, %v4590
    %v4607 = vsel %vm4442, %v4561, %v4593
    %v4608 = vsel %vm4442, %v4564, %v4596
    %v4609 = vsel %vm4442, %v4567, %v4599
    %v4610 = vsel %vm4442, %v4570, %v4602
    %v4611 = vrcp.pop %v4603
    %v4612 = vrcp.pop %v4604
    %v4613 = vrcp.pop %v4605
    %v4614 = vrcp.pop %v4606
    %v4615 = vrcp.pop %v4607
    %v4616 = vrcp.pop %v4608
    %v4617 = vrcp.pop %v4609
    %v4618 = vrcp.pop %v4610
    %v4619 = vmul.f32 %v4524, %v4611
    %v4620 = vmul.f32 %v4526, %v4612
    %v4621 = vmul.f32 %v4528, %v4613
    %v4622 = vmul.f32 %v4530, %v4614
    %v4623 = vmul.f32 %v4532, %v4615
    %v4624 = vmul.f32 %v4534, %v4616
    %v4625 = vmul.f32 %v4536, %v4617
    %v4626 = vmul.f32 %v4538, %v4618
    %4627 = vst.msk [vmem:[%s12] sm:$0xff] %vm119, %v4619
    %4628 = vst.msk [vmem:[%s12 + $0x8] sm:$0xff] %vm119, %v4620
    %4629 = vst.msk [vmem:[%s12 + $0x10] sm:$0xff] %vm119, %v4621
    %4630 = vst.msk [vmem:[%s12 + $0x18] sm:$0xff] %vm119, %v4622
    %4631 = vst.msk [vmem:[%s12 + $0x20] sm:$0xff] %vm119, %v4623
    %4632 = vst.msk [vmem:[%s12 + $0x28] sm:$0xff] %vm119, %v4624
    %4633 = vst.msk [vmem:[%s12 + $0x30] sm:$0xff] %vm119, %v4625
    %4634 = vst.msk [vmem:[%s12 + $0x38] sm:$0xff] %vm119, %v4626
    // Predicated region
    $region62: #{tpu_custom_call.1} parent=1 // pred_check
      _
    $region63: #{tpu_custom_call.1} parent=1 // pred_check_branch
      %4636 = sbr.rel (0) target = $region65
    $region64: #{tpu_custom_call.1} parent=1 // pred_region
      _
    $region65: #{tpu_custom_call.1} parent=1 // pred_fallthru
      _
    // Predicated region
    $region66: #{tpu_custom_call.1} parent=1 // pred_check
      _
    $region67: #{tpu_custom_call.1} parent=1 // pred_check_branch
      %4638 = sbr.rel (0) target = $region69
    $region68: #{tpu_custom_call.1} parent=1 // pred_region
      _
    $region69: #{tpu_custom_call.1} parent=1 // pred_fallthru
      _
    %4639 = vsyncpa [#allocation4], 1
    %4640 = vsyncpa [#allocation6], 1

</llo_original>
